<compile_context>
chip_gen: v7x
topology: tpu7x:2x2x1
jax: 0.10.0
libtpu: 0.0.40
codegen_flags: <defaults>
</compile_context>

<pallas_src>
import functools

import jax
import jax.numpy as jnp
from jax.experimental import pallas as pl
from jax.experimental.pallas import tpu as pltpu


def _softmax_lastdim(s):
    s = s - jnp.max(s, axis=-1, keepdims=True)
    p = jnp.exp(s)
    return p * pl.reciprocal(jnp.sum(p, axis=-1, keepdims=True), approx=True)


def _self_attention_kernel(x_ref, wqkv_ref, bqkv_ref, wp_ref, bp_ref, o_ref, *,
                           num_heads, mxu_dtype):
    Bt, N, C = x_ref.shape
    dh = C // num_heads
    M = Bt * N
    cast = (lambda a: a.astype(mxu_dtype)) if mxu_dtype is not None else (lambda a: a)

    xf = cast(x_ref[...].reshape(M, C))
    # One fused QKV projection: (M, C) x (C, 3C).  The qk scale is already
    # folded into the first C columns of wqkv / bqkv (done once in the wrapper).
    qkv = jnp.dot(xf, cast(wqkv_ref[...]),
                  preferred_element_type=jnp.float32) + bqkv_ref[...]        # (M, 3C)
    q3 = qkv[:, 0 * C:1 * C].reshape(Bt, N, C)
    k3 = qkv[:, 1 * C:2 * C].reshape(Bt, N, C)
    v3 = qkv[:, 2 * C:3 * C].reshape(Bt, N, C)

    wp = cast(wp_ref[...])
    # Accumulate the output projection head by head (no concat / relayout).
    acc = jnp.zeros((M, C), jnp.float32) + bp_ref[...]
    for h in range(num_heads):
        sl = slice(h * dh, (h + 1) * dh)
        # Per-window K/V: batched contraction over the head dim (no k.T).
        s = jnp.einsum('bnd,bmd->bnm', cast(q3[..., sl]), cast(k3[..., sl]),
                       preferred_element_type=jnp.float32)                   # (Bt, N, N)
        p = _softmax_lastdim(s)
        oh = jnp.einsum('bnm,bmd->bnd', cast(p), cast(v3[..., sl]),
                        preferred_element_type=jnp.float32)                  # (Bt, N, dh)
        acc = acc + jnp.dot(cast(oh.reshape(M, dh)), wp[sl, :],
                            preferred_element_type=jnp.float32)
    o_ref[...] = acc.reshape(Bt, N, C).astype(o_ref.dtype)


def _cross_attention_kernel(x_ref, kv_ref, wq_ref, bq_ref, wkv_ref, bkv_ref,
                            wp_ref, bp_ref, o_ref, *, num_heads, mxu_dtype):
    Bt, N, C = x_ref.shape
    dh = C // num_heads
    M = Bt * N
    cast = (lambda a: a.astype(mxu_dtype)) if mxu_dtype is not None else (lambda a: a)

    xf = cast(x_ref[...].reshape(M, C))
    q = jnp.dot(xf, cast(wq_ref[...]),
                preferred_element_type=jnp.float32) + bq_ref[...]            # (M, C), scale folded in
    kvf = cast(kv_ref[...])                                                  # (N_kv, C) shared by all windows
    # Fused K|V projection: (N_kv, C) x (C, 2C), computed once per grid step.
    kv = jnp.dot(kvf, cast(wkv_ref[...]),
                 preferred_element_type=jnp.float32) + bkv_ref[...]          # (N_kv, 2C)

    wp = cast(wp_ref[...])
    acc = jnp.zeros((M, C), jnp.float32) + bp_ref[...]
    for h in range(num_heads):
        sl = slice(h * dh, (h + 1) * dh)
        k_h = kv[:, h * dh:(h + 1) * dh]
        v_h = kv[:, C + h * dh:C + (h + 1) * dh]
        # All windows share K/V: stay fully 2-D (M rows = Bt*N tokens).
        s = jax.lax.dot_general(cast(q[:, sl]), cast(k_h),
                                dimension_numbers=(((1,), (1,)), ((), ())),
                                preferred_element_type=jnp.float32)          # (M, N_kv)
        p = _softmax_lastdim(s)
        oh = jnp.dot(cast(p), cast(v_h), preferred_element_type=jnp.float32)  # (M, dh)
        acc = acc + jnp.dot(cast(oh), wp[sl, :], preferred_element_type=jnp.float32)
    o_ref[...] = acc.reshape(Bt, N, C).astype(o_ref.dtype)


def _pick_block_windows(B, N, N_kv, C, itemsize, vmem_budget=40 << 20):
    """Largest window-batch Bt (divisor of B) whose per-step footprint fits the
    budget, preferring a grid of >= 2 steps so both v7x TensorCores get work."""
    def fits(bt):
        m = bt * N
        per_step = (
            2 * 2 * m * C * itemsize          # x in + out blocks, double-buffered
            + 3 * m * C * 4                   # fused q/k/v intermediates (f32)
            + m * max(N, N_kv) * 4            # one head's score block (f32)
            + m * C * 4                       # output-projection accumulator (f32)
        )
        weights = 2 * (4 * C * C + 4 * C) * itemsize
        return per_step + weights <= vmem_budget

    divisors = [d for d in range(1, B + 1) if B % d == 0]
    candidates = [d for d in divisors if fits(d)] or [1]
    best = max(candidates)
    if best == B and B > 1:
        smaller = [d for d in divisors if B // d >= 2 and fits(d)]
        if smaller:
            best = max(smaller)
    return best


def window_attention_pallas(x, params, num_heads, attn_kv=None, *,
                            block_windows=None, mxu_dtype=None):
    """Forward pass of the PyTorch `WindowAttention` (token_projection='linear').

    x: (B, N, C) float32.
    attn_kv: optional (N_kv, C); broadcast over batch (matches
             attn_kv.unsqueeze(0).repeat(B,1,1)) without materializing the copy.
    mxu_dtype: optional (e.g. jnp.bfloat16) for MXU operands on v6e/v7x;
               accumulation and softmax stay f32.
    """
    B, N, C = x.shape
    assert C % num_heads == 0
    scale = (C // num_heads) ** (-0.5)

    wq, bq, wk, bk, wv, bv, wp, bp = params
    # Fold the qk scale into the Q projection (weight-only O(C^2) transform,
    # constant-foldable under jit -- NOT activation pre-scaling).
    wq_s, bq_s = wq * scale, bq * scale

    shared_kv = attn_kv is not None
    N_kv = attn_kv.shape[0] if shared_kv else N

    if block_windows is None:
        block_windows = _pick_block_windows(B, N, N_kv, C, x.dtype.itemsize)
    Bt = block_windows
    assert B % Bt == 0
    grid = (B // Bt,)

    const2d = lambda shp: pl.BlockSpec(shp, lambda b: (0, 0))
    x_spec = pl.BlockSpec((Bt, N, C), lambda b: (b, 0, 0))
    out_spec = pl.BlockSpec((Bt, N, C), lambda b: (b, 0, 0))
    bp2 = bp.reshape(1, C)

    if shared_kv:
        w_kv = jnp.concatenate([wk, wv], axis=1)                  # (C, 2C)
        b_kv = jnp.concatenate([bk, bv]).reshape(1, 2 * C)
        kernel = functools.partial(_cross_attention_kernel,
                                   num_heads=num_heads, mxu_dtype=mxu_dtype)
        in_specs = [x_spec, const2d((N_kv, C)),
                    const2d((C, C)), const2d((1, C)),
                    const2d((C, 2 * C)), const2d((1, 2 * C)),
                    const2d((C, C)), const2d((1, C))]
        args = (x, attn_kv, wq_s, bq_s.reshape(1, C), w_kv, b_kv, wp, bp2)
    else:
        w_qkv = jnp.concatenate([wq_s, wk, wv], axis=1)           # (C, 3C)
        b_qkv = jnp.concatenate([bq_s, bk, bv]).reshape(1, 3 * C)
        kernel = functools.partial(_self_attention_kernel,
                                   num_heads=num_heads, mxu_dtype=mxu_dtype)
        in_specs = [x_spec,
                    const2d((C, 3 * C)), const2d((1, 3 * C)),
                    const2d((C, C)), const2d((1, C))]
        args = (x, w_qkv, b_qkv, wp, bp2)

    return pl.pallas_call(
        kernel,
        out_shape=jax.ShapeDtypeStruct((B, N, C), x.dtype),
        grid_spec=pltpu.PrefetchScalarGridSpec(
            num_scalar_prefetch=0,
            grid=grid,
            in_specs=in_specs,
            out_specs=out_spec,
        ),
        compiler_params=pltpu.CompilerParams(
            dimension_semantics=("parallel",),
            vmem_limit_bytes=64 * 1024 * 1024,
        ),
    )(*args)


def _reference(x, params, num_heads, attn_kv=None):
    """Pure-JAX reference mirroring the PyTorch forward."""
    B, N, C = x.shape
    dh = C // num_heads
    scale = dh ** (-0.5)
    wq, bq, wk, bk, wv, bv, wp, bp = params
    kv_in = x if attn_kv is None else jnp.broadcast_to(attn_kv[None], (B,) + attn_kv.shape)
    q = x @ wq + bq
    k = kv_in @ wk + bk
    v = kv_in @ wv + bv
    rh = lambda t: t.reshape(B, -1, num_heads, dh).transpose(0, 2, 1, 3)
    q, k, v = rh(q) * scale, rh(k), rh(v)
    attn = jax.nn.softmax(q @ k.transpose(0, 1, 3, 2), axis=-1)
    out = (attn @ v).transpose(0, 2, 1, 3).reshape(B, N, C)
    return out @ wp + bp


def init_params(key, dim):
    """Deterministic nn.Linear-style init; Wkv split into Wk / Wv (equivalent)."""
    ks = jax.random.split(key, 8)
    u = lambda k, shape, bound: jax.random.uniform(k, shape, jnp.float32, -bound, bound)
    bound = 1.0 / (dim ** 0.5)
    wq = u(ks[0], (dim, dim), bound)
    bq = u(ks[1], (dim,), bound)
    wk = u(ks[2], (dim, dim), bound)
    bk = u(ks[3], (dim,), bound)
    wv = u(ks[4], (dim, dim), bound)
    bv = u(ks[5], (dim,), bound)
    wp = u(ks[6], (dim, dim), bound)
    bp = u(ks[7], (dim,), bound)
    return (wq, bq, wk, bk, wv, bv, wp, bp)


if __name__ == "__main__":
    B, N, C = 8, 8, 32        # 8 windows of 8 tokens, dim 32
    num_heads = 4
    N_kv = 16

    key = jax.random.PRNGKey(0)
    kx, kp, kkv = jax.random.split(key, 3)
    x = jax.random.normal(kx, (B, N, C), dtype=jnp.float32)
    params = init_params(kp, C)

    # Self-attention path (attn_kv=None): fused QKV projection per grid step.
    out = jax.block_until_ready(window_attention_pallas(x, params, num_heads))
    ref = _reference(x, params, num_heads)
    assert out.shape == (B, N, C)
    assert jnp.allclose(out, ref, atol=2e-3, rtol=2e-3), "self-attn mismatch vs reference"

    # Cross-attention path: shared (N_kv, C) attn_kv, broadcast over batch
    # inside the kernel (never materialized as (B, N_kv, C) in HBM).
    attn_kv = jax.random.normal(kkv, (N_kv, C), dtype=jnp.float32)
    out2 = jax.block_until_ready(
        window_attention_pallas(x, params, num_heads, attn_kv=attn_kv))
    ref2 = _reference(x, params, num_heads, attn_kv=attn_kv)
    assert out2.shape == (B, N, C)
    assert jnp.allclose(out2, ref2, atol=2e-3, rtol=2e-3), "cross-attn mismatch vs reference"

    print("KERNEL_OK")
</pallas_src>

<mosaic_0001>
module attributes {stable_mosaic.version = 11 : i64} {
  func.func @_self_attention_kernel(%arg0: i32, %arg1: memref<4x8x32xf32, #tpu.memory_space<vmem>>, %arg2: memref<32x96xf32, #tpu.memory_space<vmem>>, %arg3: memref<1x96xf32, #tpu.memory_space<vmem>>, %arg4: memref<32x32xf32, #tpu.memory_space<vmem>>, %arg5: memref<1x32xf32, #tpu.memory_space<vmem>>, %arg6: memref<4x8x32xf32, #tpu.memory_space<vmem>>) attributes {dimension_semantics = [#tpu.dimension_semantics<parallel>], iteration_bounds = array<i64: 2>, scalar_prefetch = 0 : i64, scratch_operands = 0 : i64, tpu.core_type = #tpu.core_type<tc>, window_params = [{transform_indices = @transform_0, window_bounds = array<i64: 4, 8, 32>}, {pipeline_mode = #tpu.pipeline_mode<synchronous>, transform_indices = @transform_1, window_bounds = array<i64: 32, 96>}, {pipeline_mode = #tpu.pipeline_mode<synchronous>, transform_indices = @transform_2, window_bounds = array<i64: 1, 96>}, {pipeline_mode = #tpu.pipeline_mode<synchronous>, transform_indices = @transform_3, window_bounds = array<i64: 32, 32>}, {pipeline_mode = #tpu.pipeline_mode<synchronous>, transform_indices = @transform_4, window_bounds = array<i64: 1, 32>}, {transform_indices = @transform_5, window_bounds = array<i64: 4, 8, 32>}]} {
    %c0 = arith.constant 0 : index
    %c0_0 = arith.constant 0 : index
    %c0_1 = arith.constant 0 : index
    %0 = vector.load %arg1[%c0, %c0_0, %c0_1] : memref<4x8x32xf32, #tpu.memory_space<vmem>>, vector<4x8x32xf32>
    %1 = vector.shape_cast %0 : vector<4x8x32xf32> to vector<32x32xf32>
    %c0_2 = arith.constant 0 : index
    %c0_3 = arith.constant 0 : index
    %2 = vector.load %arg2[%c0_2, %c0_3] : memref<32x96xf32, #tpu.memory_space<vmem>>, vector<32x96xf32>
    %cst = arith.constant dense<0.000000e+00> : vector<32x96xf32>
    %3 = tpu.matmul %1, %2, %cst {dimension_numbers = #tpu.dot_dimension_numbers<[1], [0], [0], [1], [0, 0, 1, 1], [], []>} : vector<32x32xf32>, vector<32x96xf32>, vector<32x96xf32> -> vector<32x96xf32>
    %c0_4 = arith.constant 0 : index
    %c0_5 = arith.constant 0 : index
    %4 = vector.load %arg3[%c0_4, %c0_5] : memref<1x96xf32, #tpu.memory_space<vmem>>, vector<1x96xf32>
    %5 = vector.broadcast %4 : vector<1x96xf32> to vector<32x96xf32>
    %6 = arith.addf %3, %5 : vector<32x96xf32>
    %7 = vector.extract_strided_slice %6 {offsets = [0, 0], sizes = [32, 32], strides = [1, 1]} : vector<32x96xf32> to vector<32x32xf32>
    %8 = vector.shape_cast %7 : vector<32x32xf32> to vector<4x8x32xf32>
    %9 = vector.extract_strided_slice %6 {offsets = [0, 32], sizes = [32, 32], strides = [1, 1]} : vector<32x96xf32> to vector<32x32xf32>
    %10 = vector.shape_cast %9 : vector<32x32xf32> to vector<4x8x32xf32>
    %11 = vector.extract_strided_slice %6 {offsets = [0, 64], sizes = [32, 32], strides = [1, 1]} : vector<32x96xf32> to vector<32x32xf32>
    %12 = vector.shape_cast %11 : vector<32x32xf32> to vector<4x8x32xf32>
    %c0_6 = arith.constant 0 : index
    %c0_7 = arith.constant 0 : index
    %13 = vector.load %arg4[%c0_6, %c0_7] : memref<32x32xf32, #tpu.memory_space<vmem>>, vector<32x32xf32>
    %cst_8 = arith.constant 0.000000e+00 : f32
    %14 = vector.broadcast %cst_8 : f32 to vector<32x32xf32>
    %c0_9 = arith.constant 0 : index
    %c0_10 = arith.constant 0 : index
    %15 = vector.load %arg5[%c0_9, %c0_10] : memref<1x32xf32, #tpu.memory_space<vmem>>, vector<1x32xf32>
    %16 = vector.broadcast %15 : vector<1x32xf32> to vector<32x32xf32>
    %17 = arith.addf %14, %16 : vector<32x32xf32>
    %18 = vector.extract_strided_slice %8 {offsets = [0, 0, 0], sizes = [4, 8, 8], strides = [1, 1, 1]} : vector<4x8x32xf32> to vector<4x8x8xf32>
    %19 = vector.extract_strided_slice %10 {offsets = [0, 0, 0], sizes = [4, 8, 8], strides = [1, 1, 1]} : vector<4x8x32xf32> to vector<4x8x8xf32>
    "tpu.trace_start"() <{level = 10 : i32, message = "bnd,bmd->bnm"}> : () -> ()
    %cst_11 = arith.constant dense<0.000000e+00> : vector<4x8x8xf32>
    %20 = tpu.matmul %18, %19, %cst_11 {dimension_numbers = #tpu.dot_dimension_numbers<[2], [2], [1], [1], [0, 0, 0, 1, 1, 1], [0], [0]>} : vector<4x8x8xf32>, vector<4x8x8xf32>, vector<4x8x8xf32> -> vector<4x8x8xf32>
    "tpu.trace_stop"() : () -> ()
    %cst_12 = arith.constant dense<0xFF800000> : vector<4x8xf32>
    %21 = vector.multi_reduction <maximumf>, %20, %cst_12 [2] : vector<4x8x8xf32> to vector<4x8xf32>
    %22 = vector.shape_cast %21 : vector<4x8xf32> to vector<4x8x1xf32>
    %23 = vector.broadcast %22 : vector<4x8x1xf32> to vector<4x8x8xf32>
    %24 = arith.subf %20, %23 : vector<4x8x8xf32>
    %25 = math.exp %24 : vector<4x8x8xf32>
    %cst_13 = arith.constant dense<0.000000e+00> : vector<4x8xf32>
    %26 = vector.multi_reduction <add>, %25, %cst_13 [2] : vector<4x8x8xf32> to vector<4x8xf32>
    %27 = vector.shape_cast %26 : vector<4x8xf32> to vector<4x8x1xf32>
    %28 = tpu.reciprocal %27 {approx = true} : vector<4x8x1xf32> -> vector<4x8x1xf32>
    %29 = vector.broadcast %28 : vector<4x8x1xf32> to vector<4x8x8xf32>
    %30 = arith.mulf %25, %29 : vector<4x8x8xf32>
    %31 = vector.extract_strided_slice %12 {offsets = [0, 0, 0], sizes = [4, 8, 8], strides = [1, 1, 1]} : vector<4x8x32xf32> to vector<4x8x8xf32>
    "tpu.trace_start"() <{level = 10 : i32, message = "bnm,bmd->bnd"}> : () -> ()
    %cst_14 = arith.constant dense<0.000000e+00> : vector<4x8x8xf32>
    %32 = tpu.matmul %30, %31, %cst_14 {dimension_numbers = #tpu.dot_dimension_numbers<[2], [1], [1], [2], [0, 0, 0, 1, 1, 2], [0], [0]>} : vector<4x8x8xf32>, vector<4x8x8xf32>, vector<4x8x8xf32> -> vector<4x8x8xf32>
    "tpu.trace_stop"() : () -> ()
    %33 = vector.shape_cast %32 : vector<4x8x8xf32> to vector<32x8xf32>
    %34 = vector.extract_strided_slice %13 {offsets = [0, 0], sizes = [8, 32], strides = [1, 1]} : vector<32x32xf32> to vector<8x32xf32>
    %cst_15 = arith.constant dense<0.000000e+00> : vector<32x32xf32>
    %35 = tpu.matmul %33, %34, %cst_15 {dimension_numbers = #tpu.dot_dimension_numbers<[1], [0], [0], [1], [0, 0, 1, 1], [], []>} : vector<32x8xf32>, vector<8x32xf32>, vector<32x32xf32> -> vector<32x32xf32>
    %36 = arith.addf %17, %35 : vector<32x32xf32>
    %37 = vector.extract_strided_slice %8 {offsets = [0, 0, 8], sizes = [4, 8, 8], strides = [1, 1, 1]} : vector<4x8x32xf32> to vector<4x8x8xf32>
    %38 = vector.extract_strided_slice %10 {offsets = [0, 0, 8], sizes = [4, 8, 8], strides = [1, 1, 1]} : vector<4x8x32xf32> to vector<4x8x8xf32>
    "tpu.trace_start"() <{level = 10 : i32, message = "bnd,bmd->bnm"}> : () -> ()
    %cst_16 = arith.constant dense<0.000000e+00> : vector<4x8x8xf32>
    %39 = tpu.matmul %37, %38, %cst_16 {dimension_numbers = #tpu.dot_dimension_numbers<[2], [2], [1], [1], [0, 0, 0, 1, 1, 1], [0], [0]>} : vector<4x8x8xf32>, vector<4x8x8xf32>, vector<4x8x8xf32> -> vector<4x8x8xf32>
    "tpu.trace_stop"() : () -> ()
    %cst_17 = arith.constant dense<0xFF800000> : vector<4x8xf32>
    %40 = vector.multi_reduction <maximumf>, %39, %cst_17 [2] : vector<4x8x8xf32> to vector<4x8xf32>
    %41 = vector.shape_cast %40 : vector<4x8xf32> to vector<4x8x1xf32>
    %42 = vector.broadcast %41 : vector<4x8x1xf32> to vector<4x8x8xf32>
    %43 = arith.subf %39, %42 : vector<4x8x8xf32>
    %44 = math.exp %43 : vector<4x8x8xf32>
    %cst_18 = arith.constant dense<0.000000e+00> : vector<4x8xf32>
    %45 = vector.multi_reduction <add>, %44, %cst_18 [2] : vector<4x8x8xf32> to vector<4x8xf32>
    %46 = vector.shape_cast %45 : vector<4x8xf32> to vector<4x8x1xf32>
    %47 = tpu.reciprocal %46 {approx = true} : vector<4x8x1xf32> -> vector<4x8x1xf32>
    %48 = vector.broadcast %47 : vector<4x8x1xf32> to vector<4x8x8xf32>
    %49 = arith.mulf %44, %48 : vector<4x8x8xf32>
    %50 = vector.extract_strided_slice %12 {offsets = [0, 0, 8], sizes = [4, 8, 8], strides = [1, 1, 1]} : vector<4x8x32xf32> to vector<4x8x8xf32>
    "tpu.trace_start"() <{level = 10 : i32, message = "bnm,bmd->bnd"}> : () -> ()
    %cst_19 = arith.constant dense<0.000000e+00> : vector<4x8x8xf32>
    %51 = tpu.matmul %49, %50, %cst_19 {dimension_numbers = #tpu.dot_dimension_numbers<[2], [1], [1], [2], [0, 0, 0, 1, 1, 2], [0], [0]>} : vector<4x8x8xf32>, vector<4x8x8xf32>, vector<4x8x8xf32> -> vector<4x8x8xf32>
    "tpu.trace_stop"() : () -> ()
    %52 = vector.shape_cast %51 : vector<4x8x8xf32> to vector<32x8xf32>
    %53 = vector.extract_strided_slice %13 {offsets = [8, 0], sizes = [8, 32], strides = [1, 1]} : vector<32x32xf32> to vector<8x32xf32>
    %cst_20 = arith.constant dense<0.000000e+00> : vector<32x32xf32>
    %54 = tpu.matmul %52, %53, %cst_20 {dimension_numbers = #tpu.dot_dimension_numbers<[1], [0], [0], [1], [0, 0, 1, 1], [], []>} : vector<32x8xf32>, vector<8x32xf32>, vector<32x32xf32> -> vector<32x32xf32>
    %55 = arith.addf %36, %54 : vector<32x32xf32>
    %56 = vector.extract_strided_slice %8 {offsets = [0, 0, 16], sizes = [4, 8, 8], strides = [1, 1, 1]} : vector<4x8x32xf32> to vector<4x8x8xf32>
    %57 = vector.extract_strided_slice %10 {offsets = [0, 0, 16], sizes = [4, 8, 8], strides = [1, 1, 1]} : vector<4x8x32xf32> to vector<4x8x8xf32>
    "tpu.trace_start"() <{level = 10 : i32, message = "bnd,bmd->bnm"}> : () -> ()
    %cst_21 = arith.constant dense<0.000000e+00> : vector<4x8x8xf32>
    %58 = tpu.matmul %56, %57, %cst_21 {dimension_numbers = #tpu.dot_dimension_numbers<[2], [2], [1], [1], [0, 0, 0, 1, 1, 1], [0], [0]>} : vector<4x8x8xf32>, vector<4x8x8xf32>, vector<4x8x8xf32> -> vector<4x8x8xf32>
    "tpu.trace_stop"() : () -> ()
    %cst_22 = arith.constant dense<0xFF800000> : vector<4x8xf32>
    %59 = vector.multi_reduction <maximumf>, %58, %cst_22 [2] : vector<4x8x8xf32> to vector<4x8xf32>
    %60 = vector.shape_cast %59 : vector<4x8xf32> to vector<4x8x1xf32>
    %61 = vector.broadcast %60 : vector<4x8x1xf32> to vector<4x8x8xf32>
    %62 = arith.subf %58, %61 : vector<4x8x8xf32>
    %63 = math.exp %62 : vector<4x8x8xf32>
    %cst_23 = arith.constant dense<0.000000e+00> : vector<4x8xf32>
    %64 = vector.multi_reduction <add>, %63, %cst_23 [2] : vector<4x8x8xf32> to vector<4x8xf32>
    %65 = vector.shape_cast %64 : vector<4x8xf32> to vector<4x8x1xf32>
    %66 = tpu.reciprocal %65 {approx = true} : vector<4x8x1xf32> -> vector<4x8x1xf32>
    %67 = vector.broadcast %66 : vector<4x8x1xf32> to vector<4x8x8xf32>
    %68 = arith.mulf %63, %67 : vector<4x8x8xf32>
    %69 = vector.extract_strided_slice %12 {offsets = [0, 0, 16], sizes = [4, 8, 8], strides = [1, 1, 1]} : vector<4x8x32xf32> to vector<4x8x8xf32>
    "tpu.trace_start"() <{level = 10 : i32, message = "bnm,bmd->bnd"}> : () -> ()
    %cst_24 = arith.constant dense<0.000000e+00> : vector<4x8x8xf32>
    %70 = tpu.matmul %68, %69, %cst_24 {dimension_numbers = #tpu.dot_dimension_numbers<[2], [1], [1], [2], [0, 0, 0, 1, 1, 2], [0], [0]>} : vector<4x8x8xf32>, vector<4x8x8xf32>, vector<4x8x8xf32> -> vector<4x8x8xf32>
    "tpu.trace_stop"() : () -> ()
    %71 = vector.shape_cast %70 : vector<4x8x8xf32> to vector<32x8xf32>
    %72 = vector.extract_strided_slice %13 {offsets = [16, 0], sizes = [8, 32], strides = [1, 1]} : vector<32x32xf32> to vector<8x32xf32>
    %cst_25 = arith.constant dense<0.000000e+00> : vector<32x32xf32>
    %73 = tpu.matmul %71, %72, %cst_25 {dimension_numbers = #tpu.dot_dimension_numbers<[1], [0], [0], [1], [0, 0, 1, 1], [], []>} : vector<32x8xf32>, vector<8x32xf32>, vector<32x32xf32> -> vector<32x32xf32>
    %74 = arith.addf %55, %73 : vector<32x32xf32>
    %75 = vector.extract_strided_slice %8 {offsets = [0, 0, 24], sizes = [4, 8, 8], strides = [1, 1, 1]} : vector<4x8x32xf32> to vector<4x8x8xf32>
    %76 = vector.extract_strided_slice %10 {offsets = [0, 0, 24], sizes = [4, 8, 8], strides = [1, 1, 1]} : vector<4x8x32xf32> to vector<4x8x8xf32>
    "tpu.trace_start"() <{level = 10 : i32, message = "bnd,bmd->bnm"}> : () -> ()
    %cst_26 = arith.constant dense<0.000000e+00> : vector<4x8x8xf32>
    %77 = tpu.matmul %75, %76, %cst_26 {dimension_numbers = #tpu.dot_dimension_numbers<[2], [2], [1], [1], [0, 0, 0, 1, 1, 1], [0], [0]>} : vector<4x8x8xf32>, vector<4x8x8xf32>, vector<4x8x8xf32> -> vector<4x8x8xf32>
    "tpu.trace_stop"() : () -> ()
    %cst_27 = arith.constant dense<0xFF800000> : vector<4x8xf32>
    %78 = vector.multi_reduction <maximumf>, %77, %cst_27 [2] : vector<4x8x8xf32> to vector<4x8xf32>
    %79 = vector.shape_cast %78 : vector<4x8xf32> to vector<4x8x1xf32>
    %80 = vector.broadcast %79 : vector<4x8x1xf32> to vector<4x8x8xf32>
    %81 = arith.subf %77, %80 : vector<4x8x8xf32>
    %82 = math.exp %81 : vector<4x8x8xf32>
    %cst_28 = arith.constant dense<0.000000e+00> : vector<4x8xf32>
    %83 = vector.multi_reduction <add>, %82, %cst_28 [2] : vector<4x8x8xf32> to vector<4x8xf32>
    %84 = vector.shape_cast %83 : vector<4x8xf32> to vector<4x8x1xf32>
    %85 = tpu.reciprocal %84 {approx = true} : vector<4x8x1xf32> -> vector<4x8x1xf32>
    %86 = vector.broadcast %85 : vector<4x8x1xf32> to vector<4x8x8xf32>
    %87 = arith.mulf %82, %86 : vector<4x8x8xf32>
    %88 = vector.extract_strided_slice %12 {offsets = [0, 0, 24], sizes = [4, 8, 8], strides = [1, 1, 1]} : vector<4x8x32xf32> to vector<4x8x8xf32>
    "tpu.trace_start"() <{level = 10 : i32, message = "bnm,bmd->bnd"}> : () -> ()
    %cst_29 = arith.constant dense<0.000000e+00> : vector<4x8x8xf32>
    %89 = tpu.matmul %87, %88, %cst_29 {dimension_numbers = #tpu.dot_dimension_numbers<[2], [1], [1], [2], [0, 0, 0, 1, 1, 2], [0], [0]>} : vector<4x8x8xf32>, vector<4x8x8xf32>, vector<4x8x8xf32> -> vector<4x8x8xf32>
    "tpu.trace_stop"() : () -> ()
    %90 = vector.shape_cast %89 : vector<4x8x8xf32> to vector<32x8xf32>
    %91 = vector.extract_strided_slice %13 {offsets = [24, 0], sizes = [8, 32], strides = [1, 1]} : vector<32x32xf32> to vector<8x32xf32>
    %cst_30 = arith.constant dense<0.000000e+00> : vector<32x32xf32>
    %92 = tpu.matmul %90, %91, %cst_30 {dimension_numbers = #tpu.dot_dimension_numbers<[1], [0], [0], [1], [0, 0, 1, 1], [], []>} : vector<32x8xf32>, vector<8x32xf32>, vector<32x32xf32> -> vector<32x32xf32>
    %93 = arith.addf %74, %92 : vector<32x32xf32>
    %94 = vector.shape_cast %93 : vector<32x32xf32> to vector<4x8x32xf32>
    %c0_31 = arith.constant 0 : index
    %c0_32 = arith.constant 0 : index
    %c0_33 = arith.constant 0 : index
    %95 = vector.load %arg6[%c0_31, %c0_32, %c0_33] : memref<4x8x32xf32, #tpu.memory_space<vmem>>, vector<4x8x32xf32>
    tpu.vector_store %arg6[%c0_31, %c0_32, %c0_33], %94 {strides = array<i32>} : memref<4x8x32xf32, #tpu.memory_space<vmem>>, vector<4x8x32xf32>,
    return
  }
  func.func @transform_0(%arg0: i32) -> (i32, i32, i32) {
    %c0_i32 = arith.constant 0 : i32
    %c0_i32_0 = arith.constant 0 : i32
    %c0_i32_1 = arith.constant 0 : i32
    return %arg0, %c0_i32, %c0_i32_0 : i32, i32, i32
  }
  func.func @transform_1(%arg0: i32) -> (i32, i32) {
    %c0_i32 = arith.constant 0 : i32
    %c0_i32_0 = arith.constant 0 : i32
    %c0_i32_1 = arith.constant 0 : i32
    return %c0_i32, %c0_i32_0 : i32, i32
  }
  func.func @transform_2(%arg0: i32) -> (i32, i32) {
    %c0_i32 = arith.constant 0 : i32
    %c0_i32_0 = arith.constant 0 : i32
    %c0_i32_1 = arith.constant 0 : i32
    return %c0_i32, %c0_i32_0 : i32, i32
  }
  func.func @transform_3(%arg0: i32) -> (i32, i32) {
    %c0_i32 = arith.constant 0 : i32
    %c0_i32_0 = arith.constant 0 : i32
    %c0_i32_1 = arith.constant 0 : i32
    return %c0_i32, %c0_i32_0 : i32, i32
  }
  func.func @transform_4(%arg0: i32) -> (i32, i32) {
    %c0_i32 = arith.constant 0 : i32
    %c0_i32_0 = arith.constant 0 : i32
    %c0_i32_1 = arith.constant 0 : i32
    return %c0_i32, %c0_i32_0 : i32, i32
  }
  func.func @transform_5(%arg0: i32) -> (i32, i32, i32) {
    %c0_i32 = arith.constant 0 : i32
    %c0_i32_0 = arith.constant 0 : i32
    %c0_i32_1 = arith.constant 0 : i32
    return %arg0, %c0_i32, %c0_i32_0 : i32, i32, i32
  }
}

</mosaic_0001>

<llo_original>
// kernel: tpu_custom_call.1
$region0: #{tpu_custom_call.1}
  #allocation0 [shape = 'u32[]', space=smem, size = 0x4, offset = 0x4, fixed_abs, tag = 'smem constant byte address 0x4 - core index']
  #allocation1 [shape = 'u32[144,128]{1,0:T(1,128)}', space=vmem, size = 0x12000, scoped, tag = 'internal scratch']
  %s0 = inlined_call_operand.hbm [shape: f32[8,8,32], index: 0, kind: input, shape index: {}]
  %s1 = inlined_call_operand.hbm [shape: f32[32,96], index: 1, kind: input, shape index: {}]
  %s2 = inlined_call_operand.hbm [shape: f32[1,96], index: 2, kind: input, shape index: {}]
  %s3 = inlined_call_operand.hbm [shape: f32[32,32], index: 3, kind: input, shape index: {}]
  %s4 = inlined_call_operand.hbm [shape: f32[1,32], index: 4, kind: input, shape index: {}]
  %s5 = inlined_call_operand.hbm [shape: f32[8,8,32], index: 5, kind: output, shape index: {}]
  %s6 = sld [smem:[#allocation0]]
  $region73: #{tpu_custom_call.1} parent=0
    _
  %s8 = ssub.s32 1, %s6
  %s9 = scalar_select 0, %s8, %s6
  $region1: #{tpu_custom_call.1} parent=0
    #allocation2 [shape = 'u8[32768]{0}', space=vmem, size = 0x8000, scoped, tag = 'input window, operand 0']
    #allocation3 [shape = 's32[2]{0}', space=sflag, size = 0x8, scoped, tag = 'scoped memory for tpu_custom_call.1']
    #allocation4 [shape = 's32[2]{0}', space=sflag, size = 0x8, scoped, tag = 'scoped memory for tpu_custom_call.1']
    #allocation5 [shape = 'u8[16384]{0}', space=vmem, size = 0x4000, scoped, tag = 'input window, operand 1, single buffered']
    #allocation6 [shape = 's32[1]{0}', space=sflag, size = 0x4, scoped, tag = 'scoped memory for tpu_custom_call.1']
    #allocation7 [shape = 'u8[512]{0}', space=vmem, size = 0x400, scoped, tag = 'input window, operand 2, single buffered']
    #allocation8 [shape = 'u8[16384]{0}', space=vmem, size = 0x4000, scoped, tag = 'input window, operand 3, single buffered']
    #allocation9 [shape = 's32[1]{0}', space=sflag, size = 0x4, scoped, tag = 'scoped memory for tpu_custom_call.1']
    #allocation10 [shape = 'u8[512]{0}', space=vmem, size = 0x400, scoped, tag = 'input window, operand 4, single buffered']
    #allocation11 [shape = 'u8[32768]{0}', space=vmem, size = 0x8000, scoped, tag = 'output window, operand 0']
    %10 = vsyncpa [#allocation3], 0
    %s11 = scalar_lea.sflag [#allocation3], 1
    %12 = vsyncpa %s11, 0
    %13 = vsyncpa [#allocation6], 0
    %14 = vsyncpa [#allocation9], 0
    %15 = vsyncpa [#allocation4], 0
    %s16 = scalar_lea.sflag [#allocation4], 1
    %17 = vsyncpa %s16, 0
    loop: start=0, step=1, limit=4
    $region2: #{tpu_custom_call.1} parent=1 // loop_pre_header
      _
    $region3: #{tpu_custom_call.1} parent=1 // loop_header
      %s19 = sphi 0, %s23
      %p20 = scmp.ge.s32.totalorder %s19, 4
      %s29 = sphi 0, %s31
      %s32 = sphi 0, %s29
      %s33 = sphi 0, %s32
      %s49 = sphi 0, %s33
      %s53 = sphi 0, %s53
      %s55 = sphi 0, %s53
      %s56 = sphi 0, %s55
      %s70 = sphi 0, %s56
      %s74 = sphi 0, %s74
      %s76 = sphi 0, %s74
      %s77 = sphi 0, %s76
      %s91 = sphi 0, %s77
      %s95 = sphi 0, %s95
      %s97 = sphi 0, %s95
      %s98 = sphi 0, %s97
      %s112 = sphi 0, %s98
      %s116 = sphi 0, %s116
      %s118 = sphi 0, %s116
      %s119 = sphi 0, %s118
      %s133 = sphi 0, %s119
      %s139 = sphi 0, %s141
      %s142 = sphi 0, %s139
      %s143 = sphi 0, %s142
      %s159 = sphi 0, %s143
    $region4: #{tpu_custom_call.1} parent=1 // loop_header_branch
      %22 = sbr.rel (%p20) target = $region8
    $region5: #{tpu_custom_call.1} parent=1 // loop_body
      %s24 = ssub.s32 %s19, 1
      %s25 = ssub.s32 %s19, 2
      %s26 = sadd.s32 %s19, 1
      %s27 = ssub.s32 %s19, %s26
      %p28 = scmp.eq.s32.totalorder %s27, 0
      %s30 = sadd.s32 %s29, 1
      %s31 = scalar_select %p28, %s29, %s30
      %p34 = pneg %p28
      %p35 = scmp.eq.s32.totalorder %s19, 1
      %p36 = por %p34, %p35
      %p37 = scmp.ne.s32.totalorder %s29, %s32
      %p38 = scmp.eq.s32.totalorder %s19, 0
      %p39 = por %p37, %p38
      %p40 = scmp.ne.s32.totalorder %s29, %s32
      %p41 = scmp.eq.s32.totalorder %s24, 1
      %p42 = por %p40, %p41
      %p43 = scmp.ne.s32.totalorder %s32, %s33
      %p44 = scmp.eq.s32.totalorder %s24, 0
      %p45 = por %p43, %p44
      %p46 = scmp.ne.s32.totalorder %s32, %s33
      %p47 = scmp.eq.s32.totalorder %s25, 1
      %p48 = por %p46, %p47
      %p50 = scmp.ne.s32.totalorder %s33, %s49
      %p51 = scmp.eq.s32.totalorder %s25, 0
      %p52 = por %p50, %p51
      %s54 = sadd.s32 %s53, 1
      %p57 = scmp.eq.s32.totalorder %s19, 1
      %p58 = scmp.ne.s32.totalorder %s53, %s55
      %p59 = scmp.eq.s32.totalorder %s19, 0
      %p60 = por %p58, %p59
      %p61 = scmp.ne.s32.totalorder %s53, %s55
      %p62 = scmp.eq.s32.totalorder %s24, 1
      %p63 = por %p61, %p62
      %p64 = scmp.ne.s32.totalorder %s55, %s56
      %p65 = scmp.eq.s32.totalorder %s24, 0
      %p66 = por %p64, %p65
      %p67 = scmp.ne.s32.totalorder %s55, %s56
      %p68 = scmp.eq.s32.totalorder %s25, 1
      %p69 = por %p67, %p68
      %p71 = scmp.ne.s32.totalorder %s56, %s70
      %p72 = scmp.eq.s32.totalorder %s25, 0
      %p73 = por %p71, %p72
      %s75 = sadd.s32 %s74, 1
      %p78 = scmp.eq.s32.totalorder %s19, 1
      %p79 = scmp.ne.s32.totalorder %s74, %s76
      %p80 = scmp.eq.s32.totalorder %s19, 0
      %p81 = por %p79, %p80
      %p82 = scmp.ne.s32.totalorder %s74, %s76
      %p83 = scmp.eq.s32.totalorder %s24, 1
      %p84 = por %p82, %p83
      %p85 = scmp.ne.s32.totalorder %s76, %s77
      %p86 = scmp.eq.s32.totalorder %s24, 0
      %p87 = por %p85, %p86
      %p88 = scmp.ne.s32.totalorder %s76, %s77
      %p89 = scmp.eq.s32.totalorder %s25, 1
      %p90 = por %p88, %p89
      %p92 = scmp.ne.s32.totalorder %s77, %s91
      %p93 = scmp.eq.s32.totalorder %s25, 0
      %p94 = por %p92, %p93
      %s96 = sadd.s32 %s95, 1
      %p99 = scmp.eq.s32.totalorder %s19, 1
      %p100 = scmp.ne.s32.totalorder %s95, %s97
      %p101 = scmp.eq.s32.totalorder %s19, 0
      %p102 = por %p100, %p101
      %p103 = scmp.ne.s32.totalorder %s95, %s97
      %p104 = scmp.eq.s32.totalorder %s24, 1
      %p105 = por %p103, %p104
      %p106 = scmp.ne.s32.totalorder %s97, %s98
      %p107 = scmp.eq.s32.totalorder %s24, 0
      %p108 = por %p106, %p107
      %p109 = scmp.ne.s32.totalorder %s97, %s98
      %p110 = scmp.eq.s32.totalorder %s25, 1
      %p111 = por %p109, %p110
      %p113 = scmp.ne.s32.totalorder %s98, %s112
      %p114 = scmp.eq.s32.totalorder %s25, 0
      %p115 = por %p113, %p114
      %s117 = sadd.s32 %s116, 1
      %p120 = scmp.eq.s32.totalorder %s19, 1
      %p121 = scmp.ne.s32.totalorder %s116, %s118
      %p122 = scmp.eq.s32.totalorder %s19, 0
      %p123 = por %p121, %p122
      %p124 = scmp.ne.s32.totalorder %s116, %s118
      %p125 = scmp.eq.s32.totalorder %s24, 1
      %p126 = por %p124, %p125
      %p127 = scmp.ne.s32.totalorder %s118, %s119
      %p128 = scmp.eq.s32.totalorder %s24, 0
      %p129 = por %p127, %p128
      %p130 = scmp.ne.s32.totalorder %s118, %s119
      %p131 = scmp.eq.s32.totalorder %s25, 1
      %p132 = por %p130, %p131
      %p134 = scmp.ne.s32.totalorder %s119, %s133
      %p135 = scmp.eq.s32.totalorder %s25, 0
      %p136 = por %p134, %p135
      %s137 = ssub.s32 %s19, %s26
      %p138 = scmp.eq.s32.totalorder %s137, 0
      %s140 = sadd.s32 %s139, 1
      %s141 = scalar_select %p138, %s139, %s140
      %p144 = pneg %p138
      %p145 = scmp.eq.s32.totalorder %s19, 1
      %p146 = por %p144, %p145
      %p147 = scmp.ne.s32.totalorder %s139, %s142
      %p148 = scmp.eq.s32.totalorder %s19, 0
      %p149 = por %p147, %p148
      %p150 = scmp.ne.s32.totalorder %s139, %s142
      %p151 = scmp.eq.s32.totalorder %s24, 1
      %p152 = por %p150, %p151
      %p153 = scmp.ne.s32.totalorder %s142, %s143
      %p154 = scmp.eq.s32.totalorder %s24, 0
      %p155 = por %p153, %p154
      %p156 = scmp.ne.s32.totalorder %s142, %s143
      %p157 = scmp.eq.s32.totalorder %s25, 1
      %p158 = por %p156, %p157
      %p160 = scmp.ne.s32.totalorder %s143, %s159
      %p161 = scmp.eq.s32.totalorder %s25, 0
      %p162 = por %p160, %p161
      %p163 = scmp.le.s32.totalorder 1, %s19
      %p164 = scmp.lt.s32.totalorder %s19, 3
      %p165 = pnand %p163, %p164
      %p166 = pneg %p165
      // Predicated region
      $region9: #{tpu_custom_call.1} parent=5 // pred_check
        _
      $region10: #{tpu_custom_call.1} parent=5 // pred_check_branch
        %168 = sbr.rel (%p165) target = $region12
      $region11: #{tpu_custom_call.1} parent=5 // pred_region
        %s169 = ssub.s32 %s19, 1
        // Predicated region
        $region13: #{tpu_custom_call.1} parent=11 // pred_check
          %p170 = pneg %p66
        $region14: #{tpu_custom_call.1} parent=11 // pred_check_branch
          %172 = sbr.rel (%p170) target = $region16
        $region15: #{tpu_custom_call.1} parent=11 // pred_region
          %s174 = ssub.s32 512, 512
          %175 = vsyncadd [#allocation6], %s174
          %s176 = sshll.u32 [#allocation5], 4
          %s177 = int_to_ptr.vmem [resolvable:$true] %s176
          %182 = dma.hbm_to_vmem [thread:$0]  %s1, 512, %s177, [#allocation6], 128, 128, 8
        $region16: #{tpu_custom_call.1} parent=11 // pred_fallthru
          _
        // Predicated region
        $region17: #{tpu_custom_call.1} parent=11 // pred_check
          %p183 = pneg %p87
        $region18: #{tpu_custom_call.1} parent=11 // pred_check_branch
          %185 = sbr.rel (%p183) target = $region20
        $region19: #{tpu_custom_call.1} parent=11 // pred_region
          %s187 = ssub.s32 16, 16
          %188 = vsyncadd [#allocation6], %s187
          %s190 = sshll.u32 [#allocation7], 4
          %s191 = int_to_ptr.vmem [resolvable:$true] %s190
          %193 = dma.hbm_to_vmem [thread:$0]  %s2, 16, %s191, [#allocation6]
        $region20: #{tpu_custom_call.1} parent=11 // pred_fallthru
          _
        // Predicated region
        $region21: #{tpu_custom_call.1} parent=11 // pred_check
          %p194 = pneg %p108
        $region22: #{tpu_custom_call.1} parent=11 // pred_check_branch
          %196 = sbr.rel (%p194) target = $region24
        $region23: #{tpu_custom_call.1} parent=11 // pred_region
          %s198 = ssub.s32 512, 512
          %199 = vsyncadd [#allocation9], %s198
          %s200 = sshll.u32 [#allocation8], 4
          %s201 = int_to_ptr.vmem [resolvable:$true] %s200
          %206 = dma.hbm_to_vmem [thread:$0]  %s3, 512, %s201, [#allocation9], 128, 128, 8
        $region24: #{tpu_custom_call.1} parent=11 // pred_fallthru
          _
        // Predicated region
        $region25: #{tpu_custom_call.1} parent=11 // pred_check
          %p207 = pneg %p129
        $region26: #{tpu_custom_call.1} parent=11 // pred_check_branch
          %209 = sbr.rel (%p207) target = $region28
        $region27: #{tpu_custom_call.1} parent=11 // pred_region
          %s211 = ssub.s32 16, 16
          %212 = vsyncadd [#allocation9], %s211
          %s214 = sshll.u32 [#allocation10], 4
          %s215 = int_to_ptr.vmem [resolvable:$true] %s214
          %217 = dma.hbm_to_vmem [thread:$0]  %s4, 16, %s215, [#allocation9]
        $region28: #{tpu_custom_call.1} parent=11 // pred_fallthru
          _
      $region12: #{tpu_custom_call.1} parent=5 // pred_fallthru
        _
      %p218 = scmp.lt.s32.totalorder %s19, 2
      // Predicated region
      $region29: #{tpu_custom_call.1} parent=5 // pred_check
        %p219 = pneg %p218
      $region30: #{tpu_custom_call.1} parent=5 // pred_check_branch
        %221 = sbr.rel (%p219) target = $region32
      $region31: #{tpu_custom_call.1} parent=5 // pred_region
        // Predicated region
        $region33: #{tpu_custom_call.1} parent=31 // pred_check
          %p222 = pneg %p39
        $region34: #{tpu_custom_call.1} parent=31 // pred_check_branch
          %224 = sbr.rel (%p222) target = $region36
        $region35: #{tpu_custom_call.1} parent=31 // pred_region
          %s225 = sand.u32 %s29, 1
          %s226 = scalar_lea.sflag [#allocation3], %s225
          %s227 = sand.u32 %s29, 1
          %s228 = smul.addr %s227, 32
          %s229 = scalar_lea.vmem [#allocation2], %s228
          %s230 = smul.u32 4, %s19
          %s232 = ssub.s32 512, 512
          %233 = vsyncadd %s226, %s232
          %s234 = smul.addr %s230, 128
          %s235 = scalar_lea.hbm %s0, %s234
          %s236 = sshll.u32 %s229, 4
          %s237 = int_to_ptr.vmem [resolvable:$true] %s236
          %242 = dma.hbm_to_vmem [thread:$0]  %s235, 512, %s237, %s226, 128, 128, 8
        $region36: #{tpu_custom_call.1} parent=31 // pred_fallthru
          _
      $region32: #{tpu_custom_call.1} parent=5 // pred_fallthru
        _
      %p243 = scmp.le.s32.totalorder 1, %s19
      %p244 = scmp.lt.s32.totalorder %s19, 3
      %p245 = pnand %p243, %p244
      %p246 = pneg %p245
      // Predicated region
      $region37: #{tpu_custom_call.1} parent=5 // pred_check
        _
      $region38: #{tpu_custom_call.1} parent=5 // pred_check_branch
        %248 = sbr.rel (%p245) target = $region40
      $region39: #{tpu_custom_call.1} parent=5 // pred_region
        %s249 = ssub.s32 %s19, 1
        %s250 = sand.u32 %s32, 1
        %s251 = scalar_lea.sflag [#allocation3], %s250
        %s252 = sand.u32 %s32, 1
        %s253 = smul.addr %s252, 32
        %s254 = scalar_lea.vmem [#allocation2], %s253
        // Predicated region
        $region41: #{tpu_custom_call.1} parent=39 // pred_check
          %p255 = pneg %p45
        $region42: #{tpu_custom_call.1} parent=39 // pred_check_branch
          %257 = sbr.rel (%p255) target = $region44
        $region43: #{tpu_custom_call.1} parent=39 // pred_region
          %258 = dma.done %s251, 512
        $region44: #{tpu_custom_call.1} parent=39 // pred_fallthru
          _
        // Predicated region
        $region45: #{tpu_custom_call.1} parent=39 // pred_check
          %p259 = pneg %p66
        $region46: #{tpu_custom_call.1} parent=39 // pred_check_branch
          %261 = sbr.rel (%p259) target = $region48
        $region47: #{tpu_custom_call.1} parent=39 // pred_region
          %262 = dma.done [#allocation6], 512
        $region48: #{tpu_custom_call.1} parent=39 // pred_fallthru
          _
        // Predicated region
        $region49: #{tpu_custom_call.1} parent=39 // pred_check
          %p263 = pneg %p87
        $region50: #{tpu_custom_call.1} parent=39 // pred_check_branch
          %265 = sbr.rel (%p263) target = $region52
        $region51: #{tpu_custom_call.1} parent=39 // pred_region
          %266 = dma.done [#allocation6], 16
        $region52: #{tpu_custom_call.1} parent=39 // pred_fallthru
          _
        // Predicated region
        $region53: #{tpu_custom_call.1} parent=39 // pred_check
          %p267 = pneg %p108
        $region54: #{tpu_custom_call.1} parent=39 // pred_check_branch
          %269 = sbr.rel (%p267) target = $region56
        $region55: #{tpu_custom_call.1} parent=39 // pred_region
          %270 = dma.done [#allocation9], 512
        $region56: #{tpu_custom_call.1} parent=39 // pred_fallthru
          _
        // Predicated region
        $region57: #{tpu_custom_call.1} parent=39 // pred_check
          %p271 = pneg %p129
        $region58: #{tpu_custom_call.1} parent=39 // pred_check_branch
          %273 = sbr.rel (%p271) target = $region60
        $region59: #{tpu_custom_call.1} parent=39 // pred_region
          %274 = dma.done [#allocation9], 16
        $region60: #{tpu_custom_call.1} parent=39 // pred_fallthru
          _
        %s275 = sand.u32 %s32, 1
        %s276 = scalar_lea.sflag [#allocation3], %s275
        %s277 = sand.u32 %s32, 1
        %s278 = smul.addr %s277, 32
        %s279 = scalar_lea.vmem [#allocation2], %s278
        %p280 = pneg %p45
        %p281 = pneg %p42
        %p282 = pneg %p66
        %p283 = pneg %p63
        %p284 = pneg %p87
        %p285 = pneg %p84
        %p286 = pneg %p108
        %p287 = pneg %p105
        %p288 = pneg %p129
        %p289 = pneg %p126
        %p290 = pneg %p155
        %p291 = pneg %p152
        %s292 = sand.u32 %s142, 1
        %s293 = scalar_lea.sflag [#allocation4], %s292
        %s294 = sand.u32 %s142, 1
        %s295 = smul.addr %s294, 32
        %s296 = scalar_lea.vmem [#allocation11], %s295
        %s297 = smul.u32 4, %s24
        %s298 = smul.u32 4, %s24
        %v299 = vld [vmem:[%s254] sm:$0xff]
        %v300 = vld [vmem:[%s254 + $0x8] sm:$0xff]
        %v301 = vld [vmem:[%s254 + $0x10] sm:$0xff]
        %v302 = vld [vmem:[%s254 + $0x18] sm:$0xff]
        %v303 = vld [vmem:[#allocation5] sm:$0xff]
        %v304 = vld [vmem:[#allocation5 + $0x8] sm:$0xff]
        %v305 = vld [vmem:[#allocation5 + $0x10] sm:$0xff]
        %v306 = vld [vmem:[#allocation5 + $0x18] sm:$0xff]
        %v307 = vld [vmem:[#allocation7] sm:$0x1]
        %v309 = vlaneseq
        %v310 = vshrl.u32 %v309, 7
        %v311 = vsub.s32 0, %v310
        %v312 = vrot.slane %v307, %v311
        %vm314 = vcmask 261120
        %v316 = vsel %vm314, %v299, 0
        %v319 = vsel %vm314, %v300, 0
        %v322 = vsel %vm314, %v301, 0
        %v325 = vsel %vm314, %v302, 0
        %327 = vmatprep.subr.mxu0 0.0
        %328 = vmatpush1.msra.mxu0 %v303
        %329 = vmatprep.subr.mxu0 0.0
        %330 = vmatpush1.msra.mxu0 %v304
        %331 = vmatprep.subr.mxu0 0.0
        %332 = vmatpush1.msra.mxu0 %v305
        %333 = vmatprep.subr.mxu0 0.0
        %334 = vmatpush1.msra.mxu0 %v306
        %335 = vmatprep.subr.mxu0 0.0
        %336 = vmatpush1.msra.mxu0 0.0
        %337 = vmatprep.subr.mxu0 0.0
        %338 = vmatpush1.msra.mxu0 0.0
        %339 = vmatprep.subr.mxu0 0.0
        %340 = vmatpush1.msra.mxu0 0.0
        %341 = vmatprep.subr.mxu0 0.0
        %342 = vmatpush1.msra.mxu0 0.0
        %343 = vmatprep.subr.mxu0 0.0
        %344 = vmatpush1.msra.mxu0 0.0
        %345 = vmatprep.subr.mxu0 0.0
        %346 = vmatpush1.msra.mxu0 0.0
        %347 = vmatprep.subr.mxu0 0.0
        %348 = vmatpush1.msra.mxu0 0.0
        %349 = vmatprep.subr.mxu0 0.0
        %350 = vmatpush1.msra.mxu0 0.0
        %351 = vmatprep.subr.mxu0 0.0
        %352 = vmatpush1.msra.mxu0 0.0
        %353 = vmatprep.subr.mxu0 0.0
        %354 = vmatpush1.msra.mxu0 0.0
        %355 = vmatprep.subr.mxu0 0.0
        %356 = vmatpush1.msra.mxu0 0.0
        %357 = vmatprep.subr.mxu0 0.0
        %358 = vmatpush1.msra.mxu0 0.0
        %359 = vmatprep.subr.mxu0 0.0
        %360 = vmatpush1.msra.mxu0 0.0
        %361 = vmatprep.subr.mxu0 0.0
        %362 = vmatpush1.msra.mxu0 0.0
        %363 = vmatprep.subr.mxu0 0.0
        %364 = vmatpush1.msra.mxu0 0.0
        %365 = vmatprep.subr.mxu0 0.0
        %366 = vmatpush1.msra.mxu0 0.0
        %367 = vmatprep.subr.mxu0 0.0
        %368 = vmatpush1.msra.mxu0 0.0
        %369 = vmatprep.subr.mxu0 0.0
        %370 = vmatpush1.msra.mxu0 0.0
        %371 = vmatprep.subr.mxu0 0.0
        %372 = vmatpush1.msra.mxu0 0.0
        %373 = vmatprep.subr.mxu0 0.0
        %374 = vmatpush1.msra.mxu0 0.0
        %375 = vmatprep.subr.mxu0 0.0
        %376 = vmatpush1.msra.mxu0 0.0
        %377 = vmatprep.subr.mxu0 0.0
        %378 = vmatpush1.msra.mxu0 0.0
        %379 = vmatprep.subr.mxu0 0.0
        %380 = vmatpush1.msra.mxu0 0.0
        %381 = vmatprep.subr.mxu0 0.0
        %382 = vmatpush1.msra.mxu0 0.0
        %383 = vmatprep.subr.mxu0 0.0
        %384 = vmatpush1.msra.mxu0 0.0
        %385 = vmatprep.subr.mxu0 0.0
        %386 = vmatpush1.msra.mxu0 0.0
        %387 = vmatprep.subr.mxu0 0.0
        %388 = vmatpush1.msra.mxu0 0.0
        %389 = vmatprep.subr.mxu0 0.0
        %390 = vmatpush1.msra.mxu0 0.0
        %391 = vmatprep.mubr.f32.mxu0 0.0
        %392 = vmatmul.mubr.f32.gmra.mrb[0].mxu0 %v316
        %v393 = vpop.f32.mrb[0].mxu0
        %v394 = vadd.f32 %v312, %v393
        %v395 = vpop.f32.mrb[0].mxu0
        %396 = vmatprep.mubr.f32.mxu0 0.0
        %397 = vmatmul.mubr.f32.gmra.mrb[0].mxu0 %v319
        %v398 = vpop.f32.mrb[0].mxu0
        %v399 = vadd.f32 %v312, %v398
        %v400 = vpop.f32.mrb[0].mxu0
        %401 = vmatprep.mubr.f32.mxu0 0.0
        %402 = vmatmul.mubr.f32.gmra.mrb[0].mxu0 %v322
        %v403 = vpop.f32.mrb[0].mxu0
        %v404 = vadd.f32 %v312, %v403
        %v405 = vpop.f32.mrb[0].mxu0
        %406 = vmatprep.mubr.f32.mxu0 0.0
        %407 = vmatmul.mubr.f32.gmra.mrb[0].mxu0 %v325
        %v408 = vpop.f32.mrb[0].mxu0
        %v409 = vadd.f32 %v312, %v408
        %v410 = vpop.f32.mrb[0].mxu0
        %411 = vdwg.mxu0
        %v412 = vld [vmem:[#allocation8] sm:$0xff]
        %v413 = vld [vmem:[#allocation8 + $0x8] sm:$0xff]
        %v414 = vld [vmem:[#allocation8 + $0x10] sm:$0xff]
        %v415 = vld [vmem:[#allocation8 + $0x18] sm:$0xff]
        %v416 = vld [vmem:[#allocation10] sm:$0x1]
        %v418 = vlaneseq
        %v419 = vshrl.u32 %v418, 7
        %v420 = vsub.s32 0, %v419
        %v421 = vrot.slane %v416, %v420
        %v423 = vadd.f32 %v421, 0.0
        %425 = vrot.lane.b32.xlu0 %v394, 96
        %v426 = vpop.permute.xlu0 %425
        %vm427 = vcmask 64512
        %v428 = vsel %vm427, %v394, 0
        %v430 = vsel %vm427, %v426, 0
        %432 = vmatprep.subr.mxu0 0.0
        %433 = vmatpush1.xpose.msra.mxu0 %v430
        %434 = vmatprep.subr.mxu0 0.0
        %435 = vmatpush1.xpose.msra.mxu0 0.0
        %436 = vmatprep.subr.mxu0 0.0
        %437 = vmatpush1.xpose.msra.mxu0 0.0
        %438 = vmatprep.subr.mxu0 0.0
        %439 = vmatpush1.xpose.msra.mxu0 0.0
        %440 = vmatprep.subr.mxu0 0.0
        %441 = vmatpush1.xpose.msra.mxu0 0.0
        %442 = vmatprep.subr.mxu0 0.0
        %443 = vmatpush1.xpose.msra.mxu0 0.0
        %444 = vmatprep.subr.mxu0 0.0
        %445 = vmatpush1.xpose.msra.mxu0 0.0
        %446 = vmatprep.subr.mxu0 0.0
        %447 = vmatpush1.xpose.msra.mxu0 0.0
        %448 = vmatprep.subr.mxu0 0.0
        %449 = vmatpush1.xpose.msra.mxu0 0.0
        %450 = vmatprep.subr.mxu0 0.0
        %451 = vmatpush1.xpose.msra.mxu0 0.0
        %452 = vmatprep.subr.mxu0 0.0
        %453 = vmatpush1.xpose.msra.mxu0 0.0
        %454 = vmatprep.subr.mxu0 0.0
        %455 = vmatpush1.xpose.msra.mxu0 0.0
        %456 = vmatprep.subr.mxu0 0.0
        %457 = vmatpush1.xpose.msra.mxu0 0.0
        %458 = vmatprep.subr.mxu0 0.0
        %459 = vmatpush1.xpose.msra.mxu0 0.0
        %460 = vmatprep.subr.mxu0 0.0
        %461 = vmatpush1.xpose.msra.mxu0 0.0
        %462 = vmatprep.subr.mxu0 0.0
        %463 = vmatpush1.xpose.msra.mxu0 0.0
        %464 = vmatprep.subr.mxu0 0.0
        %465 = vmatpush1.xpose.msra.mxu0 0.0
        %466 = vmatprep.subr.mxu0 0.0
        %467 = vmatpush1.xpose.msra.mxu0 0.0
        %468 = vmatprep.subr.mxu0 0.0
        %469 = vmatpush1.xpose.msra.mxu0 0.0
        %470 = vmatprep.subr.mxu0 0.0
        %471 = vmatpush1.xpose.msra.mxu0 0.0
        %472 = vmatprep.subr.mxu0 0.0
        %473 = vmatpush1.xpose.msra.mxu0 0.0
        %474 = vmatprep.subr.mxu0 0.0
        %475 = vmatpush1.xpose.msra.mxu0 0.0
        %476 = vmatprep.subr.mxu0 0.0
        %477 = vmatpush1.xpose.msra.mxu0 0.0
        %478 = vmatprep.subr.mxu0 0.0
        %479 = vmatpush1.xpose.msra.mxu0 0.0
        %480 = vmatprep.subr.mxu0 0.0
        %481 = vmatpush1.xpose.msra.mxu0 0.0
        %482 = vmatprep.subr.mxu0 0.0
        %483 = vmatpush1.xpose.msra.mxu0 0.0
        %484 = vmatprep.subr.mxu0 0.0
        %485 = vmatpush1.xpose.msra.mxu0 0.0
        %486 = vmatprep.subr.mxu0 0.0
        %487 = vmatpush1.xpose.msra.mxu0 0.0
        %488 = vmatprep.subr.mxu0 0.0
        %489 = vmatpush1.xpose.msra.mxu0 0.0
        %490 = vmatprep.subr.mxu0 0.0
        %491 = vmatpush1.xpose.msra.mxu0 0.0
        %492 = vmatprep.subr.mxu0 0.0
        %493 = vmatpush1.xpose.msra.mxu0 0.0
        %494 = vmatprep.subr.mxu0 0.0
        %495 = vmatpush1.xpose.msra.mxu0 0.0
        %496 = vmatprep.mubr.f32.mxu0 0.0
        %497 = vmatmul.mubr.f32.gmra.mrb[0].mxu0 %v428
        %v498 = vpop.f32.mrb[0].mxu0
        %v499 = vadd.f32 0.0, %v498
        %v500 = vpop.f32.mrb[0].mxu0
        %501 = vdwg.mxu0
        %503 = vrot.lane.b32.xlu0 %v399, 96
        %v504 = vpop.permute.xlu0 %503
        %v505 = vsel %vm427, %v399, 0
        %v507 = vsel %vm427, %v504, 0
        %509 = vmatprep.subr.mxu0 0.0
        %510 = vmatpush1.xpose.msra.mxu0 %v507
        %511 = vmatprep.subr.mxu0 0.0
        %512 = vmatpush1.xpose.msra.mxu0 0.0
        %513 = vmatprep.subr.mxu0 0.0
        %514 = vmatpush1.xpose.msra.mxu0 0.0
        %515 = vmatprep.subr.mxu0 0.0
        %516 = vmatpush1.xpose.msra.mxu0 0.0
        %517 = vmatprep.subr.mxu0 0.0
        %518 = vmatpush1.xpose.msra.mxu0 0.0
        %519 = vmatprep.subr.mxu0 0.0
        %520 = vmatpush1.xpose.msra.mxu0 0.0
        %521 = vmatprep.subr.mxu0 0.0
        %522 = vmatpush1.xpose.msra.mxu0 0.0
        %523 = vmatprep.subr.mxu0 0.0
        %524 = vmatpush1.xpose.msra.mxu0 0.0
        %525 = vmatprep.subr.mxu0 0.0
        %526 = vmatpush1.xpose.msra.mxu0 0.0
        %527 = vmatprep.subr.mxu0 0.0
        %528 = vmatpush1.xpose.msra.mxu0 0.0
        %529 = vmatprep.subr.mxu0 0.0
        %530 = vmatpush1.xpose.msra.mxu0 0.0
        %531 = vmatprep.subr.mxu0 0.0
        %532 = vmatpush1.xpose.msra.mxu0 0.0
        %533 = vmatprep.subr.mxu0 0.0
        %534 = vmatpush1.xpose.msra.mxu0 0.0
        %535 = vmatprep.subr.mxu0 0.0
        %536 = vmatpush1.xpose.msra.mxu0 0.0
        %537 = vmatprep.subr.mxu0 0.0
        %538 = vmatpush1.xpose.msra.mxu0 0.0
        %539 = vmatprep.subr.mxu0 0.0
        %540 = vmatpush1.xpose.msra.mxu0 0.0
        %541 = vmatprep.subr.mxu0 0.0
        %542 = vmatpush1.xpose.msra.mxu0 0.0
        %543 = vmatprep.subr.mxu0 0.0
        %544 = vmatpush1.xpose.msra.mxu0 0.0
        %545 = vmatprep.subr.mxu0 0.0
        %546 = vmatpush1.xpose.msra.mxu0 0.0
        %547 = vmatprep.subr.mxu0 0.0
        %548 = vmatpush1.xpose.msra.mxu0 0.0
        %549 = vmatprep.subr.mxu0 0.0
        %550 = vmatpush1.xpose.msra.mxu0 0.0
        %551 = vmatprep.subr.mxu0 0.0
        %552 = vmatpush1.xpose.msra.mxu0 0.0
        %553 = vmatprep.subr.mxu0 0.0
        %554 = vmatpush1.xpose.msra.mxu0 0.0
        %555 = vmatprep.subr.mxu0 0.0
        %556 = vmatpush1.xpose.msra.mxu0 0.0
        %557 = vmatprep.subr.mxu0 0.0
        %558 = vmatpush1.xpose.msra.mxu0 0.0
        %559 = vmatprep.subr.mxu0 0.0
        %560 = vmatpush1.xpose.msra.mxu0 0.0
        %561 = vmatprep.subr.mxu0 0.0
        %562 = vmatpush1.xpose.msra.mxu0 0.0
        %563 = vmatprep.subr.mxu0 0.0
        %564 = vmatpush1.xpose.msra.mxu0 0.0
        %565 = vmatprep.subr.mxu0 0.0
        %566 = vmatpush1.xpose.msra.mxu0 0.0
        %567 = vmatprep.subr.mxu0 0.0
        %568 = vmatpush1.xpose.msra.mxu0 0.0
        %569 = vmatprep.subr.mxu0 0.0
        %570 = vmatpush1.xpose.msra.mxu0 0.0
        %571 = vmatprep.subr.mxu0 0.0
        %572 = vmatpush1.xpose.msra.mxu0 0.0
        %573 = vmatprep.mubr.f32.mxu0 0.0
        %574 = vmatmul.mubr.f32.gmra.mrb[0].mxu0 %v505
        %v575 = vpop.f32.mrb[0].mxu0
        %v576 = vadd.f32 0.0, %v575
        %v577 = vpop.f32.mrb[0].mxu0
        %578 = vdwg.mxu0
        %580 = vrot.lane.b32.xlu0 %v404, 96
        %v581 = vpop.permute.xlu0 %580
        %v582 = vsel %vm427, %v404, 0
        %v584 = vsel %vm427, %v581, 0
        %586 = vmatprep.subr.mxu0 0.0
        %587 = vmatpush1.xpose.msra.mxu0 %v584
        %588 = vmatprep.subr.mxu0 0.0
        %589 = vmatpush1.xpose.msra.mxu0 0.0
        %590 = vmatprep.subr.mxu0 0.0
        %591 = vmatpush1.xpose.msra.mxu0 0.0
        %592 = vmatprep.subr.mxu0 0.0
        %593 = vmatpush1.xpose.msra.mxu0 0.0
        %594 = vmatprep.subr.mxu0 0.0
        %595 = vmatpush1.xpose.msra.mxu0 0.0
        %596 = vmatprep.subr.mxu0 0.0
        %597 = vmatpush1.xpose.msra.mxu0 0.0
        %598 = vmatprep.subr.mxu0 0.0
        %599 = vmatpush1.xpose.msra.mxu0 0.0
        %600 = vmatprep.subr.mxu0 0.0
        %601 = vmatpush1.xpose.msra.mxu0 0.0
        %602 = vmatprep.subr.mxu0 0.0
        %603 = vmatpush1.xpose.msra.mxu0 0.0
        %604 = vmatprep.subr.mxu0 0.0
        %605 = vmatpush1.xpose.msra.mxu0 0.0
        %606 = vmatprep.subr.mxu0 0.0
        %607 = vmatpush1.xpose.msra.mxu0 0.0
        %608 = vmatprep.subr.mxu0 0.0
        %609 = vmatpush1.xpose.msra.mxu0 0.0
        %610 = vmatprep.subr.mxu0 0.0
        %611 = vmatpush1.xpose.msra.mxu0 0.0
        %612 = vmatprep.subr.mxu0 0.0
        %613 = vmatpush1.xpose.msra.mxu0 0.0
        %614 = vmatprep.subr.mxu0 0.0
        %615 = vmatpush1.xpose.msra.mxu0 0.0
        %616 = vmatprep.subr.mxu0 0.0
        %617 = vmatpush1.xpose.msra.mxu0 0.0
        %618 = vmatprep.subr.mxu0 0.0
        %619 = vmatpush1.xpose.msra.mxu0 0.0
        %620 = vmatprep.subr.mxu0 0.0
        %621 = vmatpush1.xpose.msra.mxu0 0.0
        %622 = vmatprep.subr.mxu0 0.0
        %623 = vmatpush1.xpose.msra.mxu0 0.0
        %624 = vmatprep.subr.mxu0 0.0
        %625 = vmatpush1.xpose.msra.mxu0 0.0
        %626 = vmatprep.subr.mxu0 0.0
        %627 = vmatpush1.xpose.msra.mxu0 0.0
        %628 = vmatprep.subr.mxu0 0.0
        %629 = vmatpush1.xpose.msra.mxu0 0.0
        %630 = vmatprep.subr.mxu0 0.0
        %631 = vmatpush1.xpose.msra.mxu0 0.0
        %632 = vmatprep.subr.mxu0 0.0
        %633 = vmatpush1.xpose.msra.mxu0 0.0
        %634 = vmatprep.subr.mxu0 0.0
        %635 = vmatpush1.xpose.msra.mxu0 0.0
        %636 = vmatprep.subr.mxu0 0.0
        %637 = vmatpush1.xpose.msra.mxu0 0.0
        %638 = vmatprep.subr.mxu0 0.0
        %639 = vmatpush1.xpose.msra.mxu0 0.0
        %640 = vmatprep.subr.mxu0 0.0
        %641 = vmatpush1.xpose.msra.mxu0 0.0
        %642 = vmatprep.subr.mxu0 0.0
        %643 = vmatpush1.xpose.msra.mxu0 0.0
        %644 = vmatprep.subr.mxu0 0.0
        %645 = vmatpush1.xpose.msra.mxu0 0.0
        %646 = vmatprep.subr.mxu0 0.0
        %647 = vmatpush1.xpose.msra.mxu0 0.0
        %648 = vmatprep.subr.mxu0 0.0
        %649 = vmatpush1.xpose.msra.mxu0 0.0
        %650 = vmatprep.mubr.f32.mxu0 0.0
        %651 = vmatmul.mubr.f32.gmra.mrb[0].mxu0 %v582
        %v652 = vpop.f32.mrb[0].mxu0
        %v653 = vadd.f32 0.0, %v652
        %v654 = vpop.f32.mrb[0].mxu0
        %655 = vdwg.mxu0
        %657 = vrot.lane.b32.xlu0 %v409, 96
        %v658 = vpop.permute.xlu0 %657
        %v659 = vsel %vm427, %v409, 0
        %v661 = vsel %vm427, %v658, 0
        %663 = vmatprep.subr.mxu0 0.0
        %664 = vmatpush1.xpose.msra.mxu0 %v661
        %665 = vmatprep.subr.mxu0 0.0
        %666 = vmatpush1.xpose.msra.mxu0 0.0
        %667 = vmatprep.subr.mxu0 0.0
        %668 = vmatpush1.xpose.msra.mxu0 0.0
        %669 = vmatprep.subr.mxu0 0.0
        %670 = vmatpush1.xpose.msra.mxu0 0.0
        %671 = vmatprep.subr.mxu0 0.0
        %672 = vmatpush1.xpose.msra.mxu0 0.0
        %673 = vmatprep.subr.mxu0 0.0
        %674 = vmatpush1.xpose.msra.mxu0 0.0
        %675 = vmatprep.subr.mxu0 0.0
        %676 = vmatpush1.xpose.msra.mxu0 0.0
        %677 = vmatprep.subr.mxu0 0.0
        %678 = vmatpush1.xpose.msra.mxu0 0.0
        %679 = vmatprep.subr.mxu0 0.0
        %680 = vmatpush1.xpose.msra.mxu0 0.0
        %681 = vmatprep.subr.mxu0 0.0
        %682 = vmatpush1.xpose.msra.mxu0 0.0
        %683 = vmatprep.subr.mxu0 0.0
        %684 = vmatpush1.xpose.msra.mxu0 0.0
        %685 = vmatprep.subr.mxu0 0.0
        %686 = vmatpush1.xpose.msra.mxu0 0.0
        %687 = vmatprep.subr.mxu0 0.0
        %688 = vmatpush1.xpose.msra.mxu0 0.0
        %689 = vmatprep.subr.mxu0 0.0
        %690 = vmatpush1.xpose.msra.mxu0 0.0
        %691 = vmatprep.subr.mxu0 0.0
        %692 = vmatpush1.xpose.msra.mxu0 0.0
        %693 = vmatprep.subr.mxu0 0.0
        %694 = vmatpush1.xpose.msra.mxu0 0.0
        %695 = vmatprep.subr.mxu0 0.0
        %696 = vmatpush1.xpose.msra.mxu0 0.0
        %697 = vmatprep.subr.mxu0 0.0
        %698 = vmatpush1.xpose.msra.mxu0 0.0
        %699 = vmatprep.subr.mxu0 0.0
        %700 = vmatpush1.xpose.msra.mxu0 0.0
        %701 = vmatprep.subr.mxu0 0.0
        %702 = vmatpush1.xpose.msra.mxu0 0.0
        %703 = vmatprep.subr.mxu0 0.0
        %704 = vmatpush1.xpose.msra.mxu0 0.0
        %705 = vmatprep.subr.mxu0 0.0
        %706 = vmatpush1.xpose.msra.mxu0 0.0
        %707 = vmatprep.subr.mxu0 0.0
        %708 = vmatpush1.xpose.msra.mxu0 0.0
        %709 = vmatprep.subr.mxu0 0.0
        %710 = vmatpush1.xpose.msra.mxu0 0.0
        %711 = vmatprep.subr.mxu0 0.0
        %712 = vmatpush1.xpose.msra.mxu0 0.0
        %713 = vmatprep.subr.mxu0 0.0
        %714 = vmatpush1.xpose.msra.mxu0 0.0
        %715 = vmatprep.subr.mxu0 0.0
        %716 = vmatpush1.xpose.msra.mxu0 0.0
        %717 = vmatprep.subr.mxu0 0.0
        %718 = vmatpush1.xpose.msra.mxu0 0.0
        %719 = vmatprep.subr.mxu0 0.0
        %720 = vmatpush1.xpose.msra.mxu0 0.0
        %721 = vmatprep.subr.mxu0 0.0
        %722 = vmatpush1.xpose.msra.mxu0 0.0
        %723 = vmatprep.subr.mxu0 0.0
        %724 = vmatpush1.xpose.msra.mxu0 0.0
        %725 = vmatprep.subr.mxu0 0.0
        %726 = vmatpush1.xpose.msra.mxu0 0.0
        %727 = vmatprep.mubr.f32.mxu0 0.0
        %728 = vmatmul.mubr.f32.gmra.mrb[0].mxu0 %v659
        %v729 = vpop.f32.mrb[0].mxu0
        %v730 = vadd.f32 0.0, %v729
        %v731 = vpop.f32.mrb[0].mxu0
        %732 = vdwg.mxu0
        %v733 = vsel %vm427, %v499, -inf
        %734 = vmax.xlane.f32.xlu0 %v733
        %v735 = vpop.xlane.xlu0 %734
        %v736 = vsel %vm427, %v576, -inf
        %737 = vmax.xlane.f32.xlu0 %v736
        %v738 = vpop.xlane.xlu0 %737
        %v739 = vsel %vm427, %v653, -inf
        %740 = vmax.xlane.f32.xlu0 %v739
        %v741 = vpop.xlane.xlu0 %740
        %v742 = vsel %vm427, %v730, -inf
        %743 = vmax.xlane.f32.xlu0 %v742
        %v744 = vpop.xlane.xlu0 %743
        %v745 = vsub.f32 %v499, %v735
        %v746 = vsub.f32 %v576, %v738
        %v747 = vsub.f32 %v653, %v741
        %v748 = vsub.f32 %v730, %v744
        %v749 = vmul.f32 %v745, 1.442695
        %v750 = vpow.pop %v749
        %v751 = vmul.f32 %v746, 1.442695
        %v752 = vpow.pop %v751
        %v753 = vmul.f32 %v747, 1.442695
        %v754 = vpow.pop %v753
        %v755 = vmul.f32 %v748, 1.442695
        %v756 = vpow.pop %v755
        %v757 = vsel %vm427, %v750, 0.0
        %758 = vadd.xlane.f32.xlu0 %v757
        %v759 = vpop.xlane.xlu0 %758
        %v760 = vsel %vm427, %v752, 0.0
        %761 = vadd.xlane.f32.xlu0 %v760
        %v762 = vpop.xlane.xlu0 %761
        %v763 = vsel %vm427, %v754, 0.0
        %764 = vadd.xlane.f32.xlu0 %v763
        %v765 = vpop.xlane.xlu0 %764
        %v766 = vsel %vm427, %v756, 0.0
        %767 = vadd.xlane.f32.xlu0 %v766
        %v768 = vpop.xlane.xlu0 %767
        %v769 = vrcp.pop %v759
        %v770 = vrcp.pop %v762
        %v771 = vrcp.pop %v765
        %v772 = vrcp.pop %v768
        %v773 = vmul.f32 %v750, %v769
        %v774 = vmul.f32 %v752, %v770
        %v775 = vmul.f32 %v754, %v771
        %v776 = vmul.f32 %v756, %v772
        %777 = vrot.lane.b32.xlu0 %v394, 64
        %v778 = vpop.permute.xlu0 %777
        %v781 = vsel %vm427, %v773, 0
        %783 = vmatprep.subr.mxu0 0.0
        %784 = vmatpush1.msra.mxu0 %v778
        %785 = vmatprep.subr.mxu0 0.0
        %786 = vmatpush1.msra.mxu0 0.0
        %787 = vmatprep.subr.mxu0 0.0
        %788 = vmatpush1.msra.mxu0 0.0
        %789 = vmatprep.subr.mxu0 0.0
        %790 = vmatpush1.msra.mxu0 0.0
        %791 = vmatprep.subr.mxu0 0.0
        %792 = vmatpush1.msra.mxu0 0.0
        %793 = vmatprep.subr.mxu0 0.0
        %794 = vmatpush1.msra.mxu0 0.0
        %795 = vmatprep.subr.mxu0 0.0
        %796 = vmatpush1.msra.mxu0 0.0
        %797 = vmatprep.subr.mxu0 0.0
        %798 = vmatpush1.msra.mxu0 0.0
        %799 = vmatprep.subr.mxu0 0.0
        %800 = vmatpush1.msra.mxu0 0.0
        %801 = vmatprep.subr.mxu0 0.0
        %802 = vmatpush1.msra.mxu0 0.0
        %803 = vmatprep.subr.mxu0 0.0
        %804 = vmatpush1.msra.mxu0 0.0
        %805 = vmatprep.subr.mxu0 0.0
        %806 = vmatpush1.msra.mxu0 0.0
        %807 = vmatprep.subr.mxu0 0.0
        %808 = vmatpush1.msra.mxu0 0.0
        %809 = vmatprep.subr.mxu0 0.0
        %810 = vmatpush1.msra.mxu0 0.0
        %811 = vmatprep.subr.mxu0 0.0
        %812 = vmatpush1.msra.mxu0 0.0
        %813 = vmatprep.subr.mxu0 0.0
        %814 = vmatpush1.msra.mxu0 0.0
        %815 = vmatprep.subr.mxu0 0.0
        %816 = vmatpush1.msra.mxu0 0.0
        %817 = vmatprep.subr.mxu0 0.0
        %818 = vmatpush1.msra.mxu0 0.0
        %819 = vmatprep.subr.mxu0 0.0
        %820 = vmatpush1.msra.mxu0 0.0
        %821 = vmatprep.subr.mxu0 0.0
        %822 = vmatpush1.msra.mxu0 0.0
        %823 = vmatprep.subr.mxu0 0.0
        %824 = vmatpush1.msra.mxu0 0.0
        %825 = vmatprep.subr.mxu0 0.0
        %826 = vmatpush1.msra.mxu0 0.0
        %827 = vmatprep.subr.mxu0 0.0
        %828 = vmatpush1.msra.mxu0 0.0
        %829 = vmatprep.subr.mxu0 0.0
        %830 = vmatpush1.msra.mxu0 0.0
        %831 = vmatprep.subr.mxu0 0.0
        %832 = vmatpush1.msra.mxu0 0.0
        %833 = vmatprep.subr.mxu0 0.0
        %834 = vmatpush1.msra.mxu0 0.0
        %835 = vmatprep.subr.mxu0 0.0
        %836 = vmatpush1.msra.mxu0 0.0
        %837 = vmatprep.subr.mxu0 0.0
        %838 = vmatpush1.msra.mxu0 0.0
        %839 = vmatprep.subr.mxu0 0.0
        %840 = vmatpush1.msra.mxu0 0.0
        %841 = vmatprep.subr.mxu0 0.0
        %842 = vmatpush1.msra.mxu0 0.0
        %843 = vmatprep.subr.mxu0 0.0
        %844 = vmatpush1.msra.mxu0 0.0
        %845 = vmatprep.subr.mxu0 0.0
        %846 = vmatpush1.msra.mxu0 0.0
        %847 = vmatprep.mubr.f32.mxu0 0.0
        %848 = vmatmul.mubr.f32.gmra.mrb[0].mxu0 %v781
        %v849 = vpop.f32.mrb[0].mxu0
        %v850 = vadd.f32 0.0, %v849
        %v851 = vpop.f32.mrb[0].mxu0
        %852 = vdwg.mxu0
        %853 = vrot.lane.b32.xlu0 %v399, 64
        %v854 = vpop.permute.xlu0 %853
        %v857 = vsel %vm427, %v774, 0
        %859 = vmatprep.subr.mxu0 0.0
        %860 = vmatpush1.msra.mxu0 %v854
        %861 = vmatprep.subr.mxu0 0.0
        %862 = vmatpush1.msra.mxu0 0.0
        %863 = vmatprep.subr.mxu0 0.0
        %864 = vmatpush1.msra.mxu0 0.0
        %865 = vmatprep.subr.mxu0 0.0
        %866 = vmatpush1.msra.mxu0 0.0
        %867 = vmatprep.subr.mxu0 0.0
        %868 = vmatpush1.msra.mxu0 0.0
        %869 = vmatprep.subr.mxu0 0.0
        %870 = vmatpush1.msra.mxu0 0.0
        %871 = vmatprep.subr.mxu0 0.0
        %872 = vmatpush1.msra.mxu0 0.0
        %873 = vmatprep.subr.mxu0 0.0
        %874 = vmatpush1.msra.mxu0 0.0
        %875 = vmatprep.subr.mxu0 0.0
        %876 = vmatpush1.msra.mxu0 0.0
        %877 = vmatprep.subr.mxu0 0.0
        %878 = vmatpush1.msra.mxu0 0.0
        %879 = vmatprep.subr.mxu0 0.0
        %880 = vmatpush1.msra.mxu0 0.0
        %881 = vmatprep.subr.mxu0 0.0
        %882 = vmatpush1.msra.mxu0 0.0
        %883 = vmatprep.subr.mxu0 0.0
        %884 = vmatpush1.msra.mxu0 0.0
        %885 = vmatprep.subr.mxu0 0.0
        %886 = vmatpush1.msra.mxu0 0.0
        %887 = vmatprep.subr.mxu0 0.0
        %888 = vmatpush1.msra.mxu0 0.0
        %889 = vmatprep.subr.mxu0 0.0
        %890 = vmatpush1.msra.mxu0 0.0
        %891 = vmatprep.subr.mxu0 0.0
        %892 = vmatpush1.msra.mxu0 0.0
        %893 = vmatprep.subr.mxu0 0.0
        %894 = vmatpush1.msra.mxu0 0.0
        %895 = vmatprep.subr.mxu0 0.0
        %896 = vmatpush1.msra.mxu0 0.0
        %897 = vmatprep.subr.mxu0 0.0
        %898 = vmatpush1.msra.mxu0 0.0
        %899 = vmatprep.subr.mxu0 0.0
        %900 = vmatpush1.msra.mxu0 0.0
        %901 = vmatprep.subr.mxu0 0.0
        %902 = vmatpush1.msra.mxu0 0.0
        %903 = vmatprep.subr.mxu0 0.0
        %904 = vmatpush1.msra.mxu0 0.0
        %905 = vmatprep.subr.mxu0 0.0
        %906 = vmatpush1.msra.mxu0 0.0
        %907 = vmatprep.subr.mxu0 0.0
        %908 = vmatpush1.msra.mxu0 0.0
        %909 = vmatprep.subr.mxu0 0.0
        %910 = vmatpush1.msra.mxu0 0.0
        %911 = vmatprep.subr.mxu0 0.0
        %912 = vmatpush1.msra.mxu0 0.0
        %913 = vmatprep.subr.mxu0 0.0
        %914 = vmatpush1.msra.mxu0 0.0
        %915 = vmatprep.subr.mxu0 0.0
        %916 = vmatpush1.msra.mxu0 0.0
        %917 = vmatprep.subr.mxu0 0.0
        %918 = vmatpush1.msra.mxu0 0.0
        %919 = vmatprep.subr.mxu0 0.0
        %920 = vmatpush1.msra.mxu0 0.0
        %921 = vmatprep.subr.mxu0 0.0
        %922 = vmatpush1.msra.mxu0 0.0
        %923 = vmatprep.mubr.f32.mxu0 0.0
        %924 = vmatmul.mubr.f32.gmra.mrb[0].mxu0 %v857
        %v925 = vpop.f32.mrb[0].mxu0
        %v926 = vadd.f32 0.0, %v925
        %v927 = vpop.f32.mrb[0].mxu0
        %928 = vdwg.mxu0
        %929 = vrot.lane.b32.xlu0 %v404, 64
        %v930 = vpop.permute.xlu0 %929
        %v933 = vsel %vm427, %v775, 0
        %935 = vmatprep.subr.mxu0 0.0
        %936 = vmatpush1.msra.mxu0 %v930
        %937 = vmatprep.subr.mxu0 0.0
        %938 = vmatpush1.msra.mxu0 0.0
        %939 = vmatprep.subr.mxu0 0.0
        %940 = vmatpush1.msra.mxu0 0.0
        %941 = vmatprep.subr.mxu0 0.0
        %942 = vmatpush1.msra.mxu0 0.0
        %943 = vmatprep.subr.mxu0 0.0
        %944 = vmatpush1.msra.mxu0 0.0
        %945 = vmatprep.subr.mxu0 0.0
        %946 = vmatpush1.msra.mxu0 0.0
        %947 = vmatprep.subr.mxu0 0.0
        %948 = vmatpush1.msra.mxu0 0.0
        %949 = vmatprep.subr.mxu0 0.0
        %950 = vmatpush1.msra.mxu0 0.0
        %951 = vmatprep.subr.mxu0 0.0
        %952 = vmatpush1.msra.mxu0 0.0
        %953 = vmatprep.subr.mxu0 0.0
        %954 = vmatpush1.msra.mxu0 0.0
        %955 = vmatprep.subr.mxu0 0.0
        %956 = vmatpush1.msra.mxu0 0.0
        %957 = vmatprep.subr.mxu0 0.0
        %958 = vmatpush1.msra.mxu0 0.0
        %959 = vmatprep.subr.mxu0 0.0
        %960 = vmatpush1.msra.mxu0 0.0
        %961 = vmatprep.subr.mxu0 0.0
        %962 = vmatpush1.msra.mxu0 0.0
        %963 = vmatprep.subr.mxu0 0.0
        %964 = vmatpush1.msra.mxu0 0.0
        %965 = vmatprep.subr.mxu0 0.0
        %966 = vmatpush1.msra.mxu0 0.0
        %967 = vmatprep.subr.mxu0 0.0
        %968 = vmatpush1.msra.mxu0 0.0
        %969 = vmatprep.subr.mxu0 0.0
        %970 = vmatpush1.msra.mxu0 0.0
        %971 = vmatprep.subr.mxu0 0.0
        %972 = vmatpush1.msra.mxu0 0.0
        %973 = vmatprep.subr.mxu0 0.0
        %974 = vmatpush1.msra.mxu0 0.0
        %975 = vmatprep.subr.mxu0 0.0
        %976 = vmatpush1.msra.mxu0 0.0
        %977 = vmatprep.subr.mxu0 0.0
        %978 = vmatpush1.msra.mxu0 0.0
        %979 = vmatprep.subr.mxu0 0.0
        %980 = vmatpush1.msra.mxu0 0.0
        %981 = vmatprep.subr.mxu0 0.0
        %982 = vmatpush1.msra.mxu0 0.0
        %983 = vmatprep.subr.mxu0 0.0
        %984 = vmatpush1.msra.mxu0 0.0
        %985 = vmatprep.subr.mxu0 0.0
        %986 = vmatpush1.msra.mxu0 0.0
        %987 = vmatprep.subr.mxu0 0.0
        %988 = vmatpush1.msra.mxu0 0.0
        %989 = vmatprep.subr.mxu0 0.0
        %990 = vmatpush1.msra.mxu0 0.0
        %991 = vmatprep.subr.mxu0 0.0
        %992 = vmatpush1.msra.mxu0 0.0
        %993 = vmatprep.subr.mxu0 0.0
        %994 = vmatpush1.msra.mxu0 0.0
        %995 = vmatprep.subr.mxu0 0.0
        %996 = vmatpush1.msra.mxu0 0.0
        %997 = vmatprep.subr.mxu0 0.0
        %998 = vmatpush1.msra.mxu0 0.0
        %999 = vmatprep.mubr.f32.mxu0 0.0
        %1000 = vmatmul.mubr.f32.gmra.mrb[0].mxu0 %v933
        %v1001 = vpop.f32.mrb[0].mxu0
        %v1002 = vadd.f32 0.0, %v1001
        %v1003 = vpop.f32.mrb[0].mxu0
        %1004 = vdwg.mxu0
        %1005 = vrot.lane.b32.xlu0 %v409, 64
        %v1006 = vpop.permute.xlu0 %1005
        %v1009 = vsel %vm427, %v776, 0
        %1011 = vmatprep.subr.mxu0 0.0
        %1012 = vmatpush1.msra.mxu0 %v1006
        %1013 = vmatprep.subr.mxu0 0.0
        %1014 = vmatpush1.msra.mxu0 0.0
        %1015 = vmatprep.subr.mxu0 0.0
        %1016 = vmatpush1.msra.mxu0 0.0
        %1017 = vmatprep.subr.mxu0 0.0
        %1018 = vmatpush1.msra.mxu0 0.0
        %1019 = vmatprep.subr.mxu0 0.0
        %1020 = vmatpush1.msra.mxu0 0.0
        %1021 = vmatprep.subr.mxu0 0.0
        %1022 = vmatpush1.msra.mxu0 0.0
        %1023 = vmatprep.subr.mxu0 0.0
        %1024 = vmatpush1.msra.mxu0 0.0
        %1025 = vmatprep.subr.mxu0 0.0
        %1026 = vmatpush1.msra.mxu0 0.0
        %1027 = vmatprep.subr.mxu0 0.0
        %1028 = vmatpush1.msra.mxu0 0.0
        %1029 = vmatprep.subr.mxu0 0.0
        %1030 = vmatpush1.msra.mxu0 0.0
        %1031 = vmatprep.subr.mxu0 0.0
        %1032 = vmatpush1.msra.mxu0 0.0
        %1033 = vmatprep.subr.mxu0 0.0
        %1034 = vmatpush1.msra.mxu0 0.0
        %1035 = vmatprep.subr.mxu0 0.0
        %1036 = vmatpush1.msra.mxu0 0.0
        %1037 = vmatprep.subr.mxu0 0.0
        %1038 = vmatpush1.msra.mxu0 0.0
        %1039 = vmatprep.subr.mxu0 0.0
        %1040 = vmatpush1.msra.mxu0 0.0
        %1041 = vmatprep.subr.mxu0 0.0
        %1042 = vmatpush1.msra.mxu0 0.0
        %1043 = vmatprep.subr.mxu0 0.0
        %1044 = vmatpush1.msra.mxu0 0.0
        %1045 = vmatprep.subr.mxu0 0.0
        %1046 = vmatpush1.msra.mxu0 0.0
        %1047 = vmatprep.subr.mxu0 0.0
        %1048 = vmatpush1.msra.mxu0 0.0
        %1049 = vmatprep.subr.mxu0 0.0
        %1050 = vmatpush1.msra.mxu0 0.0
        %1051 = vmatprep.subr.mxu0 0.0
        %1052 = vmatpush1.msra.mxu0 0.0
        %1053 = vmatprep.subr.mxu0 0.0
        %1054 = vmatpush1.msra.mxu0 0.0
        %1055 = vmatprep.subr.mxu0 0.0
        %1056 = vmatpush1.msra.mxu0 0.0
        %1057 = vmatprep.subr.mxu0 0.0
        %1058 = vmatpush1.msra.mxu0 0.0
        %1059 = vmatprep.subr.mxu0 0.0
        %1060 = vmatpush1.msra.mxu0 0.0
        %1061 = vmatprep.subr.mxu0 0.0
        %1062 = vmatpush1.msra.mxu0 0.0
        %1063 = vmatprep.subr.mxu0 0.0
        %1064 = vmatpush1.msra.mxu0 0.0
        %1065 = vmatprep.subr.mxu0 0.0
        %1066 = vmatpush1.msra.mxu0 0.0
        %1067 = vmatprep.subr.mxu0 0.0
        %1068 = vmatpush1.msra.mxu0 0.0
        %1069 = vmatprep.subr.mxu0 0.0
        %1070 = vmatpush1.msra.mxu0 0.0
        %1071 = vmatprep.subr.mxu0 0.0
        %1072 = vmatpush1.msra.mxu0 0.0
        %1073 = vmatprep.subr.mxu0 0.0
        %1074 = vmatpush1.msra.mxu0 0.0
        %1075 = vmatprep.mubr.f32.mxu0 0.0
        %1076 = vmatmul.mubr.f32.gmra.mrb[0].mxu0 %v1009
        %v1077 = vpop.f32.mrb[0].mxu0
        %v1078 = vadd.f32 0.0, %v1077
        %v1079 = vpop.f32.mrb[0].mxu0
        %1080 = vdwg.mxu0
        %v1082 = vsel %vm427, %v850, 0
        %v1085 = vsel %vm427, %v926, 0
        %v1088 = vsel %vm427, %v1002, 0
        %v1091 = vsel %vm427, %v1078, 0
        %1093 = vmatprep.subr.mxu0 0.0
        %1094 = vmatpush1.msra.mxu0 %v412
        %1095 = vmatprep.subr.mxu0 0.0
        %1096 = vmatpush1.msra.mxu0 0.0
        %1097 = vmatprep.subr.mxu0 0.0
        %1098 = vmatpush1.msra.mxu0 0.0
        %1099 = vmatprep.subr.mxu0 0.0
        %1100 = vmatpush1.msra.mxu0 0.0
        %1101 = vmatprep.subr.mxu0 0.0
        %1102 = vmatpush1.msra.mxu0 0.0
        %1103 = vmatprep.subr.mxu0 0.0
        %1104 = vmatpush1.msra.mxu0 0.0
        %1105 = vmatprep.subr.mxu0 0.0
        %1106 = vmatpush1.msra.mxu0 0.0
        %1107 = vmatprep.subr.mxu0 0.0
        %1108 = vmatpush1.msra.mxu0 0.0
        %1109 = vmatprep.subr.mxu0 0.0
        %1110 = vmatpush1.msra.mxu0 0.0
        %1111 = vmatprep.subr.mxu0 0.0
        %1112 = vmatpush1.msra.mxu0 0.0
        %1113 = vmatprep.subr.mxu0 0.0
        %1114 = vmatpush1.msra.mxu0 0.0
        %1115 = vmatprep.subr.mxu0 0.0
        %1116 = vmatpush1.msra.mxu0 0.0
        %1117 = vmatprep.subr.mxu0 0.0
        %1118 = vmatpush1.msra.mxu0 0.0
        %1119 = vmatprep.subr.mxu0 0.0
        %1120 = vmatpush1.msra.mxu0 0.0
        %1121 = vmatprep.subr.mxu0 0.0
        %1122 = vmatpush1.msra.mxu0 0.0
        %1123 = vmatprep.subr.mxu0 0.0
        %1124 = vmatpush1.msra.mxu0 0.0
        %1125 = vmatprep.subr.mxu0 0.0
        %1126 = vmatpush1.msra.mxu0 0.0
        %1127 = vmatprep.subr.mxu0 0.0
        %1128 = vmatpush1.msra.mxu0 0.0
        %1129 = vmatprep.subr.mxu0 0.0
        %1130 = vmatpush1.msra.mxu0 0.0
        %1131 = vmatprep.subr.mxu0 0.0
        %1132 = vmatpush1.msra.mxu0 0.0
        %1133 = vmatprep.subr.mxu0 0.0
        %1134 = vmatpush1.msra.mxu0 0.0
        %1135 = vmatprep.subr.mxu0 0.0
        %1136 = vmatpush1.msra.mxu0 0.0
        %1137 = vmatprep.subr.mxu0 0.0
        %1138 = vmatpush1.msra.mxu0 0.0
        %1139 = vmatprep.subr.mxu0 0.0
        %1140 = vmatpush1.msra.mxu0 0.0
        %1141 = vmatprep.subr.mxu0 0.0
        %1142 = vmatpush1.msra.mxu0 0.0
        %1143 = vmatprep.subr.mxu0 0.0
        %1144 = vmatpush1.msra.mxu0 0.0
        %1145 = vmatprep.subr.mxu0 0.0
        %1146 = vmatpush1.msra.mxu0 0.0
        %1147 = vmatprep.subr.mxu0 0.0
        %1148 = vmatpush1.msra.mxu0 0.0
        %1149 = vmatprep.subr.mxu0 0.0
        %1150 = vmatpush1.msra.mxu0 0.0
        %1151 = vmatprep.subr.mxu0 0.0
        %1152 = vmatpush1.msra.mxu0 0.0
        %1153 = vmatprep.subr.mxu0 0.0
        %1154 = vmatpush1.msra.mxu0 0.0
        %1155 = vmatprep.subr.mxu0 0.0
        %1156 = vmatpush1.msra.mxu0 0.0
        %1157 = vmatprep.mubr.f32.mxu0 0.0
        %1158 = vmatmul.mubr.f32.gmra.mrb[0].mxu0 %v1082
        %v1159 = vpop.f32.mrb[0].mxu0
        %v1160 = vadd.f32 0.0, %v1159
        %v1161 = vpop.f32.mrb[0].mxu0
        %1162 = vmatprep.mubr.f32.mxu0 0.0
        %1163 = vmatmul.mubr.f32.gmra.mrb[0].mxu0 %v1085
        %v1164 = vpop.f32.mrb[0].mxu0
        %v1165 = vadd.f32 0.0, %v1164
        %v1166 = vpop.f32.mrb[0].mxu0
        %1167 = vmatprep.mubr.f32.mxu0 0.0
        %1168 = vmatmul.mubr.f32.gmra.mrb[0].mxu0 %v1088
        %v1169 = vpop.f32.mrb[0].mxu0
        %v1170 = vadd.f32 0.0, %v1169
        %v1171 = vpop.f32.mrb[0].mxu0
        %1172 = vmatprep.mubr.f32.mxu0 0.0
        %1173 = vmatmul.mubr.f32.gmra.mrb[0].mxu0 %v1091
        %v1174 = vpop.f32.mrb[0].mxu0
        %v1175 = vadd.f32 0.0, %v1174
        %v1176 = vpop.f32.mrb[0].mxu0
        %1177 = vdwg.mxu0
        %v1178 = vadd.f32 %v423, %v1160
        %v1179 = vadd.f32 %v423, %v1165
        %v1180 = vadd.f32 %v423, %v1170
        %v1181 = vadd.f32 %v423, %v1175
        %1182 = vrot.lane.b32.xlu0 %v394, 120
        %v1183 = vpop.permute.xlu0 %1182
        %1184 = vrot.lane.b32.xlu0 %v394, 88
        %v1185 = vpop.permute.xlu0 %1184
        %v1186 = vsel %vm427, %v1183, 0
        %v1188 = vsel %vm427, %v1185, 0
        %1190 = vmatprep.subr.mxu0 0.0
        %1191 = vmatpush1.xpose.msra.mxu0 %v1188
        %1192 = vmatprep.subr.mxu0 0.0
        %1193 = vmatpush1.xpose.msra.mxu0 0.0
        %1194 = vmatprep.subr.mxu0 0.0
        %1195 = vmatpush1.xpose.msra.mxu0 0.0
        %1196 = vmatprep.subr.mxu0 0.0
        %1197 = vmatpush1.xpose.msra.mxu0 0.0
        %1198 = vmatprep.subr.mxu0 0.0
        %1199 = vmatpush1.xpose.msra.mxu0 0.0
        %1200 = vmatprep.subr.mxu0 0.0
        %1201 = vmatpush1.xpose.msra.mxu0 0.0
        %1202 = vmatprep.subr.mxu0 0.0
        %1203 = vmatpush1.xpose.msra.mxu0 0.0
        %1204 = vmatprep.subr.mxu0 0.0
        %1205 = vmatpush1.xpose.msra.mxu0 0.0
        %1206 = vmatprep.subr.mxu0 0.0
        %1207 = vmatpush1.xpose.msra.mxu0 0.0
        %1208 = vmatprep.subr.mxu0 0.0
        %1209 = vmatpush1.xpose.msra.mxu0 0.0
        %1210 = vmatprep.subr.mxu0 0.0
        %1211 = vmatpush1.xpose.msra.mxu0 0.0
        %1212 = vmatprep.subr.mxu0 0.0
        %1213 = vmatpush1.xpose.msra.mxu0 0.0
        %1214 = vmatprep.subr.mxu0 0.0
        %1215 = vmatpush1.xpose.msra.mxu0 0.0
        %1216 = vmatprep.subr.mxu0 0.0
        %1217 = vmatpush1.xpose.msra.mxu0 0.0
        %1218 = vmatprep.subr.mxu0 0.0
        %1219 = vmatpush1.xpose.msra.mxu0 0.0
        %1220 = vmatprep.subr.mxu0 0.0
        %1221 = vmatpush1.xpose.msra.mxu0 0.0
        %1222 = vmatprep.subr.mxu0 0.0
        %1223 = vmatpush1.xpose.msra.mxu0 0.0
        %1224 = vmatprep.subr.mxu0 0.0
        %1225 = vmatpush1.xpose.msra.mxu0 0.0
        %1226 = vmatprep.subr.mxu0 0.0
        %1227 = vmatpush1.xpose.msra.mxu0 0.0
        %1228 = vmatprep.subr.mxu0 0.0
        %1229 = vmatpush1.xpose.msra.mxu0 0.0
        %1230 = vmatprep.subr.mxu0 0.0
        %1231 = vmatpush1.xpose.msra.mxu0 0.0
        %1232 = vmatprep.subr.mxu0 0.0
        %1233 = vmatpush1.xpose.msra.mxu0 0.0
        %1234 = vmatprep.subr.mxu0 0.0
        %1235 = vmatpush1.xpose.msra.mxu0 0.0
        %1236 = vmatprep.subr.mxu0 0.0
        %1237 = vmatpush1.xpose.msra.mxu0 0.0
        %1238 = vmatprep.subr.mxu0 0.0
        %1239 = vmatpush1.xpose.msra.mxu0 0.0
        %1240 = vmatprep.subr.mxu0 0.0
        %1241 = vmatpush1.xpose.msra.mxu0 0.0
        %1242 = vmatprep.subr.mxu0 0.0
        %1243 = vmatpush1.xpose.msra.mxu0 0.0
        %1244 = vmatprep.subr.mxu0 0.0
        %1245 = vmatpush1.xpose.msra.mxu0 0.0
        %1246 = vmatprep.subr.mxu0 0.0
        %1247 = vmatpush1.xpose.msra.mxu0 0.0
        %1248 = vmatprep.subr.mxu0 0.0
        %1249 = vmatpush1.xpose.msra.mxu0 0.0
        %1250 = vmatprep.subr.mxu0 0.0
        %1251 = vmatpush1.xpose.msra.mxu0 0.0
        %1252 = vmatprep.subr.mxu0 0.0
        %1253 = vmatpush1.xpose.msra.mxu0 0.0
        %1254 = vmatprep.mubr.f32.mxu0 0.0
        %1255 = vmatmul.mubr.f32.gmra.mrb[0].mxu0 %v1186
        %v1256 = vpop.f32.mrb[0].mxu0
        %v1257 = vadd.f32 0.0, %v1256
        %v1258 = vpop.f32.mrb[0].mxu0
        %1259 = vdwg.mxu0
        %1260 = vrot.lane.b32.xlu0 %v399, 120
        %v1261 = vpop.permute.xlu0 %1260
        %1262 = vrot.lane.b32.xlu0 %v399, 88
        %v1263 = vpop.permute.xlu0 %1262
        %v1264 = vsel %vm427, %v1261, 0
        %v1266 = vsel %vm427, %v1263, 0
        %1268 = vmatprep.subr.mxu0 0.0
        %1269 = vmatpush1.xpose.msra.mxu0 %v1266
        %1270 = vmatprep.subr.mxu0 0.0
        %1271 = vmatpush1.xpose.msra.mxu0 0.0
        %1272 = vmatprep.subr.mxu0 0.0
        %1273 = vmatpush1.xpose.msra.mxu0 0.0
        %1274 = vmatprep.subr.mxu0 0.0
        %1275 = vmatpush1.xpose.msra.mxu0 0.0
        %1276 = vmatprep.subr.mxu0 0.0
        %1277 = vmatpush1.xpose.msra.mxu0 0.0
        %1278 = vmatprep.subr.mxu0 0.0
        %1279 = vmatpush1.xpose.msra.mxu0 0.0
        %1280 = vmatprep.subr.mxu0 0.0
        %1281 = vmatpush1.xpose.msra.mxu0 0.0
        %1282 = vmatprep.subr.mxu0 0.0
        %1283 = vmatpush1.xpose.msra.mxu0 0.0
        %1284 = vmatprep.subr.mxu0 0.0
        %1285 = vmatpush1.xpose.msra.mxu0 0.0
        %1286 = vmatprep.subr.mxu0 0.0
        %1287 = vmatpush1.xpose.msra.mxu0 0.0
        %1288 = vmatprep.subr.mxu0 0.0
        %1289 = vmatpush1.xpose.msra.mxu0 0.0
        %1290 = vmatprep.subr.mxu0 0.0
        %1291 = vmatpush1.xpose.msra.mxu0 0.0
        %1292 = vmatprep.subr.mxu0 0.0
        %1293 = vmatpush1.xpose.msra.mxu0 0.0
        %1294 = vmatprep.subr.mxu0 0.0
        %1295 = vmatpush1.xpose.msra.mxu0 0.0
        %1296 = vmatprep.subr.mxu0 0.0
        %1297 = vmatpush1.xpose.msra.mxu0 0.0
        %1298 = vmatprep.subr.mxu0 0.0
        %1299 = vmatpush1.xpose.msra.mxu0 0.0
        %1300 = vmatprep.subr.mxu0 0.0
        %1301 = vmatpush1.xpose.msra.mxu0 0.0
        %1302 = vmatprep.subr.mxu0 0.0
        %1303 = vmatpush1.xpose.msra.mxu0 0.0
        %1304 = vmatprep.subr.mxu0 0.0
        %1305 = vmatpush1.xpose.msra.mxu0 0.0
        %1306 = vmatprep.subr.mxu0 0.0
        %1307 = vmatpush1.xpose.msra.mxu0 0.0
        %1308 = vmatprep.subr.mxu0 0.0
        %1309 = vmatpush1.xpose.msra.mxu0 0.0
        %1310 = vmatprep.subr.mxu0 0.0
        %1311 = vmatpush1.xpose.msra.mxu0 0.0
        %1312 = vmatprep.subr.mxu0 0.0
        %1313 = vmatpush1.xpose.msra.mxu0 0.0
        %1314 = vmatprep.subr.mxu0 0.0
        %1315 = vmatpush1.xpose.msra.mxu0 0.0
        %1316 = vmatprep.subr.mxu0 0.0
        %1317 = vmatpush1.xpose.msra.mxu0 0.0
        %1318 = vmatprep.subr.mxu0 0.0
        %1319 = vmatpush1.xpose.msra.mxu0 0.0
        %1320 = vmatprep.subr.mxu0 0.0
        %1321 = vmatpush1.xpose.msra.mxu0 0.0
        %1322 = vmatprep.subr.mxu0 0.0
        %1323 = vmatpush1.xpose.msra.mxu0 0.0
        %1324 = vmatprep.subr.mxu0 0.0
        %1325 = vmatpush1.xpose.msra.mxu0 0.0
        %1326 = vmatprep.subr.mxu0 0.0
        %1327 = vmatpush1.xpose.msra.mxu0 0.0
        %1328 = vmatprep.subr.mxu0 0.0
        %1329 = vmatpush1.xpose.msra.mxu0 0.0
        %1330 = vmatprep.subr.mxu0 0.0
        %1331 = vmatpush1.xpose.msra.mxu0 0.0
        %1332 = vmatprep.mubr.f32.mxu0 0.0
        %1333 = vmatmul.mubr.f32.gmra.mrb[0].mxu0 %v1264
        %v1334 = vpop.f32.mrb[0].mxu0
        %v1335 = vadd.f32 0.0, %v1334
        %v1336 = vpop.f32.mrb[0].mxu0
        %1337 = vdwg.mxu0
        %1338 = vrot.lane.b32.xlu0 %v404, 120
        %v1339 = vpop.permute.xlu0 %1338
        %1340 = vrot.lane.b32.xlu0 %v404, 88
        %v1341 = vpop.permute.xlu0 %1340
        %v1342 = vsel %vm427, %v1339, 0
        %v1344 = vsel %vm427, %v1341, 0
        %1346 = vmatprep.subr.mxu0 0.0
        %1347 = vmatpush1.xpose.msra.mxu0 %v1344
        %1348 = vmatprep.subr.mxu0 0.0
        %1349 = vmatpush1.xpose.msra.mxu0 0.0
        %1350 = vmatprep.subr.mxu0 0.0
        %1351 = vmatpush1.xpose.msra.mxu0 0.0
        %1352 = vmatprep.subr.mxu0 0.0
        %1353 = vmatpush1.xpose.msra.mxu0 0.0
        %1354 = vmatprep.subr.mxu0 0.0
        %1355 = vmatpush1.xpose.msra.mxu0 0.0
        %1356 = vmatprep.subr.mxu0 0.0
        %1357 = vmatpush1.xpose.msra.mxu0 0.0
        %1358 = vmatprep.subr.mxu0 0.0
        %1359 = vmatpush1.xpose.msra.mxu0 0.0
        %1360 = vmatprep.subr.mxu0 0.0
        %1361 = vmatpush1.xpose.msra.mxu0 0.0
        %1362 = vmatprep.subr.mxu0 0.0
        %1363 = vmatpush1.xpose.msra.mxu0 0.0
        %1364 = vmatprep.subr.mxu0 0.0
        %1365 = vmatpush1.xpose.msra.mxu0 0.0
        %1366 = vmatprep.subr.mxu0 0.0
        %1367 = vmatpush1.xpose.msra.mxu0 0.0
        %1368 = vmatprep.subr.mxu0 0.0
        %1369 = vmatpush1.xpose.msra.mxu0 0.0
        %1370 = vmatprep.subr.mxu0 0.0
        %1371 = vmatpush1.xpose.msra.mxu0 0.0
        %1372 = vmatprep.subr.mxu0 0.0
        %1373 = vmatpush1.xpose.msra.mxu0 0.0
        %1374 = vmatprep.subr.mxu0 0.0
        %1375 = vmatpush1.xpose.msra.mxu0 0.0
        %1376 = vmatprep.subr.mxu0 0.0
        %1377 = vmatpush1.xpose.msra.mxu0 0.0
        %1378 = vmatprep.subr.mxu0 0.0
        %1379 = vmatpush1.xpose.msra.mxu0 0.0
        %1380 = vmatprep.subr.mxu0 0.0
        %1381 = vmatpush1.xpose.msra.mxu0 0.0
        %1382 = vmatprep.subr.mxu0 0.0
        %1383 = vmatpush1.xpose.msra.mxu0 0.0
        %1384 = vmatprep.subr.mxu0 0.0
        %1385 = vmatpush1.xpose.msra.mxu0 0.0
        %1386 = vmatprep.subr.mxu0 0.0
        %1387 = vmatpush1.xpose.msra.mxu0 0.0
        %1388 = vmatprep.subr.mxu0 0.0
        %1389 = vmatpush1.xpose.msra.mxu0 0.0
        %1390 = vmatprep.subr.mxu0 0.0
        %1391 = vmatpush1.xpose.msra.mxu0 0.0
        %1392 = vmatprep.subr.mxu0 0.0
        %1393 = vmatpush1.xpose.msra.mxu0 0.0
        %1394 = vmatprep.subr.mxu0 0.0
        %1395 = vmatpush1.xpose.msra.mxu0 0.0
        %1396 = vmatprep.subr.mxu0 0.0
        %1397 = vmatpush1.xpose.msra.mxu0 0.0
        %1398 = vmatprep.subr.mxu0 0.0
        %1399 = vmatpush1.xpose.msra.mxu0 0.0
        %1400 = vmatprep.subr.mxu0 0.0
        %1401 = vmatpush1.xpose.msra.mxu0 0.0
        %1402 = vmatprep.subr.mxu0 0.0
        %1403 = vmatpush1.xpose.msra.mxu0 0.0
        %1404 = vmatprep.subr.mxu0 0.0
        %1405 = vmatpush1.xpose.msra.mxu0 0.0
        %1406 = vmatprep.subr.mxu0 0.0
        %1407 = vmatpush1.xpose.msra.mxu0 0.0
        %1408 = vmatprep.subr.mxu0 0.0
        %1409 = vmatpush1.xpose.msra.mxu0 0.0
        %1410 = vmatprep.mubr.f32.mxu0 0.0
        %1411 = vmatmul.mubr.f32.gmra.mrb[0].mxu0 %v1342
        %v1412 = vpop.f32.mrb[0].mxu0
        %v1413 = vadd.f32 0.0, %v1412
        %v1414 = vpop.f32.mrb[0].mxu0
        %1415 = vdwg.mxu0
        %1416 = vrot.lane.b32.xlu0 %v409, 120
        %v1417 = vpop.permute.xlu0 %1416
        %1418 = vrot.lane.b32.xlu0 %v409, 88
        %v1419 = vpop.permute.xlu0 %1418
        %v1420 = vsel %vm427, %v1417, 0
        %v1422 = vsel %vm427, %v1419, 0
        %1424 = vmatprep.subr.mxu0 0.0
        %1425 = vmatpush1.xpose.msra.mxu0 %v1422
        %1426 = vmatprep.subr.mxu0 0.0
        %1427 = vmatpush1.xpose.msra.mxu0 0.0
        %1428 = vmatprep.subr.mxu0 0.0
        %1429 = vmatpush1.xpose.msra.mxu0 0.0
        %1430 = vmatprep.subr.mxu0 0.0
        %1431 = vmatpush1.xpose.msra.mxu0 0.0
        %1432 = vmatprep.subr.mxu0 0.0
        %1433 = vmatpush1.xpose.msra.mxu0 0.0
        %1434 = vmatprep.subr.mxu0 0.0
        %1435 = vmatpush1.xpose.msra.mxu0 0.0
        %1436 = vmatprep.subr.mxu0 0.0
        %1437 = vmatpush1.xpose.msra.mxu0 0.0
        %1438 = vmatprep.subr.mxu0 0.0
        %1439 = vmatpush1.xpose.msra.mxu0 0.0
        %1440 = vmatprep.subr.mxu0 0.0
        %1441 = vmatpush1.xpose.msra.mxu0 0.0
        %1442 = vmatprep.subr.mxu0 0.0
        %1443 = vmatpush1.xpose.msra.mxu0 0.0
        %1444 = vmatprep.subr.mxu0 0.0
        %1445 = vmatpush1.xpose.msra.mxu0 0.0
        %1446 = vmatprep.subr.mxu0 0.0
        %1447 = vmatpush1.xpose.msra.mxu0 0.0
        %1448 = vmatprep.subr.mxu0 0.0
        %1449 = vmatpush1.xpose.msra.mxu0 0.0
        %1450 = vmatprep.subr.mxu0 0.0
        %1451 = vmatpush1.xpose.msra.mxu0 0.0
        %1452 = vmatprep.subr.mxu0 0.0
        %1453 = vmatpush1.xpose.msra.mxu0 0.0
        %1454 = vmatprep.subr.mxu0 0.0
        %1455 = vmatpush1.xpose.msra.mxu0 0.0
        %1456 = vmatprep.subr.mxu0 0.0
        %1457 = vmatpush1.xpose.msra.mxu0 0.0
        %1458 = vmatprep.subr.mxu0 0.0
        %1459 = vmatpush1.xpose.msra.mxu0 0.0
        %1460 = vmatprep.subr.mxu0 0.0
        %1461 = vmatpush1.xpose.msra.mxu0 0.0
        %1462 = vmatprep.subr.mxu0 0.0
        %1463 = vmatpush1.xpose.msra.mxu0 0.0
        %1464 = vmatprep.subr.mxu0 0.0
        %1465 = vmatpush1.xpose.msra.mxu0 0.0
        %1466 = vmatprep.subr.mxu0 0.0
        %1467 = vmatpush1.xpose.msra.mxu0 0.0
        %1468 = vmatprep.subr.mxu0 0.0
        %1469 = vmatpush1.xpose.msra.mxu0 0.0
        %1470 = vmatprep.subr.mxu0 0.0
        %1471 = vmatpush1.xpose.msra.mxu0 0.0
        %1472 = vmatprep.subr.mxu0 0.0
        %1473 = vmatpush1.xpose.msra.mxu0 0.0
        %1474 = vmatprep.subr.mxu0 0.0
        %1475 = vmatpush1.xpose.msra.mxu0 0.0
        %1476 = vmatprep.subr.mxu0 0.0
        %1477 = vmatpush1.xpose.msra.mxu0 0.0
        %1478 = vmatprep.subr.mxu0 0.0
        %1479 = vmatpush1.xpose.msra.mxu0 0.0
        %1480 = vmatprep.subr.mxu0 0.0
        %1481 = vmatpush1.xpose.msra.mxu0 0.0
        %1482 = vmatprep.subr.mxu0 0.0
        %1483 = vmatpush1.xpose.msra.mxu0 0.0
        %1484 = vmatprep.subr.mxu0 0.0
        %1485 = vmatpush1.xpose.msra.mxu0 0.0
        %1486 = vmatprep.subr.mxu0 0.0
        %1487 = vmatpush1.xpose.msra.mxu0 0.0
        %1488 = vmatprep.mubr.f32.mxu0 0.0
        %1489 = vmatmul.mubr.f32.gmra.mrb[0].mxu0 %v1420
        %v1490 = vpop.f32.mrb[0].mxu0
        %v1491 = vadd.f32 0.0, %v1490
        %v1492 = vpop.f32.mrb[0].mxu0
        %1493 = vdwg.mxu0
        %v1494 = vsel %vm427, %v1257, -inf
        %1495 = vmax.xlane.f32.xlu0 %v1494
        %v1496 = vpop.xlane.xlu0 %1495
        %v1497 = vsel %vm427, %v1335, -inf
        %1498 = vmax.xlane.f32.xlu0 %v1497
        %v1499 = vpop.xlane.xlu0 %1498
        %v1500 = vsel %vm427, %v1413, -inf
        %1501 = vmax.xlane.f32.xlu0 %v1500
        %v1502 = vpop.xlane.xlu0 %1501
        %v1503 = vsel %vm427, %v1491, -inf
        %1504 = vmax.xlane.f32.xlu0 %v1503
        %v1505 = vpop.xlane.xlu0 %1504
        %v1506 = vsub.f32 %v1257, %v1496
        %v1507 = vsub.f32 %v1335, %v1499
        %v1508 = vsub.f32 %v1413, %v1502
        %v1509 = vsub.f32 %v1491, %v1505
        %v1510 = vmul.f32 %v1506, 1.442695
        %v1511 = vpow.pop %v1510
        %v1512 = vmul.f32 %v1507, 1.442695
        %v1513 = vpow.pop %v1512
        %v1514 = vmul.f32 %v1508, 1.442695
        %v1515 = vpow.pop %v1514
        %v1516 = vmul.f32 %v1509, 1.442695
        %v1517 = vpow.pop %v1516
        %v1518 = vsel %vm427, %v1511, 0.0
        %1519 = vadd.xlane.f32.xlu0 %v1518
        %v1520 = vpop.xlane.xlu0 %1519
        %v1521 = vsel %vm427, %v1513, 0.0
        %1522 = vadd.xlane.f32.xlu0 %v1521
        %v1523 = vpop.xlane.xlu0 %1522
        %v1524 = vsel %vm427, %v1515, 0.0
        %1525 = vadd.xlane.f32.xlu0 %v1524
        %v1526 = vpop.xlane.xlu0 %1525
        %v1527 = vsel %vm427, %v1517, 0.0
        %1528 = vadd.xlane.f32.xlu0 %v1527
        %v1529 = vpop.xlane.xlu0 %1528
        %v1530 = vrcp.pop %v1520
        %v1531 = vrcp.pop %v1523
        %v1532 = vrcp.pop %v1526
        %v1533 = vrcp.pop %v1529
        %v1534 = vmul.f32 %v1511, %v1530
        %v1535 = vmul.f32 %v1513, %v1531
        %v1536 = vmul.f32 %v1515, %v1532
        %v1537 = vmul.f32 %v1517, %v1533
        %1538 = vrot.lane.b32.xlu0 %v394, 56
        %v1539 = vpop.permute.xlu0 %1538
        %v1542 = vsel %vm427, %v1534, 0
        %1544 = vmatprep.subr.mxu0 0.0
        %1545 = vmatpush1.msra.mxu0 %v1539
        %1546 = vmatprep.subr.mxu0 0.0
        %1547 = vmatpush1.msra.mxu0 0.0
        %1548 = vmatprep.subr.mxu0 0.0
        %1549 = vmatpush1.msra.mxu0 0.0
        %1550 = vmatprep.subr.mxu0 0.0
        %1551 = vmatpush1.msra.mxu0 0.0
        %1552 = vmatprep.subr.mxu0 0.0
        %1553 = vmatpush1.msra.mxu0 0.0
        %1554 = vmatprep.subr.mxu0 0.0
        %1555 = vmatpush1.msra.mxu0 0.0
        %1556 = vmatprep.subr.mxu0 0.0
        %1557 = vmatpush1.msra.mxu0 0.0
        %1558 = vmatprep.subr.mxu0 0.0
        %1559 = vmatpush1.msra.mxu0 0.0
        %1560 = vmatprep.subr.mxu0 0.0
        %1561 = vmatpush1.msra.mxu0 0.0
        %1562 = vmatprep.subr.mxu0 0.0
        %1563 = vmatpush1.msra.mxu0 0.0
        %1564 = vmatprep.subr.mxu0 0.0
        %1565 = vmatpush1.msra.mxu0 0.0
        %1566 = vmatprep.subr.mxu0 0.0
        %1567 = vmatpush1.msra.mxu0 0.0
        %1568 = vmatprep.subr.mxu0 0.0
        %1569 = vmatpush1.msra.mxu0 0.0
        %1570 = vmatprep.subr.mxu0 0.0
        %1571 = vmatpush1.msra.mxu0 0.0
        %1572 = vmatprep.subr.mxu0 0.0
        %1573 = vmatpush1.msra.mxu0 0.0
        %1574 = vmatprep.subr.mxu0 0.0
        %1575 = vmatpush1.msra.mxu0 0.0
        %1576 = vmatprep.subr.mxu0 0.0
        %1577 = vmatpush1.msra.mxu0 0.0
        %1578 = vmatprep.subr.mxu0 0.0
        %1579 = vmatpush1.msra.mxu0 0.0
        %1580 = vmatprep.subr.mxu0 0.0
        %1581 = vmatpush1.msra.mxu0 0.0
        %1582 = vmatprep.subr.mxu0 0.0
        %1583 = vmatpush1.msra.mxu0 0.0
        %1584 = vmatprep.subr.mxu0 0.0
        %1585 = vmatpush1.msra.mxu0 0.0
        %1586 = vmatprep.subr.mxu0 0.0
        %1587 = vmatpush1.msra.mxu0 0.0
        %1588 = vmatprep.subr.mxu0 0.0
        %1589 = vmatpush1.msra.mxu0 0.0
        %1590 = vmatprep.subr.mxu0 0.0
        %1591 = vmatpush1.msra.mxu0 0.0
        %1592 = vmatprep.subr.mxu0 0.0
        %1593 = vmatpush1.msra.mxu0 0.0
        %1594 = vmatprep.subr.mxu0 0.0
        %1595 = vmatpush1.msra.mxu0 0.0
        %1596 = vmatprep.subr.mxu0 0.0
        %1597 = vmatpush1.msra.mxu0 0.0
        %1598 = vmatprep.subr.mxu0 0.0
        %1599 = vmatpush1.msra.mxu0 0.0
        %1600 = vmatprep.subr.mxu0 0.0
        %1601 = vmatpush1.msra.mxu0 0.0
        %1602 = vmatprep.subr.mxu0 0.0
        %1603 = vmatpush1.msra.mxu0 0.0
        %1604 = vmatprep.subr.mxu0 0.0
        %1605 = vmatpush1.msra.mxu0 0.0
        %1606 = vmatprep.subr.mxu0 0.0
        %1607 = vmatpush1.msra.mxu0 0.0
        %1608 = vmatprep.mubr.f32.mxu0 0.0
        %1609 = vmatmul.mubr.f32.gmra.mrb[0].mxu0 %v1542
        %v1610 = vpop.f32.mrb[0].mxu0
        %v1611 = vadd.f32 0.0, %v1610
        %v1612 = vpop.f32.mrb[0].mxu0
        %1613 = vdwg.mxu0
        %1614 = vrot.lane.b32.xlu0 %v399, 56
        %v1615 = vpop.permute.xlu0 %1614
        %v1618 = vsel %vm427, %v1535, 0
        %1620 = vmatprep.subr.mxu0 0.0
        %1621 = vmatpush1.msra.mxu0 %v1615
        %1622 = vmatprep.subr.mxu0 0.0
        %1623 = vmatpush1.msra.mxu0 0.0
        %1624 = vmatprep.subr.mxu0 0.0
        %1625 = vmatpush1.msra.mxu0 0.0
        %1626 = vmatprep.subr.mxu0 0.0
        %1627 = vmatpush1.msra.mxu0 0.0
        %1628 = vmatprep.subr.mxu0 0.0
        %1629 = vmatpush1.msra.mxu0 0.0
        %1630 = vmatprep.subr.mxu0 0.0
        %1631 = vmatpush1.msra.mxu0 0.0
        %1632 = vmatprep.subr.mxu0 0.0
        %1633 = vmatpush1.msra.mxu0 0.0
        %1634 = vmatprep.subr.mxu0 0.0
        %1635 = vmatpush1.msra.mxu0 0.0
        %1636 = vmatprep.subr.mxu0 0.0
        %1637 = vmatpush1.msra.mxu0 0.0
        %1638 = vmatprep.subr.mxu0 0.0
        %1639 = vmatpush1.msra.mxu0 0.0
        %1640 = vmatprep.subr.mxu0 0.0
        %1641 = vmatpush1.msra.mxu0 0.0
        %1642 = vmatprep.subr.mxu0 0.0
        %1643 = vmatpush1.msra.mxu0 0.0
        %1644 = vmatprep.subr.mxu0 0.0
        %1645 = vmatpush1.msra.mxu0 0.0
        %1646 = vmatprep.subr.mxu0 0.0
        %1647 = vmatpush1.msra.mxu0 0.0
        %1648 = vmatprep.subr.mxu0 0.0
        %1649 = vmatpush1.msra.mxu0 0.0
        %1650 = vmatprep.subr.mxu0 0.0
        %1651 = vmatpush1.msra.mxu0 0.0
        %1652 = vmatprep.subr.mxu0 0.0
        %1653 = vmatpush1.msra.mxu0 0.0
        %1654 = vmatprep.subr.mxu0 0.0
        %1655 = vmatpush1.msra.mxu0 0.0
        %1656 = vmatprep.subr.mxu0 0.0
        %1657 = vmatpush1.msra.mxu0 0.0
        %1658 = vmatprep.subr.mxu0 0.0
        %1659 = vmatpush1.msra.mxu0 0.0
        %1660 = vmatprep.subr.mxu0 0.0
        %1661 = vmatpush1.msra.mxu0 0.0
        %1662 = vmatprep.subr.mxu0 0.0
        %1663 = vmatpush1.msra.mxu0 0.0
        %1664 = vmatprep.subr.mxu0 0.0
        %1665 = vmatpush1.msra.mxu0 0.0
        %1666 = vmatprep.subr.mxu0 0.0
        %1667 = vmatpush1.msra.mxu0 0.0
        %1668 = vmatprep.subr.mxu0 0.0
        %1669 = vmatpush1.msra.mxu0 0.0
        %1670 = vmatprep.subr.mxu0 0.0
        %1671 = vmatpush1.msra.mxu0 0.0
        %1672 = vmatprep.subr.mxu0 0.0
        %1673 = vmatpush1.msra.mxu0 0.0
        %1674 = vmatprep.subr.mxu0 0.0
        %1675 = vmatpush1.msra.mxu0 0.0
        %1676 = vmatprep.subr.mxu0 0.0
        %1677 = vmatpush1.msra.mxu0 0.0
        %1678 = vmatprep.subr.mxu0 0.0
        %1679 = vmatpush1.msra.mxu0 0.0
        %1680 = vmatprep.subr.mxu0 0.0
        %1681 = vmatpush1.msra.mxu0 0.0
        %1682 = vmatprep.subr.mxu0 0.0
        %1683 = vmatpush1.msra.mxu0 0.0
        %1684 = vmatprep.mubr.f32.mxu0 0.0
        %1685 = vmatmul.mubr.f32.gmra.mrb[0].mxu0 %v1618
        %v1686 = vpop.f32.mrb[0].mxu0
        %v1687 = vadd.f32 0.0, %v1686
        %v1688 = vpop.f32.mrb[0].mxu0
        %1689 = vdwg.mxu0
        %1690 = vrot.lane.b32.xlu0 %v404, 56
        %v1691 = vpop.permute.xlu0 %1690
        %v1694 = vsel %vm427, %v1536, 0
        %1696 = vmatprep.subr.mxu0 0.0
        %1697 = vmatpush1.msra.mxu0 %v1691
        %1698 = vmatprep.subr.mxu0 0.0
        %1699 = vmatpush1.msra.mxu0 0.0
        %1700 = vmatprep.subr.mxu0 0.0
        %1701 = vmatpush1.msra.mxu0 0.0
        %1702 = vmatprep.subr.mxu0 0.0
        %1703 = vmatpush1.msra.mxu0 0.0
        %1704 = vmatprep.subr.mxu0 0.0
        %1705 = vmatpush1.msra.mxu0 0.0
        %1706 = vmatprep.subr.mxu0 0.0
        %1707 = vmatpush1.msra.mxu0 0.0
        %1708 = vmatprep.subr.mxu0 0.0
        %1709 = vmatpush1.msra.mxu0 0.0
        %1710 = vmatprep.subr.mxu0 0.0
        %1711 = vmatpush1.msra.mxu0 0.0
        %1712 = vmatprep.subr.mxu0 0.0
        %1713 = vmatpush1.msra.mxu0 0.0
        %1714 = vmatprep.subr.mxu0 0.0
        %1715 = vmatpush1.msra.mxu0 0.0
        %1716 = vmatprep.subr.mxu0 0.0
        %1717 = vmatpush1.msra.mxu0 0.0
        %1718 = vmatprep.subr.mxu0 0.0
        %1719 = vmatpush1.msra.mxu0 0.0
        %1720 = vmatprep.subr.mxu0 0.0
        %1721 = vmatpush1.msra.mxu0 0.0
        %1722 = vmatprep.subr.mxu0 0.0
        %1723 = vmatpush1.msra.mxu0 0.0
        %1724 = vmatprep.subr.mxu0 0.0
        %1725 = vmatpush1.msra.mxu0 0.0
        %1726 = vmatprep.subr.mxu0 0.0
        %1727 = vmatpush1.msra.mxu0 0.0
        %1728 = vmatprep.subr.mxu0 0.0
        %1729 = vmatpush1.msra.mxu0 0.0
        %1730 = vmatprep.subr.mxu0 0.0
        %1731 = vmatpush1.msra.mxu0 0.0
        %1732 = vmatprep.subr.mxu0 0.0
        %1733 = vmatpush1.msra.mxu0 0.0
        %1734 = vmatprep.subr.mxu0 0.0
        %1735 = vmatpush1.msra.mxu0 0.0
        %1736 = vmatprep.subr.mxu0 0.0
        %1737 = vmatpush1.msra.mxu0 0.0
        %1738 = vmatprep.subr.mxu0 0.0
        %1739 = vmatpush1.msra.mxu0 0.0
        %1740 = vmatprep.subr.mxu0 0.0
        %1741 = vmatpush1.msra.mxu0 0.0
        %1742 = vmatprep.subr.mxu0 0.0
        %1743 = vmatpush1.msra.mxu0 0.0
        %1744 = vmatprep.subr.mxu0 0.0
        %1745 = vmatpush1.msra.mxu0 0.0
        %1746 = vmatprep.subr.mxu0 0.0
        %1747 = vmatpush1.msra.mxu0 0.0
        %1748 = vmatprep.subr.mxu0 0.0
        %1749 = vmatpush1.msra.mxu0 0.0
        %1750 = vmatprep.subr.mxu0 0.0
        %1751 = vmatpush1.msra.mxu0 0.0
        %1752 = vmatprep.subr.mxu0 0.0
        %1753 = vmatpush1.msra.mxu0 0.0
        %1754 = vmatprep.subr.mxu0 0.0
        %1755 = vmatpush1.msra.mxu0 0.0
        %1756 = vmatprep.subr.mxu0 0.0
        %1757 = vmatpush1.msra.mxu0 0.0
        %1758 = vmatprep.subr.mxu0 0.0
        %1759 = vmatpush1.msra.mxu0 0.0
        %1760 = vmatprep.mubr.f32.mxu0 0.0
        %1761 = vmatmul.mubr.f32.gmra.mrb[0].mxu0 %v1694
        %v1762 = vpop.f32.mrb[0].mxu0
        %v1763 = vadd.f32 0.0, %v1762
        %v1764 = vpop.f32.mrb[0].mxu0
        %1765 = vdwg.mxu0
        %1766 = vrot.lane.b32.xlu0 %v409, 56
        %v1767 = vpop.permute.xlu0 %1766
        %v1770 = vsel %vm427, %v1537, 0
        %1772 = vmatprep.subr.mxu0 0.0
        %1773 = vmatpush1.msra.mxu0 %v1767
        %1774 = vmatprep.subr.mxu0 0.0
        %1775 = vmatpush1.msra.mxu0 0.0
        %1776 = vmatprep.subr.mxu0 0.0
        %1777 = vmatpush1.msra.mxu0 0.0
        %1778 = vmatprep.subr.mxu0 0.0
        %1779 = vmatpush1.msra.mxu0 0.0
        %1780 = vmatprep.subr.mxu0 0.0
        %1781 = vmatpush1.msra.mxu0 0.0
        %1782 = vmatprep.subr.mxu0 0.0
        %1783 = vmatpush1.msra.mxu0 0.0
        %1784 = vmatprep.subr.mxu0 0.0
        %1785 = vmatpush1.msra.mxu0 0.0
        %1786 = vmatprep.subr.mxu0 0.0
        %1787 = vmatpush1.msra.mxu0 0.0
        %1788 = vmatprep.subr.mxu0 0.0
        %1789 = vmatpush1.msra.mxu0 0.0
        %1790 = vmatprep.subr.mxu0 0.0
        %1791 = vmatpush1.msra.mxu0 0.0
        %1792 = vmatprep.subr.mxu0 0.0
        %1793 = vmatpush1.msra.mxu0 0.0
        %1794 = vmatprep.subr.mxu0 0.0
        %1795 = vmatpush1.msra.mxu0 0.0
        %1796 = vmatprep.subr.mxu0 0.0
        %1797 = vmatpush1.msra.mxu0 0.0
        %1798 = vmatprep.subr.mxu0 0.0
        %1799 = vmatpush1.msra.mxu0 0.0
        %1800 = vmatprep.subr.mxu0 0.0
        %1801 = vmatpush1.msra.mxu0 0.0
        %1802 = vmatprep.subr.mxu0 0.0
        %1803 = vmatpush1.msra.mxu0 0.0
        %1804 = vmatprep.subr.mxu0 0.0
        %1805 = vmatpush1.msra.mxu0 0.0
        %1806 = vmatprep.subr.mxu0 0.0
        %1807 = vmatpush1.msra.mxu0 0.0
        %1808 = vmatprep.subr.mxu0 0.0
        %1809 = vmatpush1.msra.mxu0 0.0
        %1810 = vmatprep.subr.mxu0 0.0
        %1811 = vmatpush1.msra.mxu0 0.0
        %1812 = vmatprep.subr.mxu0 0.0
        %1813 = vmatpush1.msra.mxu0 0.0
        %1814 = vmatprep.subr.mxu0 0.0
        %1815 = vmatpush1.msra.mxu0 0.0
        %1816 = vmatprep.subr.mxu0 0.0
        %1817 = vmatpush1.msra.mxu0 0.0
        %1818 = vmatprep.subr.mxu0 0.0
        %1819 = vmatpush1.msra.mxu0 0.0
        %1820 = vmatprep.subr.mxu0 0.0
        %1821 = vmatpush1.msra.mxu0 0.0
        %1822 = vmatprep.subr.mxu0 0.0
        %1823 = vmatpush1.msra.mxu0 0.0
        %1824 = vmatprep.subr.mxu0 0.0
        %1825 = vmatpush1.msra.mxu0 0.0
        %1826 = vmatprep.subr.mxu0 0.0
        %1827 = vmatpush1.msra.mxu0 0.0
        %1828 = vmatprep.subr.mxu0 0.0
        %1829 = vmatpush1.msra.mxu0 0.0
        %1830 = vmatprep.subr.mxu0 0.0
        %1831 = vmatpush1.msra.mxu0 0.0
        %1832 = vmatprep.subr.mxu0 0.0
        %1833 = vmatpush1.msra.mxu0 0.0
        %1834 = vmatprep.subr.mxu0 0.0
        %1835 = vmatpush1.msra.mxu0 0.0
        %1836 = vmatprep.mubr.f32.mxu0 0.0
        %1837 = vmatmul.mubr.f32.gmra.mrb[0].mxu0 %v1770
        %v1838 = vpop.f32.mrb[0].mxu0
        %v1839 = vadd.f32 0.0, %v1838
        %v1840 = vpop.f32.mrb[0].mxu0
        %1841 = vdwg.mxu0
        %v1843 = vsel %vm427, %v1611, 0
        %v1846 = vsel %vm427, %v1687, 0
        %v1849 = vsel %vm427, %v1763, 0
        %v1852 = vsel %vm427, %v1839, 0
        %1854 = vmatprep.subr.mxu0 0.0
        %1855 = vmatpush1.msra.mxu0 %v413
        %1856 = vmatprep.subr.mxu0 0.0
        %1857 = vmatpush1.msra.mxu0 0.0
        %1858 = vmatprep.subr.mxu0 0.0
        %1859 = vmatpush1.msra.mxu0 0.0
        %1860 = vmatprep.subr.mxu0 0.0
        %1861 = vmatpush1.msra.mxu0 0.0
        %1862 = vmatprep.subr.mxu0 0.0
        %1863 = vmatpush1.msra.mxu0 0.0
        %1864 = vmatprep.subr.mxu0 0.0
        %1865 = vmatpush1.msra.mxu0 0.0
        %1866 = vmatprep.subr.mxu0 0.0
        %1867 = vmatpush1.msra.mxu0 0.0
        %1868 = vmatprep.subr.mxu0 0.0
        %1869 = vmatpush1.msra.mxu0 0.0
        %1870 = vmatprep.subr.mxu0 0.0
        %1871 = vmatpush1.msra.mxu0 0.0
        %1872 = vmatprep.subr.mxu0 0.0
        %1873 = vmatpush1.msra.mxu0 0.0
        %1874 = vmatprep.subr.mxu0 0.0
        %1875 = vmatpush1.msra.mxu0 0.0
        %1876 = vmatprep.subr.mxu0 0.0
        %1877 = vmatpush1.msra.mxu0 0.0
        %1878 = vmatprep.subr.mxu0 0.0
        %1879 = vmatpush1.msra.mxu0 0.0
        %1880 = vmatprep.subr.mxu0 0.0
        %1881 = vmatpush1.msra.mxu0 0.0
        %1882 = vmatprep.subr.mxu0 0.0
        %1883 = vmatpush1.msra.mxu0 0.0
        %1884 = vmatprep.subr.mxu0 0.0
        %1885 = vmatpush1.msra.mxu0 0.0
        %1886 = vmatprep.subr.mxu0 0.0
        %1887 = vmatpush1.msra.mxu0 0.0
        %1888 = vmatprep.subr.mxu0 0.0
        %1889 = vmatpush1.msra.mxu0 0.0
        %1890 = vmatprep.subr.mxu0 0.0
        %1891 = vmatpush1.msra.mxu0 0.0
        %1892 = vmatprep.subr.mxu0 0.0
        %1893 = vmatpush1.msra.mxu0 0.0
        %1894 = vmatprep.subr.mxu0 0.0
        %1895 = vmatpush1.msra.mxu0 0.0
        %1896 = vmatprep.subr.mxu0 0.0
        %1897 = vmatpush1.msra.mxu0 0.0
        %1898 = vmatprep.subr.mxu0 0.0
        %1899 = vmatpush1.msra.mxu0 0.0
        %1900 = vmatprep.subr.mxu0 0.0
        %1901 = vmatpush1.msra.mxu0 0.0
        %1902 = vmatprep.subr.mxu0 0.0
        %1903 = vmatpush1.msra.mxu0 0.0
        %1904 = vmatprep.subr.mxu0 0.0
        %1905 = vmatpush1.msra.mxu0 0.0
        %1906 = vmatprep.subr.mxu0 0.0
        %1907 = vmatpush1.msra.mxu0 0.0
        %1908 = vmatprep.subr.mxu0 0.0
        %1909 = vmatpush1.msra.mxu0 0.0
        %1910 = vmatprep.subr.mxu0 0.0
        %1911 = vmatpush1.msra.mxu0 0.0
        %1912 = vmatprep.subr.mxu0 0.0
        %1913 = vmatpush1.msra.mxu0 0.0
        %1914 = vmatprep.subr.mxu0 0.0
        %1915 = vmatpush1.msra.mxu0 0.0
        %1916 = vmatprep.subr.mxu0 0.0
        %1917 = vmatpush1.msra.mxu0 0.0
        %1918 = vmatprep.mubr.f32.mxu0 0.0
        %1919 = vmatmul.mubr.f32.gmra.mrb[0].mxu0 %v1843
        %v1920 = vpop.f32.mrb[0].mxu0
        %v1921 = vadd.f32 0.0, %v1920
        %v1922 = vpop.f32.mrb[0].mxu0
        %1923 = vmatprep.mubr.f32.mxu0 0.0
        %1924 = vmatmul.mubr.f32.gmra.mrb[0].mxu0 %v1846
        %v1925 = vpop.f32.mrb[0].mxu0
        %v1926 = vadd.f32 0.0, %v1925
        %v1927 = vpop.f32.mrb[0].mxu0
        %1928 = vmatprep.mubr.f32.mxu0 0.0
        %1929 = vmatmul.mubr.f32.gmra.mrb[0].mxu0 %v1849
        %v1930 = vpop.f32.mrb[0].mxu0
        %v1931 = vadd.f32 0.0, %v1930
        %v1932 = vpop.f32.mrb[0].mxu0
        %1933 = vmatprep.mubr.f32.mxu0 0.0
        %1934 = vmatmul.mubr.f32.gmra.mrb[0].mxu0 %v1852
        %v1935 = vpop.f32.mrb[0].mxu0
        %v1936 = vadd.f32 0.0, %v1935
        %v1937 = vpop.f32.mrb[0].mxu0
        %1938 = vdwg.mxu0
        %v1939 = vadd.f32 %v1178, %v1921
        %v1940 = vadd.f32 %v1179, %v1926
        %v1941 = vadd.f32 %v1180, %v1931
        %v1942 = vadd.f32 %v1181, %v1936
        %1943 = vrot.lane.b32.xlu0 %v394, 112
        %v1944 = vpop.permute.xlu0 %1943
        %1945 = vrot.lane.b32.xlu0 %v394, 80
        %v1946 = vpop.permute.xlu0 %1945
        %v1947 = vsel %vm427, %v1944, 0
        %v1949 = vsel %vm427, %v1946, 0
        %1951 = vmatprep.subr.mxu0 0.0
        %1952 = vmatpush1.xpose.msra.mxu0 %v1949
        %1953 = vmatprep.subr.mxu0 0.0
        %1954 = vmatpush1.xpose.msra.mxu0 0.0
        %1955 = vmatprep.subr.mxu0 0.0
        %1956 = vmatpush1.xpose.msra.mxu0 0.0
        %1957 = vmatprep.subr.mxu0 0.0
        %1958 = vmatpush1.xpose.msra.mxu0 0.0
        %1959 = vmatprep.subr.mxu0 0.0
        %1960 = vmatpush1.xpose.msra.mxu0 0.0
        %1961 = vmatprep.subr.mxu0 0.0
        %1962 = vmatpush1.xpose.msra.mxu0 0.0
        %1963 = vmatprep.subr.mxu0 0.0
        %1964 = vmatpush1.xpose.msra.mxu0 0.0
        %1965 = vmatprep.subr.mxu0 0.0
        %1966 = vmatpush1.xpose.msra.mxu0 0.0
        %1967 = vmatprep.subr.mxu0 0.0
        %1968 = vmatpush1.xpose.msra.mxu0 0.0
        %1969 = vmatprep.subr.mxu0 0.0
        %1970 = vmatpush1.xpose.msra.mxu0 0.0
        %1971 = vmatprep.subr.mxu0 0.0
        %1972 = vmatpush1.xpose.msra.mxu0 0.0
        %1973 = vmatprep.subr.mxu0 0.0
        %1974 = vmatpush1.xpose.msra.mxu0 0.0
        %1975 = vmatprep.subr.mxu0 0.0
        %1976 = vmatpush1.xpose.msra.mxu0 0.0
        %1977 = vmatprep.subr.mxu0 0.0
        %1978 = vmatpush1.xpose.msra.mxu0 0.0
        %1979 = vmatprep.subr.mxu0 0.0
        %1980 = vmatpush1.xpose.msra.mxu0 0.0
        %1981 = vmatprep.subr.mxu0 0.0
        %1982 = vmatpush1.xpose.msra.mxu0 0.0
        %1983 = vmatprep.subr.mxu0 0.0
        %1984 = vmatpush1.xpose.msra.mxu0 0.0
        %1985 = vmatprep.subr.mxu0 0.0
        %1986 = vmatpush1.xpose.msra.mxu0 0.0
        %1987 = vmatprep.subr.mxu0 0.0
        %1988 = vmatpush1.xpose.msra.mxu0 0.0
        %1989 = vmatprep.subr.mxu0 0.0
        %1990 = vmatpush1.xpose.msra.mxu0 0.0
        %1991 = vmatprep.subr.mxu0 0.0
        %1992 = vmatpush1.xpose.msra.mxu0 0.0
        %1993 = vmatprep.subr.mxu0 0.0
        %1994 = vmatpush1.xpose.msra.mxu0 0.0
        %1995 = vmatprep.subr.mxu0 0.0
        %1996 = vmatpush1.xpose.msra.mxu0 0.0
        %1997 = vmatprep.subr.mxu0 0.0
        %1998 = vmatpush1.xpose.msra.mxu0 0.0
        %1999 = vmatprep.subr.mxu0 0.0
        %2000 = vmatpush1.xpose.msra.mxu0 0.0
        %2001 = vmatprep.subr.mxu0 0.0
        %2002 = vmatpush1.xpose.msra.mxu0 0.0
        %2003 = vmatprep.subr.mxu0 0.0
        %2004 = vmatpush1.xpose.msra.mxu0 0.0
        %2005 = vmatprep.subr.mxu0 0.0
        %2006 = vmatpush1.xpose.msra.mxu0 0.0
        %2007 = vmatprep.subr.mxu0 0.0
        %2008 = vmatpush1.xpose.msra.mxu0 0.0
        %2009 = vmatprep.subr.mxu0 0.0
        %2010 = vmatpush1.xpose.msra.mxu0 0.0
        %2011 = vmatprep.subr.mxu0 0.0
        %2012 = vmatpush1.xpose.msra.mxu0 0.0
        %2013 = vmatprep.subr.mxu0 0.0
        %2014 = vmatpush1.xpose.msra.mxu0 0.0
        %2015 = vmatprep.mubr.f32.mxu0 0.0
        %2016 = vmatmul.mubr.f32.gmra.mrb[0].mxu0 %v1947
        %v2017 = vpop.f32.mrb[0].mxu0
        %v2018 = vadd.f32 0.0, %v2017
        %v2019 = vpop.f32.mrb[0].mxu0
        %2020 = vdwg.mxu0
        %2021 = vrot.lane.b32.xlu0 %v399, 112
        %v2022 = vpop.permute.xlu0 %2021
        %2023 = vrot.lane.b32.xlu0 %v399, 80
        %v2024 = vpop.permute.xlu0 %2023
        %v2025 = vsel %vm427, %v2022, 0
        %v2027 = vsel %vm427, %v2024, 0
        %2029 = vmatprep.subr.mxu0 0.0
        %2030 = vmatpush1.xpose.msra.mxu0 %v2027
        %2031 = vmatprep.subr.mxu0 0.0
        %2032 = vmatpush1.xpose.msra.mxu0 0.0
        %2033 = vmatprep.subr.mxu0 0.0
        %2034 = vmatpush1.xpose.msra.mxu0 0.0
        %2035 = vmatprep.subr.mxu0 0.0
        %2036 = vmatpush1.xpose.msra.mxu0 0.0
        %2037 = vmatprep.subr.mxu0 0.0
        %2038 = vmatpush1.xpose.msra.mxu0 0.0
        %2039 = vmatprep.subr.mxu0 0.0
        %2040 = vmatpush1.xpose.msra.mxu0 0.0
        %2041 = vmatprep.subr.mxu0 0.0
        %2042 = vmatpush1.xpose.msra.mxu0 0.0
        %2043 = vmatprep.subr.mxu0 0.0
        %2044 = vmatpush1.xpose.msra.mxu0 0.0
        %2045 = vmatprep.subr.mxu0 0.0
        %2046 = vmatpush1.xpose.msra.mxu0 0.0
        %2047 = vmatprep.subr.mxu0 0.0
        %2048 = vmatpush1.xpose.msra.mxu0 0.0
        %2049 = vmatprep.subr.mxu0 0.0
        %2050 = vmatpush1.xpose.msra.mxu0 0.0
        %2051 = vmatprep.subr.mxu0 0.0
        %2052 = vmatpush1.xpose.msra.mxu0 0.0
        %2053 = vmatprep.subr.mxu0 0.0
        %2054 = vmatpush1.xpose.msra.mxu0 0.0
        %2055 = vmatprep.subr.mxu0 0.0
        %2056 = vmatpush1.xpose.msra.mxu0 0.0
        %2057 = vmatprep.subr.mxu0 0.0
        %2058 = vmatpush1.xpose.msra.mxu0 0.0
        %2059 = vmatprep.subr.mxu0 0.0
        %2060 = vmatpush1.xpose.msra.mxu0 0.0
        %2061 = vmatprep.subr.mxu0 0.0
        %2062 = vmatpush1.xpose.msra.mxu0 0.0
        %2063 = vmatprep.subr.mxu0 0.0
        %2064 = vmatpush1.xpose.msra.mxu0 0.0
        %2065 = vmatprep.subr.mxu0 0.0
        %2066 = vmatpush1.xpose.msra.mxu0 0.0
        %2067 = vmatprep.subr.mxu0 0.0
        %2068 = vmatpush1.xpose.msra.mxu0 0.0
        %2069 = vmatprep.subr.mxu0 0.0
        %2070 = vmatpush1.xpose.msra.mxu0 0.0
        %2071 = vmatprep.subr.mxu0 0.0
        %2072 = vmatpush1.xpose.msra.mxu0 0.0
        %2073 = vmatprep.subr.mxu0 0.0
        %2074 = vmatpush1.xpose.msra.mxu0 0.0
        %2075 = vmatprep.subr.mxu0 0.0
        %2076 = vmatpush1.xpose.msra.mxu0 0.0
        %2077 = vmatprep.subr.mxu0 0.0
        %2078 = vmatpush1.xpose.msra.mxu0 0.0
        %2079 = vmatprep.subr.mxu0 0.0
        %2080 = vmatpush1.xpose.msra.mxu0 0.0
        %2081 = vmatprep.subr.mxu0 0.0
        %2082 = vmatpush1.xpose.msra.mxu0 0.0
        %2083 = vmatprep.subr.mxu0 0.0
        %2084 = vmatpush1.xpose.msra.mxu0 0.0
        %2085 = vmatprep.subr.mxu0 0.0
        %2086 = vmatpush1.xpose.msra.mxu0 0.0
        %2087 = vmatprep.subr.mxu0 0.0
        %2088 = vmatpush1.xpose.msra.mxu0 0.0
        %2089 = vmatprep.subr.mxu0 0.0
        %2090 = vmatpush1.xpose.msra.mxu0 0.0
        %2091 = vmatprep.subr.mxu0 0.0
        %2092 = vmatpush1.xpose.msra.mxu0 0.0
        %2093 = vmatprep.mubr.f32.mxu0 0.0
        %2094 = vmatmul.mubr.f32.gmra.mrb[0].mxu0 %v2025
        %v2095 = vpop.f32.mrb[0].mxu0
        %v2096 = vadd.f32 0.0, %v2095
        %v2097 = vpop.f32.mrb[0].mxu0
        %2098 = vdwg.mxu0
        %2099 = vrot.lane.b32.xlu0 %v404, 112
        %v2100 = vpop.permute.xlu0 %2099
        %2101 = vrot.lane.b32.xlu0 %v404, 80
        %v2102 = vpop.permute.xlu0 %2101
        %v2103 = vsel %vm427, %v2100, 0
        %v2105 = vsel %vm427, %v2102, 0
        %2107 = vmatprep.subr.mxu0 0.0
        %2108 = vmatpush1.xpose.msra.mxu0 %v2105
        %2109 = vmatprep.subr.mxu0 0.0
        %2110 = vmatpush1.xpose.msra.mxu0 0.0
        %2111 = vmatprep.subr.mxu0 0.0
        %2112 = vmatpush1.xpose.msra.mxu0 0.0
        %2113 = vmatprep.subr.mxu0 0.0
        %2114 = vmatpush1.xpose.msra.mxu0 0.0
        %2115 = vmatprep.subr.mxu0 0.0
        %2116 = vmatpush1.xpose.msra.mxu0 0.0
        %2117 = vmatprep.subr.mxu0 0.0
        %2118 = vmatpush1.xpose.msra.mxu0 0.0
        %2119 = vmatprep.subr.mxu0 0.0
        %2120 = vmatpush1.xpose.msra.mxu0 0.0
        %2121 = vmatprep.subr.mxu0 0.0
        %2122 = vmatpush1.xpose.msra.mxu0 0.0
        %2123 = vmatprep.subr.mxu0 0.0
        %2124 = vmatpush1.xpose.msra.mxu0 0.0
        %2125 = vmatprep.subr.mxu0 0.0
        %2126 = vmatpush1.xpose.msra.mxu0 0.0
        %2127 = vmatprep.subr.mxu0 0.0
        %2128 = vmatpush1.xpose.msra.mxu0 0.0
        %2129 = vmatprep.subr.mxu0 0.0
        %2130 = vmatpush1.xpose.msra.mxu0 0.0
        %2131 = vmatprep.subr.mxu0 0.0
        %2132 = vmatpush1.xpose.msra.mxu0 0.0
        %2133 = vmatprep.subr.mxu0 0.0
        %2134 = vmatpush1.xpose.msra.mxu0 0.0
        %2135 = vmatprep.subr.mxu0 0.0
        %2136 = vmatpush1.xpose.msra.mxu0 0.0
        %2137 = vmatprep.subr.mxu0 0.0
        %2138 = vmatpush1.xpose.msra.mxu0 0.0
        %2139 = vmatprep.subr.mxu0 0.0
        %2140 = vmatpush1.xpose.msra.mxu0 0.0
        %2141 = vmatprep.subr.mxu0 0.0
        %2142 = vmatpush1.xpose.msra.mxu0 0.0
        %2143 = vmatprep.subr.mxu0 0.0
        %2144 = vmatpush1.xpose.msra.mxu0 0.0
        %2145 = vmatprep.subr.mxu0 0.0
        %2146 = vmatpush1.xpose.msra.mxu0 0.0
        %2147 = vmatprep.subr.mxu0 0.0
        %2148 = vmatpush1.xpose.msra.mxu0 0.0
        %2149 = vmatprep.subr.mxu0 0.0
        %2150 = vmatpush1.xpose.msra.mxu0 0.0
        %2151 = vmatprep.subr.mxu0 0.0
        %2152 = vmatpush1.xpose.msra.mxu0 0.0
        %2153 = vmatprep.subr.mxu0 0.0
        %2154 = vmatpush1.xpose.msra.mxu0 0.0
        %2155 = vmatprep.subr.mxu0 0.0
        %2156 = vmatpush1.xpose.msra.mxu0 0.0
        %2157 = vmatprep.subr.mxu0 0.0
        %2158 = vmatpush1.xpose.msra.mxu0 0.0
        %2159 = vmatprep.subr.mxu0 0.0
        %2160 = vmatpush1.xpose.msra.mxu0 0.0
        %2161 = vmatprep.subr.mxu0 0.0
        %2162 = vmatpush1.xpose.msra.mxu0 0.0
        %2163 = vmatprep.subr.mxu0 0.0
        %2164 = vmatpush1.xpose.msra.mxu0 0.0
        %2165 = vmatprep.subr.mxu0 0.0
        %2166 = vmatpush1.xpose.msra.mxu0 0.0
        %2167 = vmatprep.subr.mxu0 0.0
        %2168 = vmatpush1.xpose.msra.mxu0 0.0
        %2169 = vmatprep.subr.mxu0 0.0
        %2170 = vmatpush1.xpose.msra.mxu0 0.0
        %2171 = vmatprep.mubr.f32.mxu0 0.0
        %2172 = vmatmul.mubr.f32.gmra.mrb[0].mxu0 %v2103
        %v2173 = vpop.f32.mrb[0].mxu0
        %v2174 = vadd.f32 0.0, %v2173
        %v2175 = vpop.f32.mrb[0].mxu0
        %2176 = vdwg.mxu0
        %2177 = vrot.lane.b32.xlu0 %v409, 112
        %v2178 = vpop.permute.xlu0 %2177
        %2179 = vrot.lane.b32.xlu0 %v409, 80
        %v2180 = vpop.permute.xlu0 %2179
        %v2181 = vsel %vm427, %v2178, 0
        %v2183 = vsel %vm427, %v2180, 0
        %2185 = vmatprep.subr.mxu0 0.0
        %2186 = vmatpush1.xpose.msra.mxu0 %v2183
        %2187 = vmatprep.subr.mxu0 0.0
        %2188 = vmatpush1.xpose.msra.mxu0 0.0
        %2189 = vmatprep.subr.mxu0 0.0
        %2190 = vmatpush1.xpose.msra.mxu0 0.0
        %2191 = vmatprep.subr.mxu0 0.0
        %2192 = vmatpush1.xpose.msra.mxu0 0.0
        %2193 = vmatprep.subr.mxu0 0.0
        %2194 = vmatpush1.xpose.msra.mxu0 0.0
        %2195 = vmatprep.subr.mxu0 0.0
        %2196 = vmatpush1.xpose.msra.mxu0 0.0
        %2197 = vmatprep.subr.mxu0 0.0
        %2198 = vmatpush1.xpose.msra.mxu0 0.0
        %2199 = vmatprep.subr.mxu0 0.0
        %2200 = vmatpush1.xpose.msra.mxu0 0.0
        %2201 = vmatprep.subr.mxu0 0.0
        %2202 = vmatpush1.xpose.msra.mxu0 0.0
        %2203 = vmatprep.subr.mxu0 0.0
        %2204 = vmatpush1.xpose.msra.mxu0 0.0
        %2205 = vmatprep.subr.mxu0 0.0
        %2206 = vmatpush1.xpose.msra.mxu0 0.0
        %2207 = vmatprep.subr.mxu0 0.0
        %2208 = vmatpush1.xpose.msra.mxu0 0.0
        %2209 = vmatprep.subr.mxu0 0.0
        %2210 = vmatpush1.xpose.msra.mxu0 0.0
        %2211 = vmatprep.subr.mxu0 0.0
        %2212 = vmatpush1.xpose.msra.mxu0 0.0
        %2213 = vmatprep.subr.mxu0 0.0
        %2214 = vmatpush1.xpose.msra.mxu0 0.0
        %2215 = vmatprep.subr.mxu0 0.0
        %2216 = vmatpush1.xpose.msra.mxu0 0.0
        %2217 = vmatprep.subr.mxu0 0.0
        %2218 = vmatpush1.xpose.msra.mxu0 0.0
        %2219 = vmatprep.subr.mxu0 0.0
        %2220 = vmatpush1.xpose.msra.mxu0 0.0
        %2221 = vmatprep.subr.mxu0 0.0
        %2222 = vmatpush1.xpose.msra.mxu0 0.0
        %2223 = vmatprep.subr.mxu0 0.0
        %2224 = vmatpush1.xpose.msra.mxu0 0.0
        %2225 = vmatprep.subr.mxu0 0.0
        %2226 = vmatpush1.xpose.msra.mxu0 0.0
        %2227 = vmatprep.subr.mxu0 0.0
        %2228 = vmatpush1.xpose.msra.mxu0 0.0
        %2229 = vmatprep.subr.mxu0 0.0
        %2230 = vmatpush1.xpose.msra.mxu0 0.0
        %2231 = vmatprep.subr.mxu0 0.0
        %2232 = vmatpush1.xpose.msra.mxu0 0.0
        %2233 = vmatprep.subr.mxu0 0.0
        %2234 = vmatpush1.xpose.msra.mxu0 0.0
        %2235 = vmatprep.subr.mxu0 0.0
        %2236 = vmatpush1.xpose.msra.mxu0 0.0
        %2237 = vmatprep.subr.mxu0 0.0
        %2238 = vmatpush1.xpose.msra.mxu0 0.0
        %2239 = vmatprep.subr.mxu0 0.0
        %2240 = vmatpush1.xpose.msra.mxu0 0.0
        %2241 = vmatprep.subr.mxu0 0.0
        %2242 = vmatpush1.xpose.msra.mxu0 0.0
        %2243 = vmatprep.subr.mxu0 0.0
        %2244 = vmatpush1.xpose.msra.mxu0 0.0
        %2245 = vmatprep.subr.mxu0 0.0
        %2246 = vmatpush1.xpose.msra.mxu0 0.0
        %2247 = vmatprep.subr.mxu0 0.0
        %2248 = vmatpush1.xpose.msra.mxu0 0.0
        %2249 = vmatprep.mubr.f32.mxu0 0.0
        %2250 = vmatmul.mubr.f32.gmra.mrb[0].mxu0 %v2181
        %v2251 = vpop.f32.mrb[0].mxu0
        %v2252 = vadd.f32 0.0, %v2251
        %v2253 = vpop.f32.mrb[0].mxu0
        %2254 = vdwg.mxu0
        %v2255 = vsel %vm427, %v2018, -inf
        %2256 = vmax.xlane.f32.xlu0 %v2255
        %v2257 = vpop.xlane.xlu0 %2256
        %v2258 = vsel %vm427, %v2096, -inf
        %2259 = vmax.xlane.f32.xlu0 %v2258
        %v2260 = vpop.xlane.xlu0 %2259
        %v2261 = vsel %vm427, %v2174, -inf
        %2262 = vmax.xlane.f32.xlu0 %v2261
        %v2263 = vpop.xlane.xlu0 %2262
        %v2264 = vsel %vm427, %v2252, -inf
        %2265 = vmax.xlane.f32.xlu0 %v2264
        %v2266 = vpop.xlane.xlu0 %2265
        %v2267 = vsub.f32 %v2018, %v2257
        %v2268 = vsub.f32 %v2096, %v2260
        %v2269 = vsub.f32 %v2174, %v2263
        %v2270 = vsub.f32 %v2252, %v2266
        %v2271 = vmul.f32 %v2267, 1.442695
        %v2272 = vpow.pop %v2271
        %v2273 = vmul.f32 %v2268, 1.442695
        %v2274 = vpow.pop %v2273
        %v2275 = vmul.f32 %v2269, 1.442695
        %v2276 = vpow.pop %v2275
        %v2277 = vmul.f32 %v2270, 1.442695
        %v2278 = vpow.pop %v2277
        %v2279 = vsel %vm427, %v2272, 0.0
        %2280 = vadd.xlane.f32.xlu0 %v2279
        %v2281 = vpop.xlane.xlu0 %2280
        %v2282 = vsel %vm427, %v2274, 0.0
        %2283 = vadd.xlane.f32.xlu0 %v2282
        %v2284 = vpop.xlane.xlu0 %2283
        %v2285 = vsel %vm427, %v2276, 0.0
        %2286 = vadd.xlane.f32.xlu0 %v2285
        %v2287 = vpop.xlane.xlu0 %2286
        %v2288 = vsel %vm427, %v2278, 0.0
        %2289 = vadd.xlane.f32.xlu0 %v2288
        %v2290 = vpop.xlane.xlu0 %2289
        %v2291 = vrcp.pop %v2281
        %v2292 = vrcp.pop %v2284
        %v2293 = vrcp.pop %v2287
        %v2294 = vrcp.pop %v2290
        %v2295 = vmul.f32 %v2272, %v2291
        %v2296 = vmul.f32 %v2274, %v2292
        %v2297 = vmul.f32 %v2276, %v2293
        %v2298 = vmul.f32 %v2278, %v2294
        %2299 = vrot.lane.b32.xlu0 %v394, 48
        %v2300 = vpop.permute.xlu0 %2299
        %v2303 = vsel %vm427, %v2295, 0
        %2305 = vmatprep.subr.mxu0 0.0
        %2306 = vmatpush1.msra.mxu0 %v2300
        %2307 = vmatprep.subr.mxu0 0.0
        %2308 = vmatpush1.msra.mxu0 0.0
        %2309 = vmatprep.subr.mxu0 0.0
        %2310 = vmatpush1.msra.mxu0 0.0
        %2311 = vmatprep.subr.mxu0 0.0
        %2312 = vmatpush1.msra.mxu0 0.0
        %2313 = vmatprep.subr.mxu0 0.0
        %2314 = vmatpush1.msra.mxu0 0.0
        %2315 = vmatprep.subr.mxu0 0.0
        %2316 = vmatpush1.msra.mxu0 0.0
        %2317 = vmatprep.subr.mxu0 0.0
        %2318 = vmatpush1.msra.mxu0 0.0
        %2319 = vmatprep.subr.mxu0 0.0
        %2320 = vmatpush1.msra.mxu0 0.0
        %2321 = vmatprep.subr.mxu0 0.0
        %2322 = vmatpush1.msra.mxu0 0.0
        %2323 = vmatprep.subr.mxu0 0.0
        %2324 = vmatpush1.msra.mxu0 0.0
        %2325 = vmatprep.subr.mxu0 0.0
        %2326 = vmatpush1.msra.mxu0 0.0
        %2327 = vmatprep.subr.mxu0 0.0
        %2328 = vmatpush1.msra.mxu0 0.0
        %2329 = vmatprep.subr.mxu0 0.0
        %2330 = vmatpush1.msra.mxu0 0.0
        %2331 = vmatprep.subr.mxu0 0.0
        %2332 = vmatpush1.msra.mxu0 0.0
        %2333 = vmatprep.subr.mxu0 0.0
        %2334 = vmatpush1.msra.mxu0 0.0
        %2335 = vmatprep.subr.mxu0 0.0
        %2336 = vmatpush1.msra.mxu0 0.0
        %2337 = vmatprep.subr.mxu0 0.0
        %2338 = vmatpush1.msra.mxu0 0.0
        %2339 = vmatprep.subr.mxu0 0.0
        %2340 = vmatpush1.msra.mxu0 0.0
        %2341 = vmatprep.subr.mxu0 0.0
        %2342 = vmatpush1.msra.mxu0 0.0
        %2343 = vmatprep.subr.mxu0 0.0
        %2344 = vmatpush1.msra.mxu0 0.0
        %2345 = vmatprep.subr.mxu0 0.0
        %2346 = vmatpush1.msra.mxu0 0.0
        %2347 = vmatprep.subr.mxu0 0.0
        %2348 = vmatpush1.msra.mxu0 0.0
        %2349 = vmatprep.subr.mxu0 0.0
        %2350 = vmatpush1.msra.mxu0 0.0
        %2351 = vmatprep.subr.mxu0 0.0
        %2352 = vmatpush1.msra.mxu0 0.0
        %2353 = vmatprep.subr.mxu0 0.0
        %2354 = vmatpush1.msra.mxu0 0.0
        %2355 = vmatprep.subr.mxu0 0.0
        %2356 = vmatpush1.msra.mxu0 0.0
        %2357 = vmatprep.subr.mxu0 0.0
        %2358 = vmatpush1.msra.mxu0 0.0
        %2359 = vmatprep.subr.mxu0 0.0
        %2360 = vmatpush1.msra.mxu0 0.0
        %2361 = vmatprep.subr.mxu0 0.0
        %2362 = vmatpush1.msra.mxu0 0.0
        %2363 = vmatprep.subr.mxu0 0.0
        %2364 = vmatpush1.msra.mxu0 0.0
        %2365 = vmatprep.subr.mxu0 0.0
        %2366 = vmatpush1.msra.mxu0 0.0
        %2367 = vmatprep.subr.mxu0 0.0
        %2368 = vmatpush1.msra.mxu0 0.0
        %2369 = vmatprep.mubr.f32.mxu0 0.0
        %2370 = vmatmul.mubr.f32.gmra.mrb[0].mxu0 %v2303
        %v2371 = vpop.f32.mrb[0].mxu0
        %v2372 = vadd.f32 0.0, %v2371
        %v2373 = vpop.f32.mrb[0].mxu0
        %2374 = vdwg.mxu0
        %2375 = vrot.lane.b32.xlu0 %v399, 48
        %v2376 = vpop.permute.xlu0 %2375
        %v2379 = vsel %vm427, %v2296, 0
        %2381 = vmatprep.subr.mxu0 0.0
        %2382 = vmatpush1.msra.mxu0 %v2376
        %2383 = vmatprep.subr.mxu0 0.0
        %2384 = vmatpush1.msra.mxu0 0.0
        %2385 = vmatprep.subr.mxu0 0.0
        %2386 = vmatpush1.msra.mxu0 0.0
        %2387 = vmatprep.subr.mxu0 0.0
        %2388 = vmatpush1.msra.mxu0 0.0
        %2389 = vmatprep.subr.mxu0 0.0
        %2390 = vmatpush1.msra.mxu0 0.0
        %2391 = vmatprep.subr.mxu0 0.0
        %2392 = vmatpush1.msra.mxu0 0.0
        %2393 = vmatprep.subr.mxu0 0.0
        %2394 = vmatpush1.msra.mxu0 0.0
        %2395 = vmatprep.subr.mxu0 0.0
        %2396 = vmatpush1.msra.mxu0 0.0
        %2397 = vmatprep.subr.mxu0 0.0
        %2398 = vmatpush1.msra.mxu0 0.0
        %2399 = vmatprep.subr.mxu0 0.0
        %2400 = vmatpush1.msra.mxu0 0.0
        %2401 = vmatprep.subr.mxu0 0.0
        %2402 = vmatpush1.msra.mxu0 0.0
        %2403 = vmatprep.subr.mxu0 0.0
        %2404 = vmatpush1.msra.mxu0 0.0
        %2405 = vmatprep.subr.mxu0 0.0
        %2406 = vmatpush1.msra.mxu0 0.0
        %2407 = vmatprep.subr.mxu0 0.0
        %2408 = vmatpush1.msra.mxu0 0.0
        %2409 = vmatprep.subr.mxu0 0.0
        %2410 = vmatpush1.msra.mxu0 0.0
        %2411 = vmatprep.subr.mxu0 0.0
        %2412 = vmatpush1.msra.mxu0 0.0
        %2413 = vmatprep.subr.mxu0 0.0
        %2414 = vmatpush1.msra.mxu0 0.0
        %2415 = vmatprep.subr.mxu0 0.0
        %2416 = vmatpush1.msra.mxu0 0.0
        %2417 = vmatprep.subr.mxu0 0.0
        %2418 = vmatpush1.msra.mxu0 0.0
        %2419 = vmatprep.subr.mxu0 0.0
        %2420 = vmatpush1.msra.mxu0 0.0
        %2421 = vmatprep.subr.mxu0 0.0
        %2422 = vmatpush1.msra.mxu0 0.0
        %2423 = vmatprep.subr.mxu0 0.0
        %2424 = vmatpush1.msra.mxu0 0.0
        %2425 = vmatprep.subr.mxu0 0.0
        %2426 = vmatpush1.msra.mxu0 0.0
        %2427 = vmatprep.subr.mxu0 0.0
        %2428 = vmatpush1.msra.mxu0 0.0
        %2429 = vmatprep.subr.mxu0 0.0
        %2430 = vmatpush1.msra.mxu0 0.0
        %2431 = vmatprep.subr.mxu0 0.0
        %2432 = vmatpush1.msra.mxu0 0.0
        %2433 = vmatprep.subr.mxu0 0.0
        %2434 = vmatpush1.msra.mxu0 0.0
        %2435 = vmatprep.subr.mxu0 0.0
        %2436 = vmatpush1.msra.mxu0 0.0
        %2437 = vmatprep.subr.mxu0 0.0
        %2438 = vmatpush1.msra.mxu0 0.0
        %2439 = vmatprep.subr.mxu0 0.0
        %2440 = vmatpush1.msra.mxu0 0.0
        %2441 = vmatprep.subr.mxu0 0.0
        %2442 = vmatpush1.msra.mxu0 0.0
        %2443 = vmatprep.subr.mxu0 0.0
        %2444 = vmatpush1.msra.mxu0 0.0
        %2445 = vmatprep.mubr.f32.mxu0 0.0
        %2446 = vmatmul.mubr.f32.gmra.mrb[0].mxu0 %v2379
        %v2447 = vpop.f32.mrb[0].mxu0
        %v2448 = vadd.f32 0.0, %v2447
        %v2449 = vpop.f32.mrb[0].mxu0
        %2450 = vdwg.mxu0
        %2451 = vrot.lane.b32.xlu0 %v404, 48
        %v2452 = vpop.permute.xlu0 %2451
        %v2455 = vsel %vm427, %v2297, 0
        %2457 = vmatprep.subr.mxu0 0.0
        %2458 = vmatpush1.msra.mxu0 %v2452
        %2459 = vmatprep.subr.mxu0 0.0
        %2460 = vmatpush1.msra.mxu0 0.0
        %2461 = vmatprep.subr.mxu0 0.0
        %2462 = vmatpush1.msra.mxu0 0.0
        %2463 = vmatprep.subr.mxu0 0.0
        %2464 = vmatpush1.msra.mxu0 0.0
        %2465 = vmatprep.subr.mxu0 0.0
        %2466 = vmatpush1.msra.mxu0 0.0
        %2467 = vmatprep.subr.mxu0 0.0
        %2468 = vmatpush1.msra.mxu0 0.0
        %2469 = vmatprep.subr.mxu0 0.0
        %2470 = vmatpush1.msra.mxu0 0.0
        %2471 = vmatprep.subr.mxu0 0.0
        %2472 = vmatpush1.msra.mxu0 0.0
        %2473 = vmatprep.subr.mxu0 0.0
        %2474 = vmatpush1.msra.mxu0 0.0
        %2475 = vmatprep.subr.mxu0 0.0
        %2476 = vmatpush1.msra.mxu0 0.0
        %2477 = vmatprep.subr.mxu0 0.0
        %2478 = vmatpush1.msra.mxu0 0.0
        %2479 = vmatprep.subr.mxu0 0.0
        %2480 = vmatpush1.msra.mxu0 0.0
        %2481 = vmatprep.subr.mxu0 0.0
        %2482 = vmatpush1.msra.mxu0 0.0
        %2483 = vmatprep.subr.mxu0 0.0
        %2484 = vmatpush1.msra.mxu0 0.0
        %2485 = vmatprep.subr.mxu0 0.0
        %2486 = vmatpush1.msra.mxu0 0.0
        %2487 = vmatprep.subr.mxu0 0.0
        %2488 = vmatpush1.msra.mxu0 0.0
        %2489 = vmatprep.subr.mxu0 0.0
        %2490 = vmatpush1.msra.mxu0 0.0
        %2491 = vmatprep.subr.mxu0 0.0
        %2492 = vmatpush1.msra.mxu0 0.0
        %2493 = vmatprep.subr.mxu0 0.0
        %2494 = vmatpush1.msra.mxu0 0.0
        %2495 = vmatprep.subr.mxu0 0.0
        %2496 = vmatpush1.msra.mxu0 0.0
        %2497 = vmatprep.subr.mxu0 0.0
        %2498 = vmatpush1.msra.mxu0 0.0
        %2499 = vmatprep.subr.mxu0 0.0
        %2500 = vmatpush1.msra.mxu0 0.0
        %2501 = vmatprep.subr.mxu0 0.0
        %2502 = vmatpush1.msra.mxu0 0.0
        %2503 = vmatprep.subr.mxu0 0.0
        %2504 = vmatpush1.msra.mxu0 0.0
        %2505 = vmatprep.subr.mxu0 0.0
        %2506 = vmatpush1.msra.mxu0 0.0
        %2507 = vmatprep.subr.mxu0 0.0
        %2508 = vmatpush1.msra.mxu0 0.0
        %2509 = vmatprep.subr.mxu0 0.0
        %2510 = vmatpush1.msra.mxu0 0.0
        %2511 = vmatprep.subr.mxu0 0.0
        %2512 = vmatpush1.msra.mxu0 0.0
        %2513 = vmatprep.subr.mxu0 0.0
        %2514 = vmatpush1.msra.mxu0 0.0
        %2515 = vmatprep.subr.mxu0 0.0
        %2516 = vmatpush1.msra.mxu0 0.0
        %2517 = vmatprep.subr.mxu0 0.0
        %2518 = vmatpush1.msra.mxu0 0.0
        %2519 = vmatprep.subr.mxu0 0.0
        %2520 = vmatpush1.msra.mxu0 0.0
        %2521 = vmatprep.mubr.f32.mxu0 0.0
        %2522 = vmatmul.mubr.f32.gmra.mrb[0].mxu0 %v2455
        %v2523 = vpop.f32.mrb[0].mxu0
        %v2524 = vadd.f32 0.0, %v2523
        %v2525 = vpop.f32.mrb[0].mxu0
        %2526 = vdwg.mxu0
        %2527 = vrot.lane.b32.xlu0 %v409, 48
        %v2528 = vpop.permute.xlu0 %2527
        %v2531 = vsel %vm427, %v2298, 0
        %2533 = vmatprep.subr.mxu0 0.0
        %2534 = vmatpush1.msra.mxu0 %v2528
        %2535 = vmatprep.subr.mxu0 0.0
        %2536 = vmatpush1.msra.mxu0 0.0
        %2537 = vmatprep.subr.mxu0 0.0
        %2538 = vmatpush1.msra.mxu0 0.0
        %2539 = vmatprep.subr.mxu0 0.0
        %2540 = vmatpush1.msra.mxu0 0.0
        %2541 = vmatprep.subr.mxu0 0.0
        %2542 = vmatpush1.msra.mxu0 0.0
        %2543 = vmatprep.subr.mxu0 0.0
        %2544 = vmatpush1.msra.mxu0 0.0
        %2545 = vmatprep.subr.mxu0 0.0
        %2546 = vmatpush1.msra.mxu0 0.0
        %2547 = vmatprep.subr.mxu0 0.0
        %2548 = vmatpush1.msra.mxu0 0.0
        %2549 = vmatprep.subr.mxu0 0.0
        %2550 = vmatpush1.msra.mxu0 0.0
        %2551 = vmatprep.subr.mxu0 0.0
        %2552 = vmatpush1.msra.mxu0 0.0
        %2553 = vmatprep.subr.mxu0 0.0
        %2554 = vmatpush1.msra.mxu0 0.0
        %2555 = vmatprep.subr.mxu0 0.0
        %2556 = vmatpush1.msra.mxu0 0.0
        %2557 = vmatprep.subr.mxu0 0.0
        %2558 = vmatpush1.msra.mxu0 0.0
        %2559 = vmatprep.subr.mxu0 0.0
        %2560 = vmatpush1.msra.mxu0 0.0
        %2561 = vmatprep.subr.mxu0 0.0
        %2562 = vmatpush1.msra.mxu0 0.0
        %2563 = vmatprep.subr.mxu0 0.0
        %2564 = vmatpush1.msra.mxu0 0.0
        %2565 = vmatprep.subr.mxu0 0.0
        %2566 = vmatpush1.msra.mxu0 0.0
        %2567 = vmatprep.subr.mxu0 0.0
        %2568 = vmatpush1.msra.mxu0 0.0
        %2569 = vmatprep.subr.mxu0 0.0
        %2570 = vmatpush1.msra.mxu0 0.0
        %2571 = vmatprep.subr.mxu0 0.0
        %2572 = vmatpush1.msra.mxu0 0.0
        %2573 = vmatprep.subr.mxu0 0.0
        %2574 = vmatpush1.msra.mxu0 0.0
        %2575 = vmatprep.subr.mxu0 0.0
        %2576 = vmatpush1.msra.mxu0 0.0
        %2577 = vmatprep.subr.mxu0 0.0
        %2578 = vmatpush1.msra.mxu0 0.0
        %2579 = vmatprep.subr.mxu0 0.0
        %2580 = vmatpush1.msra.mxu0 0.0
        %2581 = vmatprep.subr.mxu0 0.0
        %2582 = vmatpush1.msra.mxu0 0.0
        %2583 = vmatprep.subr.mxu0 0.0
        %2584 = vmatpush1.msra.mxu0 0.0
        %2585 = vmatprep.subr.mxu0 0.0
        %2586 = vmatpush1.msra.mxu0 0.0
        %2587 = vmatprep.subr.mxu0 0.0
        %2588 = vmatpush1.msra.mxu0 0.0
        %2589 = vmatprep.subr.mxu0 0.0
        %2590 = vmatpush1.msra.mxu0 0.0
        %2591 = vmatprep.subr.mxu0 0.0
        %2592 = vmatpush1.msra.mxu0 0.0
        %2593 = vmatprep.subr.mxu0 0.0
        %2594 = vmatpush1.msra.mxu0 0.0
        %2595 = vmatprep.subr.mxu0 0.0
        %2596 = vmatpush1.msra.mxu0 0.0
        %2597 = vmatprep.mubr.f32.mxu0 0.0
        %2598 = vmatmul.mubr.f32.gmra.mrb[0].mxu0 %v2531
        %v2599 = vpop.f32.mrb[0].mxu0
        %v2600 = vadd.f32 0.0, %v2599
        %v2601 = vpop.f32.mrb[0].mxu0
        %2602 = vdwg.mxu0
        %v2604 = vsel %vm427, %v2372, 0
        %v2607 = vsel %vm427, %v2448, 0
        %v2610 = vsel %vm427, %v2524, 0
        %v2613 = vsel %vm427, %v2600, 0
        %2615 = vmatprep.subr.mxu0 0.0
        %2616 = vmatpush1.msra.mxu0 %v414
        %2617 = vmatprep.subr.mxu0 0.0
        %2618 = vmatpush1.msra.mxu0 0.0
        %2619 = vmatprep.subr.mxu0 0.0
        %2620 = vmatpush1.msra.mxu0 0.0
        %2621 = vmatprep.subr.mxu0 0.0
        %2622 = vmatpush1.msra.mxu0 0.0
        %2623 = vmatprep.subr.mxu0 0.0
        %2624 = vmatpush1.msra.mxu0 0.0
        %2625 = vmatprep.subr.mxu0 0.0
        %2626 = vmatpush1.msra.mxu0 0.0
        %2627 = vmatprep.subr.mxu0 0.0
        %2628 = vmatpush1.msra.mxu0 0.0
        %2629 = vmatprep.subr.mxu0 0.0
        %2630 = vmatpush1.msra.mxu0 0.0
        %2631 = vmatprep.subr.mxu0 0.0
        %2632 = vmatpush1.msra.mxu0 0.0
        %2633 = vmatprep.subr.mxu0 0.0
        %2634 = vmatpush1.msra.mxu0 0.0
        %2635 = vmatprep.subr.mxu0 0.0
        %2636 = vmatpush1.msra.mxu0 0.0
        %2637 = vmatprep.subr.mxu0 0.0
        %2638 = vmatpush1.msra.mxu0 0.0
        %2639 = vmatprep.subr.mxu0 0.0
        %2640 = vmatpush1.msra.mxu0 0.0
        %2641 = vmatprep.subr.mxu0 0.0
        %2642 = vmatpush1.msra.mxu0 0.0
        %2643 = vmatprep.subr.mxu0 0.0
        %2644 = vmatpush1.msra.mxu0 0.0
        %2645 = vmatprep.subr.mxu0 0.0
        %2646 = vmatpush1.msra.mxu0 0.0
        %2647 = vmatprep.subr.mxu0 0.0
        %2648 = vmatpush1.msra.mxu0 0.0
        %2649 = vmatprep.subr.mxu0 0.0
        %2650 = vmatpush1.msra.mxu0 0.0
        %2651 = vmatprep.subr.mxu0 0.0
        %2652 = vmatpush1.msra.mxu0 0.0
        %2653 = vmatprep.subr.mxu0 0.0
        %2654 = vmatpush1.msra.mxu0 0.0
        %2655 = vmatprep.subr.mxu0 0.0
        %2656 = vmatpush1.msra.mxu0 0.0
        %2657 = vmatprep.subr.mxu0 0.0
        %2658 = vmatpush1.msra.mxu0 0.0
        %2659 = vmatprep.subr.mxu0 0.0
        %2660 = vmatpush1.msra.mxu0 0.0
        %2661 = vmatprep.subr.mxu0 0.0
        %2662 = vmatpush1.msra.mxu0 0.0
        %2663 = vmatprep.subr.mxu0 0.0
        %2664 = vmatpush1.msra.mxu0 0.0
        %2665 = vmatprep.subr.mxu0 0.0
        %2666 = vmatpush1.msra.mxu0 0.0
        %2667 = vmatprep.subr.mxu0 0.0
        %2668 = vmatpush1.msra.mxu0 0.0
        %2669 = vmatprep.subr.mxu0 0.0
        %2670 = vmatpush1.msra.mxu0 0.0
        %2671 = vmatprep.subr.mxu0 0.0
        %2672 = vmatpush1.msra.mxu0 0.0
        %2673 = vmatprep.subr.mxu0 0.0
        %2674 = vmatpush1.msra.mxu0 0.0
        %2675 = vmatprep.subr.mxu0 0.0
        %2676 = vmatpush1.msra.mxu0 0.0
        %2677 = vmatprep.subr.mxu0 0.0
        %2678 = vmatpush1.msra.mxu0 0.0
        %2679 = vmatprep.mubr.f32.mxu0 0.0
        %2680 = vmatmul.mubr.f32.gmra.mrb[0].mxu0 %v2604
        %v2681 = vpop.f32.mrb[0].mxu0
        %v2682 = vadd.f32 0.0, %v2681
        %v2683 = vpop.f32.mrb[0].mxu0
        %2684 = vmatprep.mubr.f32.mxu0 0.0
        %2685 = vmatmul.mubr.f32.gmra.mrb[0].mxu0 %v2607
        %v2686 = vpop.f32.mrb[0].mxu0
        %v2687 = vadd.f32 0.0, %v2686
        %v2688 = vpop.f32.mrb[0].mxu0
        %2689 = vmatprep.mubr.f32.mxu0 0.0
        %2690 = vmatmul.mubr.f32.gmra.mrb[0].mxu0 %v2610
        %v2691 = vpop.f32.mrb[0].mxu0
        %v2692 = vadd.f32 0.0, %v2691
        %v2693 = vpop.f32.mrb[0].mxu0
        %2694 = vmatprep.mubr.f32.mxu0 0.0
        %2695 = vmatmul.mubr.f32.gmra.mrb[0].mxu0 %v2613
        %v2696 = vpop.f32.mrb[0].mxu0
        %v2697 = vadd.f32 0.0, %v2696
        %v2698 = vpop.f32.mrb[0].mxu0
        %2699 = vdwg.mxu0
        %v2700 = vadd.f32 %v1939, %v2682
        %v2701 = vadd.f32 %v1940, %v2687
        %v2702 = vadd.f32 %v1941, %v2692
        %v2703 = vadd.f32 %v1942, %v2697
        %2704 = vrot.lane.b32.xlu0 %v394, 104
        %v2705 = vpop.permute.xlu0 %2704
        %2706 = vrot.lane.b32.xlu0 %v394, 72
        %v2707 = vpop.permute.xlu0 %2706
        %v2708 = vsel %vm427, %v2705, 0
        %v2710 = vsel %vm427, %v2707, 0
        %2712 = vmatprep.subr.mxu0 0.0
        %2713 = vmatpush1.xpose.msra.mxu0 %v2710
        %2714 = vmatprep.subr.mxu0 0.0
        %2715 = vmatpush1.xpose.msra.mxu0 0.0
        %2716 = vmatprep.subr.mxu0 0.0
        %2717 = vmatpush1.xpose.msra.mxu0 0.0
        %2718 = vmatprep.subr.mxu0 0.0
        %2719 = vmatpush1.xpose.msra.mxu0 0.0
        %2720 = vmatprep.subr.mxu0 0.0
        %2721 = vmatpush1.xpose.msra.mxu0 0.0
        %2722 = vmatprep.subr.mxu0 0.0
        %2723 = vmatpush1.xpose.msra.mxu0 0.0
        %2724 = vmatprep.subr.mxu0 0.0
        %2725 = vmatpush1.xpose.msra.mxu0 0.0
        %2726 = vmatprep.subr.mxu0 0.0
        %2727 = vmatpush1.xpose.msra.mxu0 0.0
        %2728 = vmatprep.subr.mxu0 0.0
        %2729 = vmatpush1.xpose.msra.mxu0 0.0
        %2730 = vmatprep.subr.mxu0 0.0
        %2731 = vmatpush1.xpose.msra.mxu0 0.0
        %2732 = vmatprep.subr.mxu0 0.0
        %2733 = vmatpush1.xpose.msra.mxu0 0.0
        %2734 = vmatprep.subr.mxu0 0.0
        %2735 = vmatpush1.xpose.msra.mxu0 0.0
        %2736 = vmatprep.subr.mxu0 0.0
        %2737 = vmatpush1.xpose.msra.mxu0 0.0
        %2738 = vmatprep.subr.mxu0 0.0
        %2739 = vmatpush1.xpose.msra.mxu0 0.0
        %2740 = vmatprep.subr.mxu0 0.0
        %2741 = vmatpush1.xpose.msra.mxu0 0.0
        %2742 = vmatprep.subr.mxu0 0.0
        %2743 = vmatpush1.xpose.msra.mxu0 0.0
        %2744 = vmatprep.subr.mxu0 0.0
        %2745 = vmatpush1.xpose.msra.mxu0 0.0
        %2746 = vmatprep.subr.mxu0 0.0
        %2747 = vmatpush1.xpose.msra.mxu0 0.0
        %2748 = vmatprep.subr.mxu0 0.0
        %2749 = vmatpush1.xpose.msra.mxu0 0.0
        %2750 = vmatprep.subr.mxu0 0.0
        %2751 = vmatpush1.xpose.msra.mxu0 0.0
        %2752 = vmatprep.subr.mxu0 0.0
        %2753 = vmatpush1.xpose.msra.mxu0 0.0
        %2754 = vmatprep.subr.mxu0 0.0
        %2755 = vmatpush1.xpose.msra.mxu0 0.0
        %2756 = vmatprep.subr.mxu0 0.0
        %2757 = vmatpush1.xpose.msra.mxu0 0.0
        %2758 = vmatprep.subr.mxu0 0.0
        %2759 = vmatpush1.xpose.msra.mxu0 0.0
        %2760 = vmatprep.subr.mxu0 0.0
        %2761 = vmatpush1.xpose.msra.mxu0 0.0
        %2762 = vmatprep.subr.mxu0 0.0
        %2763 = vmatpush1.xpose.msra.mxu0 0.0
        %2764 = vmatprep.subr.mxu0 0.0
        %2765 = vmatpush1.xpose.msra.mxu0 0.0
        %2766 = vmatprep.subr.mxu0 0.0
        %2767 = vmatpush1.xpose.msra.mxu0 0.0
        %2768 = vmatprep.subr.mxu0 0.0
        %2769 = vmatpush1.xpose.msra.mxu0 0.0
        %2770 = vmatprep.subr.mxu0 0.0
        %2771 = vmatpush1.xpose.msra.mxu0 0.0
        %2772 = vmatprep.subr.mxu0 0.0
        %2773 = vmatpush1.xpose.msra.mxu0 0.0
        %2774 = vmatprep.subr.mxu0 0.0
        %2775 = vmatpush1.xpose.msra.mxu0 0.0
        %2776 = vmatprep.mubr.f32.mxu0 0.0
        %2777 = vmatmul.mubr.f32.gmra.mrb[0].mxu0 %v2708
        %v2778 = vpop.f32.mrb[0].mxu0
        %v2779 = vadd.f32 0.0, %v2778
        %v2780 = vpop.f32.mrb[0].mxu0
        %2781 = vdwg.mxu0
        %2782 = vrot.lane.b32.xlu0 %v399, 104
        %v2783 = vpop.permute.xlu0 %2782
        %2784 = vrot.lane.b32.xlu0 %v399, 72
        %v2785 = vpop.permute.xlu0 %2784
        %v2786 = vsel %vm427, %v2783, 0
        %v2788 = vsel %vm427, %v2785, 0
        %2790 = vmatprep.subr.mxu0 0.0
        %2791 = vmatpush1.xpose.msra.mxu0 %v2788
        %2792 = vmatprep.subr.mxu0 0.0
        %2793 = vmatpush1.xpose.msra.mxu0 0.0
        %2794 = vmatprep.subr.mxu0 0.0
        %2795 = vmatpush1.xpose.msra.mxu0 0.0
        %2796 = vmatprep.subr.mxu0 0.0
        %2797 = vmatpush1.xpose.msra.mxu0 0.0
        %2798 = vmatprep.subr.mxu0 0.0
        %2799 = vmatpush1.xpose.msra.mxu0 0.0
        %2800 = vmatprep.subr.mxu0 0.0
        %2801 = vmatpush1.xpose.msra.mxu0 0.0
        %2802 = vmatprep.subr.mxu0 0.0
        %2803 = vmatpush1.xpose.msra.mxu0 0.0
        %2804 = vmatprep.subr.mxu0 0.0
        %2805 = vmatpush1.xpose.msra.mxu0 0.0
        %2806 = vmatprep.subr.mxu0 0.0
        %2807 = vmatpush1.xpose.msra.mxu0 0.0
        %2808 = vmatprep.subr.mxu0 0.0
        %2809 = vmatpush1.xpose.msra.mxu0 0.0
        %2810 = vmatprep.subr.mxu0 0.0
        %2811 = vmatpush1.xpose.msra.mxu0 0.0
        %2812 = vmatprep.subr.mxu0 0.0
        %2813 = vmatpush1.xpose.msra.mxu0 0.0
        %2814 = vmatprep.subr.mxu0 0.0
        %2815 = vmatpush1.xpose.msra.mxu0 0.0
        %2816 = vmatprep.subr.mxu0 0.0
        %2817 = vmatpush1.xpose.msra.mxu0 0.0
        %2818 = vmatprep.subr.mxu0 0.0
        %2819 = vmatpush1.xpose.msra.mxu0 0.0
        %2820 = vmatprep.subr.mxu0 0.0
        %2821 = vmatpush1.xpose.msra.mxu0 0.0
        %2822 = vmatprep.subr.mxu0 0.0
        %2823 = vmatpush1.xpose.msra.mxu0 0.0
        %2824 = vmatprep.subr.mxu0 0.0
        %2825 = vmatpush1.xpose.msra.mxu0 0.0
        %2826 = vmatprep.subr.mxu0 0.0
        %2827 = vmatpush1.xpose.msra.mxu0 0.0
        %2828 = vmatprep.subr.mxu0 0.0
        %2829 = vmatpush1.xpose.msra.mxu0 0.0
        %2830 = vmatprep.subr.mxu0 0.0
        %2831 = vmatpush1.xpose.msra.mxu0 0.0
        %2832 = vmatprep.subr.mxu0 0.0
        %2833 = vmatpush1.xpose.msra.mxu0 0.0
        %2834 = vmatprep.subr.mxu0 0.0
        %2835 = vmatpush1.xpose.msra.mxu0 0.0
        %2836 = vmatprep.subr.mxu0 0.0
        %2837 = vmatpush1.xpose.msra.mxu0 0.0
        %2838 = vmatprep.subr.mxu0 0.0
        %2839 = vmatpush1.xpose.msra.mxu0 0.0
        %2840 = vmatprep.subr.mxu0 0.0
        %2841 = vmatpush1.xpose.msra.mxu0 0.0
        %2842 = vmatprep.subr.mxu0 0.0
        %2843 = vmatpush1.xpose.msra.mxu0 0.0
        %2844 = vmatprep.subr.mxu0 0.0
        %2845 = vmatpush1.xpose.msra.mxu0 0.0
        %2846 = vmatprep.subr.mxu0 0.0
        %2847 = vmatpush1.xpose.msra.mxu0 0.0
        %2848 = vmatprep.subr.mxu0 0.0
        %2849 = vmatpush1.xpose.msra.mxu0 0.0
        %2850 = vmatprep.subr.mxu0 0.0
        %2851 = vmatpush1.xpose.msra.mxu0 0.0
        %2852 = vmatprep.subr.mxu0 0.0
        %2853 = vmatpush1.xpose.msra.mxu0 0.0
        %2854 = vmatprep.mubr.f32.mxu0 0.0
        %2855 = vmatmul.mubr.f32.gmra.mrb[0].mxu0 %v2786
        %v2856 = vpop.f32.mrb[0].mxu0
        %v2857 = vadd.f32 0.0, %v2856
        %v2858 = vpop.f32.mrb[0].mxu0
        %2859 = vdwg.mxu0
        %2860 = vrot.lane.b32.xlu0 %v404, 104
        %v2861 = vpop.permute.xlu0 %2860
        %2862 = vrot.lane.b32.xlu0 %v404, 72
        %v2863 = vpop.permute.xlu0 %2862
        %v2864 = vsel %vm427, %v2861, 0
        %v2866 = vsel %vm427, %v2863, 0
        %2868 = vmatprep.subr.mxu0 0.0
        %2869 = vmatpush1.xpose.msra.mxu0 %v2866
        %2870 = vmatprep.subr.mxu0 0.0
        %2871 = vmatpush1.xpose.msra.mxu0 0.0
        %2872 = vmatprep.subr.mxu0 0.0
        %2873 = vmatpush1.xpose.msra.mxu0 0.0
        %2874 = vmatprep.subr.mxu0 0.0
        %2875 = vmatpush1.xpose.msra.mxu0 0.0
        %2876 = vmatprep.subr.mxu0 0.0
        %2877 = vmatpush1.xpose.msra.mxu0 0.0
        %2878 = vmatprep.subr.mxu0 0.0
        %2879 = vmatpush1.xpose.msra.mxu0 0.0
        %2880 = vmatprep.subr.mxu0 0.0
        %2881 = vmatpush1.xpose.msra.mxu0 0.0
        %2882 = vmatprep.subr.mxu0 0.0
        %2883 = vmatpush1.xpose.msra.mxu0 0.0
        %2884 = vmatprep.subr.mxu0 0.0
        %2885 = vmatpush1.xpose.msra.mxu0 0.0
        %2886 = vmatprep.subr.mxu0 0.0
        %2887 = vmatpush1.xpose.msra.mxu0 0.0
        %2888 = vmatprep.subr.mxu0 0.0
        %2889 = vmatpush1.xpose.msra.mxu0 0.0
        %2890 = vmatprep.subr.mxu0 0.0
        %2891 = vmatpush1.xpose.msra.mxu0 0.0
        %2892 = vmatprep.subr.mxu0 0.0
        %2893 = vmatpush1.xpose.msra.mxu0 0.0
        %2894 = vmatprep.subr.mxu0 0.0
        %2895 = vmatpush1.xpose.msra.mxu0 0.0
        %2896 = vmatprep.subr.mxu0 0.0
        %2897 = vmatpush1.xpose.msra.mxu0 0.0
        %2898 = vmatprep.subr.mxu0 0.0
        %2899 = vmatpush1.xpose.msra.mxu0 0.0
        %2900 = vmatprep.subr.mxu0 0.0
        %2901 = vmatpush1.xpose.msra.mxu0 0.0
        %2902 = vmatprep.subr.mxu0 0.0
        %2903 = vmatpush1.xpose.msra.mxu0 0.0
        %2904 = vmatprep.subr.mxu0 0.0
        %2905 = vmatpush1.xpose.msra.mxu0 0.0
        %2906 = vmatprep.subr.mxu0 0.0
        %2907 = vmatpush1.xpose.msra.mxu0 0.0
        %2908 = vmatprep.subr.mxu0 0.0
        %2909 = vmatpush1.xpose.msra.mxu0 0.0
        %2910 = vmatprep.subr.mxu0 0.0
        %2911 = vmatpush1.xpose.msra.mxu0 0.0
        %2912 = vmatprep.subr.mxu0 0.0
        %2913 = vmatpush1.xpose.msra.mxu0 0.0
        %2914 = vmatprep.subr.mxu0 0.0
        %2915 = vmatpush1.xpose.msra.mxu0 0.0
        %2916 = vmatprep.subr.mxu0 0.0
        %2917 = vmatpush1.xpose.msra.mxu0 0.0
        %2918 = vmatprep.subr.mxu0 0.0
        %2919 = vmatpush1.xpose.msra.mxu0 0.0
        %2920 = vmatprep.subr.mxu0 0.0
        %2921 = vmatpush1.xpose.msra.mxu0 0.0
        %2922 = vmatprep.subr.mxu0 0.0
        %2923 = vmatpush1.xpose.msra.mxu0 0.0
        %2924 = vmatprep.subr.mxu0 0.0
        %2925 = vmatpush1.xpose.msra.mxu0 0.0
        %2926 = vmatprep.subr.mxu0 0.0
        %2927 = vmatpush1.xpose.msra.mxu0 0.0
        %2928 = vmatprep.subr.mxu0 0.0
        %2929 = vmatpush1.xpose.msra.mxu0 0.0
        %2930 = vmatprep.subr.mxu0 0.0
        %2931 = vmatpush1.xpose.msra.mxu0 0.0
        %2932 = vmatprep.mubr.f32.mxu0 0.0
        %2933 = vmatmul.mubr.f32.gmra.mrb[0].mxu0 %v2864
        %v2934 = vpop.f32.mrb[0].mxu0
        %v2935 = vadd.f32 0.0, %v2934
        %v2936 = vpop.f32.mrb[0].mxu0
        %2937 = vdwg.mxu0
        %2938 = vrot.lane.b32.xlu0 %v409, 104
        %v2939 = vpop.permute.xlu0 %2938
        %2940 = vrot.lane.b32.xlu0 %v409, 72
        %v2941 = vpop.permute.xlu0 %2940
        %v2942 = vsel %vm427, %v2939, 0
        %v2944 = vsel %vm427, %v2941, 0
        %2946 = vmatprep.subr.mxu0 0.0
        %2947 = vmatpush1.xpose.msra.mxu0 %v2944
        %2948 = vmatprep.subr.mxu0 0.0
        %2949 = vmatpush1.xpose.msra.mxu0 0.0
        %2950 = vmatprep.subr.mxu0 0.0
        %2951 = vmatpush1.xpose.msra.mxu0 0.0
        %2952 = vmatprep.subr.mxu0 0.0
        %2953 = vmatpush1.xpose.msra.mxu0 0.0
        %2954 = vmatprep.subr.mxu0 0.0
        %2955 = vmatpush1.xpose.msra.mxu0 0.0
        %2956 = vmatprep.subr.mxu0 0.0
        %2957 = vmatpush1.xpose.msra.mxu0 0.0
        %2958 = vmatprep.subr.mxu0 0.0
        %2959 = vmatpush1.xpose.msra.mxu0 0.0
        %2960 = vmatprep.subr.mxu0 0.0
        %2961 = vmatpush1.xpose.msra.mxu0 0.0
        %2962 = vmatprep.subr.mxu0 0.0
        %2963 = vmatpush1.xpose.msra.mxu0 0.0
        %2964 = vmatprep.subr.mxu0 0.0
        %2965 = vmatpush1.xpose.msra.mxu0 0.0
        %2966 = vmatprep.subr.mxu0 0.0
        %2967 = vmatpush1.xpose.msra.mxu0 0.0
        %2968 = vmatprep.subr.mxu0 0.0
        %2969 = vmatpush1.xpose.msra.mxu0 0.0
        %2970 = vmatprep.subr.mxu0 0.0
        %2971 = vmatpush1.xpose.msra.mxu0 0.0
        %2972 = vmatprep.subr.mxu0 0.0
        %2973 = vmatpush1.xpose.msra.mxu0 0.0
        %2974 = vmatprep.subr.mxu0 0.0
        %2975 = vmatpush1.xpose.msra.mxu0 0.0
        %2976 = vmatprep.subr.mxu0 0.0
        %2977 = vmatpush1.xpose.msra.mxu0 0.0
        %2978 = vmatprep.subr.mxu0 0.0
        %2979 = vmatpush1.xpose.msra.mxu0 0.0
        %2980 = vmatprep.subr.mxu0 0.0
        %2981 = vmatpush1.xpose.msra.mxu0 0.0
        %2982 = vmatprep.subr.mxu0 0.0
        %2983 = vmatpush1.xpose.msra.mxu0 0.0
        %2984 = vmatprep.subr.mxu0 0.0
        %2985 = vmatpush1.xpose.msra.mxu0 0.0
        %2986 = vmatprep.subr.mxu0 0.0
        %2987 = vmatpush1.xpose.msra.mxu0 0.0
        %2988 = vmatprep.subr.mxu0 0.0
        %2989 = vmatpush1.xpose.msra.mxu0 0.0
        %2990 = vmatprep.subr.mxu0 0.0
        %2991 = vmatpush1.xpose.msra.mxu0 0.0
        %2992 = vmatprep.subr.mxu0 0.0
        %2993 = vmatpush1.xpose.msra.mxu0 0.0
        %2994 = vmatprep.subr.mxu0 0.0
        %2995 = vmatpush1.xpose.msra.mxu0 0.0
        %2996 = vmatprep.subr.mxu0 0.0
        %2997 = vmatpush1.xpose.msra.mxu0 0.0
        %2998 = vmatprep.subr.mxu0 0.0
        %2999 = vmatpush1.xpose.msra.mxu0 0.0
        %3000 = vmatprep.subr.mxu0 0.0
        %3001 = vmatpush1.xpose.msra.mxu0 0.0
        %3002 = vmatprep.subr.mxu0 0.0
        %3003 = vmatpush1.xpose.msra.mxu0 0.0
        %3004 = vmatprep.subr.mxu0 0.0
        %3005 = vmatpush1.xpose.msra.mxu0 0.0
        %3006 = vmatprep.subr.mxu0 0.0
        %3007 = vmatpush1.xpose.msra.mxu0 0.0
        %3008 = vmatprep.subr.mxu0 0.0
        %3009 = vmatpush1.xpose.msra.mxu0 0.0
        %3010 = vmatprep.mubr.f32.mxu0 0.0
        %3011 = vmatmul.mubr.f32.gmra.mrb[0].mxu0 %v2942
        %v3012 = vpop.f32.mrb[0].mxu0
        %v3013 = vadd.f32 0.0, %v3012
        %v3014 = vpop.f32.mrb[0].mxu0
        %3015 = vdwg.mxu0
        %v3016 = vsel %vm427, %v2779, -inf
        %3017 = vmax.xlane.f32.xlu0 %v3016
        %v3018 = vpop.xlane.xlu0 %3017
        %v3019 = vsel %vm427, %v2857, -inf
        %3020 = vmax.xlane.f32.xlu0 %v3019
        %v3021 = vpop.xlane.xlu0 %3020
        %v3022 = vsel %vm427, %v2935, -inf
        %3023 = vmax.xlane.f32.xlu0 %v3022
        %v3024 = vpop.xlane.xlu0 %3023
        %v3025 = vsel %vm427, %v3013, -inf
        %3026 = vmax.xlane.f32.xlu0 %v3025
        %v3027 = vpop.xlane.xlu0 %3026
        %v3028 = vsub.f32 %v2779, %v3018
        %v3029 = vsub.f32 %v2857, %v3021
        %v3030 = vsub.f32 %v2935, %v3024
        %v3031 = vsub.f32 %v3013, %v3027
        %v3032 = vmul.f32 %v3028, 1.442695
        %v3033 = vpow.pop %v3032
        %v3034 = vmul.f32 %v3029, 1.442695
        %v3035 = vpow.pop %v3034
        %v3036 = vmul.f32 %v3030, 1.442695
        %v3037 = vpow.pop %v3036
        %v3038 = vmul.f32 %v3031, 1.442695
        %v3039 = vpow.pop %v3038
        %v3040 = vsel %vm427, %v3033, 0.0
        %3041 = vadd.xlane.f32.xlu0 %v3040
        %v3042 = vpop.xlane.xlu0 %3041
        %v3043 = vsel %vm427, %v3035, 0.0
        %3044 = vadd.xlane.f32.xlu0 %v3043
        %v3045 = vpop.xlane.xlu0 %3044
        %v3046 = vsel %vm427, %v3037, 0.0
        %3047 = vadd.xlane.f32.xlu0 %v3046
        %v3048 = vpop.xlane.xlu0 %3047
        %v3049 = vsel %vm427, %v3039, 0.0
        %3050 = vadd.xlane.f32.xlu0 %v3049
        %v3051 = vpop.xlane.xlu0 %3050
        %v3052 = vrcp.pop %v3042
        %v3053 = vrcp.pop %v3045
        %v3054 = vrcp.pop %v3048
        %v3055 = vrcp.pop %v3051
        %v3056 = vmul.f32 %v3033, %v3052
        %v3057 = vmul.f32 %v3035, %v3053
        %v3058 = vmul.f32 %v3037, %v3054
        %v3059 = vmul.f32 %v3039, %v3055
        %3060 = vrot.lane.b32.xlu0 %v394, 40
        %v3061 = vpop.permute.xlu0 %3060
        %v3064 = vsel %vm427, %v3056, 0
        %3066 = vmatprep.subr.mxu0 0.0
        %3067 = vmatpush1.msra.mxu0 %v3061
        %3068 = vmatprep.subr.mxu0 0.0
        %3069 = vmatpush1.msra.mxu0 0.0
        %3070 = vmatprep.subr.mxu0 0.0
        %3071 = vmatpush1.msra.mxu0 0.0
        %3072 = vmatprep.subr.mxu0 0.0
        %3073 = vmatpush1.msra.mxu0 0.0
        %3074 = vmatprep.subr.mxu0 0.0
        %3075 = vmatpush1.msra.mxu0 0.0
        %3076 = vmatprep.subr.mxu0 0.0
        %3077 = vmatpush1.msra.mxu0 0.0
        %3078 = vmatprep.subr.mxu0 0.0
        %3079 = vmatpush1.msra.mxu0 0.0
        %3080 = vmatprep.subr.mxu0 0.0
        %3081 = vmatpush1.msra.mxu0 0.0
        %3082 = vmatprep.subr.mxu0 0.0
        %3083 = vmatpush1.msra.mxu0 0.0
        %3084 = vmatprep.subr.mxu0 0.0
        %3085 = vmatpush1.msra.mxu0 0.0
        %3086 = vmatprep.subr.mxu0 0.0
        %3087 = vmatpush1.msra.mxu0 0.0
        %3088 = vmatprep.subr.mxu0 0.0
        %3089 = vmatpush1.msra.mxu0 0.0
        %3090 = vmatprep.subr.mxu0 0.0
        %3091 = vmatpush1.msra.mxu0 0.0
        %3092 = vmatprep.subr.mxu0 0.0
        %3093 = vmatpush1.msra.mxu0 0.0
        %3094 = vmatprep.subr.mxu0 0.0
        %3095 = vmatpush1.msra.mxu0 0.0
        %3096 = vmatprep.subr.mxu0 0.0
        %3097 = vmatpush1.msra.mxu0 0.0
        %3098 = vmatprep.subr.mxu0 0.0
        %3099 = vmatpush1.msra.mxu0 0.0
        %3100 = vmatprep.subr.mxu0 0.0
        %3101 = vmatpush1.msra.mxu0 0.0
        %3102 = vmatprep.subr.mxu0 0.0
        %3103 = vmatpush1.msra.mxu0 0.0
        %3104 = vmatprep.subr.mxu0 0.0
        %3105 = vmatpush1.msra.mxu0 0.0
        %3106 = vmatprep.subr.mxu0 0.0
        %3107 = vmatpush1.msra.mxu0 0.0
        %3108 = vmatprep.subr.mxu0 0.0
        %3109 = vmatpush1.msra.mxu0 0.0
        %3110 = vmatprep.subr.mxu0 0.0
        %3111 = vmatpush1.msra.mxu0 0.0
        %3112 = vmatprep.subr.mxu0 0.0
        %3113 = vmatpush1.msra.mxu0 0.0
        %3114 = vmatprep.subr.mxu0 0.0
        %3115 = vmatpush1.msra.mxu0 0.0
        %3116 = vmatprep.subr.mxu0 0.0
        %3117 = vmatpush1.msra.mxu0 0.0
        %3118 = vmatprep.subr.mxu0 0.0
        %3119 = vmatpush1.msra.mxu0 0.0
        %3120 = vmatprep.subr.mxu0 0.0
        %3121 = vmatpush1.msra.mxu0 0.0
        %3122 = vmatprep.subr.mxu0 0.0
        %3123 = vmatpush1.msra.mxu0 0.0
        %3124 = vmatprep.subr.mxu0 0.0
        %3125 = vmatpush1.msra.mxu0 0.0
        %3126 = vmatprep.subr.mxu0 0.0
        %3127 = vmatpush1.msra.mxu0 0.0
        %3128 = vmatprep.subr.mxu0 0.0
        %3129 = vmatpush1.msra.mxu0 0.0
        %3130 = vmatprep.mubr.f32.mxu0 0.0
        %3131 = vmatmul.mubr.f32.gmra.mrb[0].mxu0 %v3064
        %v3132 = vpop.f32.mrb[0].mxu0
        %v3133 = vadd.f32 0.0, %v3132
        %v3134 = vpop.f32.mrb[0].mxu0
        %3135 = vdwg.mxu0
        %3136 = vrot.lane.b32.xlu0 %v399, 40
        %v3137 = vpop.permute.xlu0 %3136
        %v3140 = vsel %vm427, %v3057, 0
        %3142 = vmatprep.subr.mxu0 0.0
        %3143 = vmatpush1.msra.mxu0 %v3137
        %3144 = vmatprep.subr.mxu0 0.0
        %3145 = vmatpush1.msra.mxu0 0.0
        %3146 = vmatprep.subr.mxu0 0.0
        %3147 = vmatpush1.msra.mxu0 0.0
        %3148 = vmatprep.subr.mxu0 0.0
        %3149 = vmatpush1.msra.mxu0 0.0
        %3150 = vmatprep.subr.mxu0 0.0
        %3151 = vmatpush1.msra.mxu0 0.0
        %3152 = vmatprep.subr.mxu0 0.0
        %3153 = vmatpush1.msra.mxu0 0.0
        %3154 = vmatprep.subr.mxu0 0.0
        %3155 = vmatpush1.msra.mxu0 0.0
        %3156 = vmatprep.subr.mxu0 0.0
        %3157 = vmatpush1.msra.mxu0 0.0
        %3158 = vmatprep.subr.mxu0 0.0
        %3159 = vmatpush1.msra.mxu0 0.0
        %3160 = vmatprep.subr.mxu0 0.0
        %3161 = vmatpush1.msra.mxu0 0.0
        %3162 = vmatprep.subr.mxu0 0.0
        %3163 = vmatpush1.msra.mxu0 0.0
        %3164 = vmatprep.subr.mxu0 0.0
        %3165 = vmatpush1.msra.mxu0 0.0
        %3166 = vmatprep.subr.mxu0 0.0
        %3167 = vmatpush1.msra.mxu0 0.0
        %3168 = vmatprep.subr.mxu0 0.0
        %3169 = vmatpush1.msra.mxu0 0.0
        %3170 = vmatprep.subr.mxu0 0.0
        %3171 = vmatpush1.msra.mxu0 0.0
        %3172 = vmatprep.subr.mxu0 0.0
        %3173 = vmatpush1.msra.mxu0 0.0
        %3174 = vmatprep.subr.mxu0 0.0
        %3175 = vmatpush1.msra.mxu0 0.0
        %3176 = vmatprep.subr.mxu0 0.0
        %3177 = vmatpush1.msra.mxu0 0.0
        %3178 = vmatprep.subr.mxu0 0.0
        %3179 = vmatpush1.msra.mxu0 0.0
        %3180 = vmatprep.subr.mxu0 0.0
        %3181 = vmatpush1.msra.mxu0 0.0
        %3182 = vmatprep.subr.mxu0 0.0
        %3183 = vmatpush1.msra.mxu0 0.0
        %3184 = vmatprep.subr.mxu0 0.0
        %3185 = vmatpush1.msra.mxu0 0.0
        %3186 = vmatprep.subr.mxu0 0.0
        %3187 = vmatpush1.msra.mxu0 0.0
        %3188 = vmatprep.subr.mxu0 0.0
        %3189 = vmatpush1.msra.mxu0 0.0
        %3190 = vmatprep.subr.mxu0 0.0
        %3191 = vmatpush1.msra.mxu0 0.0
        %3192 = vmatprep.subr.mxu0 0.0
        %3193 = vmatpush1.msra.mxu0 0.0
        %3194 = vmatprep.subr.mxu0 0.0
        %3195 = vmatpush1.msra.mxu0 0.0
        %3196 = vmatprep.subr.mxu0 0.0
        %3197 = vmatpush1.msra.mxu0 0.0
        %3198 = vmatprep.subr.mxu0 0.0
        %3199 = vmatpush1.msra.mxu0 0.0
        %3200 = vmatprep.subr.mxu0 0.0
        %3201 = vmatpush1.msra.mxu0 0.0
        %3202 = vmatprep.subr.mxu0 0.0
        %3203 = vmatpush1.msra.mxu0 0.0
        %3204 = vmatprep.subr.mxu0 0.0
        %3205 = vmatpush1.msra.mxu0 0.0
        %3206 = vmatprep.mubr.f32.mxu0 0.0
        %3207 = vmatmul.mubr.f32.gmra.mrb[0].mxu0 %v3140
        %v3208 = vpop.f32.mrb[0].mxu0
        %v3209 = vadd.f32 0.0, %v3208
        %v3210 = vpop.f32.mrb[0].mxu0
        %3211 = vdwg.mxu0
        %3212 = vrot.lane.b32.xlu0 %v404, 40
        %v3213 = vpop.permute.xlu0 %3212
        %v3216 = vsel %vm427, %v3058, 0
        %3218 = vmatprep.subr.mxu0 0.0
        %3219 = vmatpush1.msra.mxu0 %v3213
        %3220 = vmatprep.subr.mxu0 0.0
        %3221 = vmatpush1.msra.mxu0 0.0
        %3222 = vmatprep.subr.mxu0 0.0
        %3223 = vmatpush1.msra.mxu0 0.0
        %3224 = vmatprep.subr.mxu0 0.0
        %3225 = vmatpush1.msra.mxu0 0.0
        %3226 = vmatprep.subr.mxu0 0.0
        %3227 = vmatpush1.msra.mxu0 0.0
        %3228 = vmatprep.subr.mxu0 0.0
        %3229 = vmatpush1.msra.mxu0 0.0
        %3230 = vmatprep.subr.mxu0 0.0
        %3231 = vmatpush1.msra.mxu0 0.0
        %3232 = vmatprep.subr.mxu0 0.0
        %3233 = vmatpush1.msra.mxu0 0.0
        %3234 = vmatprep.subr.mxu0 0.0
        %3235 = vmatpush1.msra.mxu0 0.0
        %3236 = vmatprep.subr.mxu0 0.0
        %3237 = vmatpush1.msra.mxu0 0.0
        %3238 = vmatprep.subr.mxu0 0.0
        %3239 = vmatpush1.msra.mxu0 0.0
        %3240 = vmatprep.subr.mxu0 0.0
        %3241 = vmatpush1.msra.mxu0 0.0
        %3242 = vmatprep.subr.mxu0 0.0
        %3243 = vmatpush1.msra.mxu0 0.0
        %3244 = vmatprep.subr.mxu0 0.0
        %3245 = vmatpush1.msra.mxu0 0.0
        %3246 = vmatprep.subr.mxu0 0.0
        %3247 = vmatpush1.msra.mxu0 0.0
        %3248 = vmatprep.subr.mxu0 0.0
        %3249 = vmatpush1.msra.mxu0 0.0
        %3250 = vmatprep.subr.mxu0 0.0
        %3251 = vmatpush1.msra.mxu0 0.0
        %3252 = vmatprep.subr.mxu0 0.0
        %3253 = vmatpush1.msra.mxu0 0.0
        %3254 = vmatprep.subr.mxu0 0.0
        %3255 = vmatpush1.msra.mxu0 0.0
        %3256 = vmatprep.subr.mxu0 0.0
        %3257 = vmatpush1.msra.mxu0 0.0
        %3258 = vmatprep.subr.mxu0 0.0
        %3259 = vmatpush1.msra.mxu0 0.0
        %3260 = vmatprep.subr.mxu0 0.0
        %3261 = vmatpush1.msra.mxu0 0.0
        %3262 = vmatprep.subr.mxu0 0.0
        %3263 = vmatpush1.msra.mxu0 0.0
        %3264 = vmatprep.subr.mxu0 0.0
        %3265 = vmatpush1.msra.mxu0 0.0
        %3266 = vmatprep.subr.mxu0 0.0
        %3267 = vmatpush1.msra.mxu0 0.0
        %3268 = vmatprep.subr.mxu0 0.0
        %3269 = vmatpush1.msra.mxu0 0.0
        %3270 = vmatprep.subr.mxu0 0.0
        %3271 = vmatpush1.msra.mxu0 0.0
        %3272 = vmatprep.subr.mxu0 0.0
        %3273 = vmatpush1.msra.mxu0 0.0
        %3274 = vmatprep.subr.mxu0 0.0
        %3275 = vmatpush1.msra.mxu0 0.0
        %3276 = vmatprep.subr.mxu0 0.0
        %3277 = vmatpush1.msra.mxu0 0.0
        %3278 = vmatprep.subr.mxu0 0.0
        %3279 = vmatpush1.msra.mxu0 0.0
        %3280 = vmatprep.subr.mxu0 0.0
        %3281 = vmatpush1.msra.mxu0 0.0
        %3282 = vmatprep.mubr.f32.mxu0 0.0
        %3283 = vmatmul.mubr.f32.gmra.mrb[0].mxu0 %v3216
        %v3284 = vpop.f32.mrb[0].mxu0
        %v3285 = vadd.f32 0.0, %v3284
        %v3286 = vpop.f32.mrb[0].mxu0
        %3287 = vdwg.mxu0
        %3288 = vrot.lane.b32.xlu0 %v409, 40
        %v3289 = vpop.permute.xlu0 %3288
        %v3292 = vsel %vm427, %v3059, 0
        %3294 = vmatprep.subr.mxu0 0.0
        %3295 = vmatpush1.msra.mxu0 %v3289
        %3296 = vmatprep.subr.mxu0 0.0
        %3297 = vmatpush1.msra.mxu0 0.0
        %3298 = vmatprep.subr.mxu0 0.0
        %3299 = vmatpush1.msra.mxu0 0.0
        %3300 = vmatprep.subr.mxu0 0.0
        %3301 = vmatpush1.msra.mxu0 0.0
        %3302 = vmatprep.subr.mxu0 0.0
        %3303 = vmatpush1.msra.mxu0 0.0
        %3304 = vmatprep.subr.mxu0 0.0
        %3305 = vmatpush1.msra.mxu0 0.0
        %3306 = vmatprep.subr.mxu0 0.0
        %3307 = vmatpush1.msra.mxu0 0.0
        %3308 = vmatprep.subr.mxu0 0.0
        %3309 = vmatpush1.msra.mxu0 0.0
        %3310 = vmatprep.subr.mxu0 0.0
        %3311 = vmatpush1.msra.mxu0 0.0
        %3312 = vmatprep.subr.mxu0 0.0
        %3313 = vmatpush1.msra.mxu0 0.0
        %3314 = vmatprep.subr.mxu0 0.0
        %3315 = vmatpush1.msra.mxu0 0.0
        %3316 = vmatprep.subr.mxu0 0.0
        %3317 = vmatpush1.msra.mxu0 0.0
        %3318 = vmatprep.subr.mxu0 0.0
        %3319 = vmatpush1.msra.mxu0 0.0
        %3320 = vmatprep.subr.mxu0 0.0
        %3321 = vmatpush1.msra.mxu0 0.0
        %3322 = vmatprep.subr.mxu0 0.0
        %3323 = vmatpush1.msra.mxu0 0.0
        %3324 = vmatprep.subr.mxu0 0.0
        %3325 = vmatpush1.msra.mxu0 0.0
        %3326 = vmatprep.subr.mxu0 0.0
        %3327 = vmatpush1.msra.mxu0 0.0
        %3328 = vmatprep.subr.mxu0 0.0
        %3329 = vmatpush1.msra.mxu0 0.0
        %3330 = vmatprep.subr.mxu0 0.0
        %3331 = vmatpush1.msra.mxu0 0.0
        %3332 = vmatprep.subr.mxu0 0.0
        %3333 = vmatpush1.msra.mxu0 0.0
        %3334 = vmatprep.subr.mxu0 0.0
        %3335 = vmatpush1.msra.mxu0 0.0
        %3336 = vmatprep.subr.mxu0 0.0
        %3337 = vmatpush1.msra.mxu0 0.0
        %3338 = vmatprep.subr.mxu0 0.0
        %3339 = vmatpush1.msra.mxu0 0.0
        %3340 = vmatprep.subr.mxu0 0.0
        %3341 = vmatpush1.msra.mxu0 0.0
        %3342 = vmatprep.subr.mxu0 0.0
        %3343 = vmatpush1.msra.mxu0 0.0
        %3344 = vmatprep.subr.mxu0 0.0
        %3345 = vmatpush1.msra.mxu0 0.0
        %3346 = vmatprep.subr.mxu0 0.0
        %3347 = vmatpush1.msra.mxu0 0.0
        %3348 = vmatprep.subr.mxu0 0.0
        %3349 = vmatpush1.msra.mxu0 0.0
        %3350 = vmatprep.subr.mxu0 0.0
        %3351 = vmatpush1.msra.mxu0 0.0
        %3352 = vmatprep.subr.mxu0 0.0
        %3353 = vmatpush1.msra.mxu0 0.0
        %3354 = vmatprep.subr.mxu0 0.0
        %3355 = vmatpush1.msra.mxu0 0.0
        %3356 = vmatprep.subr.mxu0 0.0
        %3357 = vmatpush1.msra.mxu0 0.0
        %3358 = vmatprep.mubr.f32.mxu0 0.0
        %3359 = vmatmul.mubr.f32.gmra.mrb[0].mxu0 %v3292
        %v3360 = vpop.f32.mrb[0].mxu0
        %v3361 = vadd.f32 0.0, %v3360
        %v3362 = vpop.f32.mrb[0].mxu0
        %3363 = vdwg.mxu0
        %v3365 = vsel %vm427, %v3133, 0
        %v3368 = vsel %vm427, %v3209, 0
        %v3371 = vsel %vm427, %v3285, 0
        %v3374 = vsel %vm427, %v3361, 0
        %3376 = vmatprep.subr.mxu0 0.0
        %3377 = vmatpush1.msra.mxu0 %v415
        %3378 = vmatprep.subr.mxu0 0.0
        %3379 = vmatpush1.msra.mxu0 0.0
        %3380 = vmatprep.subr.mxu0 0.0
        %3381 = vmatpush1.msra.mxu0 0.0
        %3382 = vmatprep.subr.mxu0 0.0
        %3383 = vmatpush1.msra.mxu0 0.0
        %3384 = vmatprep.subr.mxu0 0.0
        %3385 = vmatpush1.msra.mxu0 0.0
        %3386 = vmatprep.subr.mxu0 0.0
        %3387 = vmatpush1.msra.mxu0 0.0
        %3388 = vmatprep.subr.mxu0 0.0
        %3389 = vmatpush1.msra.mxu0 0.0
        %3390 = vmatprep.subr.mxu0 0.0
        %3391 = vmatpush1.msra.mxu0 0.0
        %3392 = vmatprep.subr.mxu0 0.0
        %3393 = vmatpush1.msra.mxu0 0.0
        %3394 = vmatprep.subr.mxu0 0.0
        %3395 = vmatpush1.msra.mxu0 0.0
        %3396 = vmatprep.subr.mxu0 0.0
        %3397 = vmatpush1.msra.mxu0 0.0
        %3398 = vmatprep.subr.mxu0 0.0
        %3399 = vmatpush1.msra.mxu0 0.0
        %3400 = vmatprep.subr.mxu0 0.0
        %3401 = vmatpush1.msra.mxu0 0.0
        %3402 = vmatprep.subr.mxu0 0.0
        %3403 = vmatpush1.msra.mxu0 0.0
        %3404 = vmatprep.subr.mxu0 0.0
        %3405 = vmatpush1.msra.mxu0 0.0
        %3406 = vmatprep.subr.mxu0 0.0
        %3407 = vmatpush1.msra.mxu0 0.0
        %3408 = vmatprep.subr.mxu0 0.0
        %3409 = vmatpush1.msra.mxu0 0.0
        %3410 = vmatprep.subr.mxu0 0.0
        %3411 = vmatpush1.msra.mxu0 0.0
        %3412 = vmatprep.subr.mxu0 0.0
        %3413 = vmatpush1.msra.mxu0 0.0
        %3414 = vmatprep.subr.mxu0 0.0
        %3415 = vmatpush1.msra.mxu0 0.0
        %3416 = vmatprep.subr.mxu0 0.0
        %3417 = vmatpush1.msra.mxu0 0.0
        %3418 = vmatprep.subr.mxu0 0.0
        %3419 = vmatpush1.msra.mxu0 0.0
        %3420 = vmatprep.subr.mxu0 0.0
        %3421 = vmatpush1.msra.mxu0 0.0
        %3422 = vmatprep.subr.mxu0 0.0
        %3423 = vmatpush1.msra.mxu0 0.0
        %3424 = vmatprep.subr.mxu0 0.0
        %3425 = vmatpush1.msra.mxu0 0.0
        %3426 = vmatprep.subr.mxu0 0.0
        %3427 = vmatpush1.msra.mxu0 0.0
        %3428 = vmatprep.subr.mxu0 0.0
        %3429 = vmatpush1.msra.mxu0 0.0
        %3430 = vmatprep.subr.mxu0 0.0
        %3431 = vmatpush1.msra.mxu0 0.0
        %3432 = vmatprep.subr.mxu0 0.0
        %3433 = vmatpush1.msra.mxu0 0.0
        %3434 = vmatprep.subr.mxu0 0.0
        %3435 = vmatpush1.msra.mxu0 0.0
        %3436 = vmatprep.subr.mxu0 0.0
        %3437 = vmatpush1.msra.mxu0 0.0
        %3438 = vmatprep.subr.mxu0 0.0
        %3439 = vmatpush1.msra.mxu0 0.0
        %3440 = vmatprep.mubr.f32.mxu0 0.0
        %3441 = vmatmul.mubr.f32.gmra.mrb[0].mxu0 %v3365
        %v3442 = vpop.f32.mrb[0].mxu0
        %v3443 = vadd.f32 0.0, %v3442
        %v3444 = vpop.f32.mrb[0].mxu0
        %3445 = vmatprep.mubr.f32.mxu0 0.0
        %3446 = vmatmul.mubr.f32.gmra.mrb[0].mxu0 %v3368
        %v3447 = vpop.f32.mrb[0].mxu0
        %v3448 = vadd.f32 0.0, %v3447
        %v3449 = vpop.f32.mrb[0].mxu0
        %3450 = vmatprep.mubr.f32.mxu0 0.0
        %3451 = vmatmul.mubr.f32.gmra.mrb[0].mxu0 %v3371
        %v3452 = vpop.f32.mrb[0].mxu0
        %v3453 = vadd.f32 0.0, %v3452
        %v3454 = vpop.f32.mrb[0].mxu0
        %3455 = vmatprep.mubr.f32.mxu0 0.0
        %3456 = vmatmul.mubr.f32.gmra.mrb[0].mxu0 %v3374
        %v3457 = vpop.f32.mrb[0].mxu0
        %v3458 = vadd.f32 0.0, %v3457
        %v3459 = vpop.f32.mrb[0].mxu0
        %3460 = vdwg.mxu0
        %v3461 = vadd.f32 %v2700, %v3443
        %v3462 = vadd.f32 %v2701, %v3448
        %v3463 = vadd.f32 %v2702, %v3453
        %v3464 = vadd.f32 %v2703, %v3458
        %3465 = vst.msk [vmem:[%s296] sm:$0xff] %vm314, %v3461
        %3466 = vst.msk [vmem:[%s296 + $0x8] sm:$0xff] %vm314, %v3462
        %3467 = vst.msk [vmem:[%s296 + $0x10] sm:$0xff] %vm314, %v3463
        %3468 = vst.msk [vmem:[%s296 + $0x18] sm:$0xff] %vm314, %v3464
        %s3469 = sand.u32 %s142, 1
        %s3470 = scalar_lea.sflag [#allocation4], %s3469
        %s3471 = sand.u32 %s142, 1
        %s3472 = smul.addr %s3471, 32
        %s3473 = scalar_lea.vmem [#allocation11], %s3472
        // Predicated region
        $region61: #{tpu_custom_call.1} parent=39 // pred_check
          %p3474 = pneg %p152
        $region62: #{tpu_custom_call.1} parent=39 // pred_check_branch
          %3476 = sbr.rel (%p3474) target = $region64
        $region63: #{tpu_custom_call.1} parent=39 // pred_region
          %s3477 = smul.u32 4, %s24
          %s3479 = ssub.s32 512, 512
          %3480 = vsyncadd %s3470, %s3479
          %s3481 = smul.addr %s3477, 128
          %s3482 = scalar_lea.hbm %s5, %s3481
          %s3483 = sshll.u32 %s3473, 4
          %s3484 = int_to_ptr.vmem [resolvable:$true] %s3483
          %3489 = dma.vmem_to_hbm [thread:$0]  %s3484, 512, %s3482, %s3470, 128, 128, 8
        $region64: #{tpu_custom_call.1} parent=39 // pred_fallthru
          _
      $region40: #{tpu_custom_call.1} parent=5 // pred_fallthru
        _
      %p3490 = scmp.le.s32.totalorder 2, %s19
      // Predicated region
      $region65: #{tpu_custom_call.1} parent=5 // pred_check
        %p3491 = pneg %p3490
      $region66: #{tpu_custom_call.1} parent=5 // pred_check_branch
        %3493 = sbr.rel (%p3491) target = $region68
      $region67: #{tpu_custom_call.1} parent=5 // pred_region
        %s3494 = ssub.s32 %s19, 2
        // Predicated region
        $region69: #{tpu_custom_call.1} parent=67 // pred_check
          %p3495 = pneg %p158
        $region70: #{tpu_custom_call.1} parent=67 // pred_check_branch
          %3497 = sbr.rel (%p3495) target = $region72
        $region71: #{tpu_custom_call.1} parent=67 // pred_region
          %s3498 = sand.u32 %s143, 1
          %s3499 = scalar_lea.sflag [#allocation4], %s3498
          %s3500 = sand.u32 %s143, 1
          %s3501 = smul.addr %s3500, 32
          %s3502 = scalar_lea.vmem [#allocation11], %s3501
          %3503 = dma.done %s3499, 512
        $region72: #{tpu_custom_call.1} parent=67 // pred_fallthru
          _
      $region68: #{tpu_custom_call.1} parent=5 // pred_fallthru
        _
    $region6: #{tpu_custom_call.1} parent=1 // loop_footer
      %s23 = sadd.s32 1, %s19
    $region7: #{tpu_custom_call.1} parent=1 // loop_footer_branch
      %18 = sbr.rel target = $region3
    $region8: #{tpu_custom_call.1} parent=1 // loop_exit
      _
    %3504 = vsyncpa [#allocation3], 1
    %s3505 = scalar_lea.sflag [#allocation3], 1
    %3506 = vsyncpa %s3505, 1
    %3507 = vsyncpa [#allocation6], 1
    %3508 = vsyncpa [#allocation9], 1
    %3509 = vsyncpa [#allocation4], 1
    %s3510 = scalar_lea.sflag [#allocation4], 1
    %3511 = vsyncpa %s3510, 1

</llo_original>
